<compile_context>
chip_gen: v5e
topology: v5e:2x2
jax: 0.10.0
libtpu: 0.0.40
codegen_flags: <defaults>
</compile_context>

<pallas_src>
import functools

import numpy as np
import jax
import jax.numpy as jnp
from jax.experimental import pallas as pl
from jax.experimental.pallas import tpu as pltpu

EPS = 1e-5


# ----------------------------------------------------------------------------
# In-kernel helpers
# ----------------------------------------------------------------------------
def _bn_act(y, gamma, beta, eps, relu):
    """Training-mode BatchNorm (biased var), one pass over y, folded to a
    single multiply-add.  y: (M, C) f32, gamma/beta: (1, C) f32."""
    m = y.shape[0]
    inv_m = 1.0 / m
    mean = jnp.sum(y, axis=0, keepdims=True) * inv_m
    ex2 = jnp.sum(y * y, axis=0, keepdims=True) * inv_m
    var = jnp.maximum(ex2 - mean * mean, 0.0)          # clamp: cancellation
    scale = gamma * jax.lax.rsqrt(var + eps)
    bias = beta - mean * scale
    out = y * scale + bias
    if relu:
        out = jnp.maximum(out, 0.0)
    return out


def _block_kernel(*refs, cfgs, eps):
    """Fused forward of the whole ResNeXtBlock (all bottlenecks)."""
    f32, bf16 = jnp.float32, jnp.bfloat16
    n_b = len(cfgs)
    x_ref = refs[0]
    prm = refs[1:1 + 12 * n_b]
    out_ref = refs[1 + 12 * n_b]
    b1p_ref, patch_ref, xs_ref, act_a, act_b = refs[2 + 12 * n_b:]
    act_refs = (act_a, act_b)

    cur_ref = x_ref                                    # f32 (rows, Cp) ref
    for b in range(n_b):
        N, H, W, s, Ho, Wo = cfgs[b]
        (wr, gr, br, wsp, gsp, bsp,
         we, ge, be, wsc, gsc, bsc) = prm[12 * b:12 * (b + 1)]
        Hp, Wp = H + 2, W + 2
        M1, M2 = N * H * W, N * Ho * Wo
        Dp = wr.shape[1]
        last = (b == n_b - 1)

        x = cur_ref[pl.ds(0, M1), :]                   # (M1, Cp) f32
        x_bf = x.astype(bf16)

        # ---- stage 1: conv_reduce (1x1) + BN + ReLU -----------------------
        y1 = jnp.dot(x_bf, wr[...], preferred_element_type=f32)
        b1 = _bn_act(y1, gr[...], br[...], eps, relu=True)        # (M1, Dp) f32

        # ---- stage 2: grouped 3x3 conv, pad=1, stride=s -------------------
        # scatter b1 into a zero spatially-padded scratch (row-flattened)
        npad = N * Hp * Wp
        b1p_ref[pl.ds(0, npad), :] = jnp.zeros((npad, Dp), f32)
        for n in range(N):
            for h in range(H):
                dst = (n * Hp + h + 1) * Wp + 1
                src = (n * H + h) * W
                b1p_ref[pl.ds(dst, W), :] = b1[src:src + W, :]
        # gather the 9 shifted / strided tap windows, lane-concatenated into
        # one (M2, 9*Dp) patch tile
        for n in range(N):
            for ho in range(Ho):
                orow = (n * Ho + ho) * Wo
                for kh in range(3):
                    for kw in range(3):
                        t = kh * 3 + kw
                        srow = (n * Hp + s * ho + kh) * Wp + kw
                        if s == 1:
                            win = b1p_ref[pl.ds(srow, Wo), :]
                        else:
                            win = b1p_ref[pl.ds(srow, Wo, stride=s), :]
                        patch_ref[pl.ds(orow, Wo), pl.ds(t * Dp, Dp)] = win
        patches = patch_ref[pl.ds(0, M2), :].astype(bf16)          # (M2, 9*Dp)
        # ONE MXU matmul, K = 9*Dp, f32 accumulation
        y2 = jnp.dot(patches, wsp[...], preferred_element_type=f32)
        b2 = _bn_act(y2, gsp[...], bsp[...], eps, relu=True).astype(bf16)

        # ---- shortcut: strided subsample (skipped when s == 1) + 1x1 + BN -
        if s == 1:
            xs_bf = x_bf                                # identity: reuse x
        else:
            for n in range(N):
                for ho in range(Ho):
                    orow = (n * Ho + ho) * Wo
                    srow = (n * H + s * ho) * W
                    xs_ref[pl.ds(orow, Wo), :] = cur_ref[pl.ds(srow, Wo, stride=s), :]
            xs_bf = xs_ref[pl.ds(0, M2), :].astype(bf16)
        res = _bn_act(jnp.dot(xs_bf, wsc[...], preferred_element_type=f32),
                      gsc[...], bsc[...], eps, relu=False)

        # ---- stage 3: conv_expand (1x1) + BN + residual add + ReLU --------
        y3 = jnp.dot(b2, we[...], preferred_element_type=f32)
        out = jnp.maximum(_bn_act(y3, ge[...], be[...], eps, relu=False) + res, 0.0)

        if last:
            out_ref[...] = out.astype(out_ref.dtype)
        else:
            nxt = act_refs[b % 2]                       # ping/pong VMEM scratch
            nxt[pl.ds(0, M2), :] = out
            cur_ref = nxt


# ----------------------------------------------------------------------------
# Static (init-time) parameter construction
# ----------------------------------------------------------------------------
def pad128(n):
    return max(128, ((n + 127) // 128) * 128)


def init_bottleneck_params(key, in_channels, out_channels, cardinality,
                           base_width, widen_factor):
    width_ratio = out_channels / (widen_factor * 64.0)
    D = cardinality * int(base_width * width_ratio)
    gsz = D // cardinality
    Cp, Dp, Cop = pad128(in_channels), pad128(D), pad128(out_channels)
    ks = jax.random.split(key, 8)

    def he(k, fan_in, shape):
        return np.asarray(jax.random.normal(k, shape, jnp.float32)) * np.sqrt(2.0 / fan_in)

    def bn(k, c, cpad):
        kk = jax.random.split(k, 2)
        g = np.zeros((1, cpad), np.float32)
        bb = np.zeros((1, cpad), np.float32)
        g[0, :c] = 1.0 + 0.1 * np.asarray(jax.random.normal(kk[0], (c,), jnp.float32))
        bb[0, :c] = 0.05 * np.asarray(jax.random.normal(kk[1], (c,), jnp.float32))
        return jnp.asarray(g), jnp.asarray(bb)          # gamma=0 in padded lanes

    p = {}
    # conv_reduce: 1x1, stored as (Cin, D), zero-padded to (Cp, Dp)
    wr = np.zeros((Cp, Dp), np.float32)
    wr[:in_channels, :D] = he(ks[0], in_channels, (in_channels, D))
    p["w_reduce"] = jnp.asarray(wr, jnp.bfloat16)
    p["g_reduce"], p["b_reduce"] = bn(ks[1], D, Dp)

    # conv_split: grouped 3x3 -> 9 block-diagonal taps stacked to (9*Dp, Dp)
    w_grouped = he(ks[2], gsz * 9, (D, gsz, 3, 3))
    dense = np.zeros((9, Dp, Dp), np.float32)
    per_out = D // cardinality
    for co in range(D):
        g = co // per_out
        for kh in range(3):
            for kw in range(3):
                dense[kh * 3 + kw, g * gsz:(g + 1) * gsz, co] = w_grouped[co, :, kh, kw]
    p["w_split"] = jnp.asarray(dense.reshape(9 * Dp, Dp), jnp.bfloat16)
    p["g_split"], p["b_split"] = bn(ks[3], D, Dp)

    # conv_expand: 1x1, (D, Cout) padded to (Dp, Cop)
    we = np.zeros((Dp, Cop), np.float32)
    we[:D, :out_channels] = he(ks[4], D, (D, out_channels))
    p["w_expand"] = jnp.asarray(we, jnp.bfloat16)
    p["g_expand"], p["b_expand"] = bn(ks[5], out_channels, Cop)

    # shortcut: 1x1 stride-s conv, (Cin, Cout) padded to (Cp, Cop)
    wsc = np.zeros((Cp, Cop), np.float32)
    wsc[:in_channels, :out_channels] = he(ks[6], in_channels, (in_channels, out_channels))
    p["w_short"] = jnp.asarray(wsc, jnp.bfloat16)
    p["g_short"], p["b_short"] = bn(ks[7], out_channels, Cop)
    return p


# ----------------------------------------------------------------------------
# Block forward (single fused pallas_call)
# ----------------------------------------------------------------------------
def resnext_block_forward(x_nchw, params_list, cfgs, out_channels):
    n_b = len(params_list)
    for c in cfgs[1:]:
        assert c[3] == 1, "only the first bottleneck of a block may be strided"

    N, Cin, H, W = x_nchw.shape
    Cp0 = params_list[0]["w_reduce"].shape[0]
    Dp = params_list[0]["w_reduce"].shape[1]
    Cop = params_list[-1]["w_expand"].shape[1]

    # NCHW (PyTorch) -> row-flattened, channel-padded NHWC, f32
    x = jnp.transpose(x_nchw, (0, 2, 3, 1))
    x = jnp.pad(x, ((0, 0), (0, 0), (0, 0), (0, Cp0 - Cin)))
    x_flat = x.reshape(N * H * W, Cp0).astype(jnp.float32)

    flat_params = []
    for p in params_list:
        flat_params += [p["w_reduce"], p["g_reduce"], p["b_reduce"],
                        p["w_split"], p["g_split"], p["b_split"],
                        p["w_expand"], p["g_expand"], p["b_expand"],
                        p["w_short"], p["g_short"], p["b_short"]]
    args = [x_flat] + flat_params

    max_pad = max(n_ * (h_ + 2) * (w_ + 2) for (n_, h_, w_, _, _, _) in cfgs)
    max_m2 = max(n_ * ho_ * wo_ for (n_, _, _, _, ho_, wo_) in cfgs)
    out_rows = cfgs[-1][0] * cfgs[-1][4] * cfgs[-1][5]

    scratch_shapes = [
        pltpu.VMEM((max_pad, Dp), jnp.float32),        # spatially padded b1
        pltpu.VMEM((max_m2, 9 * Dp), jnp.float32),     # lane-concat patch tile
        pltpu.VMEM((max_m2, Cp0), jnp.float32),        # strided shortcut input
        pltpu.VMEM((max_m2, Cop), jnp.float32),        # inter-bottleneck ping
        pltpu.VMEM((max_m2, Cop), jnp.float32),        # inter-bottleneck pong
    ]
    vmem_spec = pl.BlockSpec(memory_space=pltpu.MemorySpace.VMEM)

    out = pl.pallas_call(
        functools.partial(_block_kernel, cfgs=tuple(cfgs), eps=EPS),
        out_shape=jax.ShapeDtypeStruct((out_rows, Cop), jnp.float32),
        in_specs=[vmem_spec] * len(args),
        out_specs=vmem_spec,
        scratch_shapes=scratch_shapes,
    )(*args)

    Ho, Wo = cfgs[-1][4], cfgs[-1][5]
    out = out[:, :out_channels].reshape(N, Ho, Wo, out_channels)
    return jnp.transpose(out, (0, 3, 1, 2))            # back to NCHW


# ----------------------------------------------------------------------------
# main
# ----------------------------------------------------------------------------
if __name__ == "__main__":
    # ResNeXtBlock(in_channels=64, out_channels=64, stride=2,
    #              cardinality=4, base_width=4, widen_factor=1, block_depth=2)
    in_channels = 64
    out_channels = 64
    stride = 2
    cardinality = 4
    base_width = 4
    widen_factor = 1
    block_depth = 2
    N, H, W = 2, 8, 8

    key = jax.random.PRNGKey(0)
    key, xkey = jax.random.split(key)
    x = jax.random.normal(xkey, (N, in_channels, H, W), jnp.float32)   # NCHW

    params_list, cfgs = [], []
    h, w = H, W
    for d in range(block_depth):
        s = stride if d == 0 else 1
        ho = (h + 2 - 3) // s + 1
        wo = (w + 2 - 3) // s + 1
        key, pkey = jax.random.split(key)
        # NOTE: the reference module builds every bottleneck with the same
        # in_channels (== out_channels here), so we do the same.
        params_list.append(init_bottleneck_params(
            pkey, in_channels, out_channels, cardinality, base_width, widen_factor))
        cfgs.append((N, h, w, s, ho, wo))
        h, w = ho, wo

    out = resnext_block_forward(x, params_list, cfgs, out_channels)
    out = jax.block_until_ready(out)
    assert out.shape == (N, out_channels, H // stride, W // stride), out.shape
    assert bool(jnp.all(jnp.isfinite(out)))
    print("KERNEL_OK")
</pallas_src>

<mosaic_0001>
module attributes {stable_mosaic.version = 11 : i64} {
  func.func @_block_kernel(%arg0: memref<128x128xf32, #tpu.memory_space<vmem>>, %arg1: memref<128x128xbf16, #tpu.memory_space<vmem>>, %arg2: memref<1x128xf32, #tpu.memory_space<vmem>>, %arg3: memref<1x128xf32, #tpu.memory_space<vmem>>, %arg4: memref<1152x128xbf16, #tpu.memory_space<vmem>>, %arg5: memref<1x128xf32, #tpu.memory_space<vmem>>, %arg6: memref<1x128xf32, #tpu.memory_space<vmem>>, %arg7: memref<128x128xbf16, #tpu.memory_space<vmem>>, %arg8: memref<1x128xf32, #tpu.memory_space<vmem>>, %arg9: memref<1x128xf32, #tpu.memory_space<vmem>>, %arg10: memref<128x128xbf16, #tpu.memory_space<vmem>>, %arg11: memref<1x128xf32, #tpu.memory_space<vmem>>, %arg12: memref<1x128xf32, #tpu.memory_space<vmem>>, %arg13: memref<128x128xbf16, #tpu.memory_space<vmem>>, %arg14: memref<1x128xf32, #tpu.memory_space<vmem>>, %arg15: memref<1x128xf32, #tpu.memory_space<vmem>>, %arg16: memref<1152x128xbf16, #tpu.memory_space<vmem>>, %arg17: memref<1x128xf32, #tpu.memory_space<vmem>>, %arg18: memref<1x128xf32, #tpu.memory_space<vmem>>, %arg19: memref<128x128xbf16, #tpu.memory_space<vmem>>, %arg20: memref<1x128xf32, #tpu.memory_space<vmem>>, %arg21: memref<1x128xf32, #tpu.memory_space<vmem>>, %arg22: memref<128x128xbf16, #tpu.memory_space<vmem>>, %arg23: memref<1x128xf32, #tpu.memory_space<vmem>>, %arg24: memref<1x128xf32, #tpu.memory_space<vmem>>, %arg25: memref<32x128xf32, #tpu.memory_space<vmem>>, %arg26: memref<200x128xf32, #tpu.memory_space<vmem>>, %arg27: memref<32x1152xf32, #tpu.memory_space<vmem>>, %arg28: memref<32x128xf32, #tpu.memory_space<vmem>>, %arg29: memref<32x128xf32, #tpu.memory_space<vmem>>, %arg30: memref<32x128xf32, #tpu.memory_space<vmem>>) attributes {dimension_semantics = [], scalar_prefetch = 0 : i64, scratch_operands = 5 : i64, tpu.core_type = #tpu.core_type<tc>} {
    %c0 = arith.constant 0 : index
    %c0_0 = arith.constant 0 : index
    %0 = vector.load %arg0[%c0, %c0_0] : memref<128x128xf32, #tpu.memory_space<vmem>>, vector<128x128xf32>
    %1 = arith.truncf %0 : vector<128x128xf32> to vector<128x128xbf16>
    %c0_1 = arith.constant 0 : index
    %c0_2 = arith.constant 0 : index
    %2 = vector.load %arg1[%c0_1, %c0_2] : memref<128x128xbf16, #tpu.memory_space<vmem>>, vector<128x128xbf16>
    %cst = arith.constant dense<0.000000e+00> : vector<128x128xf32>
    %3 = tpu.matmul %1, %2, %cst {dimension_numbers = #tpu.dot_dimension_numbers<[1], [0], [0], [1], [0, 0, 1, 1], [], []>} : vector<128x128xbf16>, vector<128x128xbf16>, vector<128x128xf32> -> vector<128x128xf32>
    %c0_3 = arith.constant 0 : index
    %c0_4 = arith.constant 0 : index
    %4 = vector.load %arg2[%c0_3, %c0_4] : memref<1x128xf32, #tpu.memory_space<vmem>>, vector<1x128xf32>
    %c0_5 = arith.constant 0 : index
    %c0_6 = arith.constant 0 : index
    %5 = vector.load %arg3[%c0_5, %c0_6] : memref<1x128xf32, #tpu.memory_space<vmem>>, vector<1x128xf32>
    %cst_7 = arith.constant dense<0.000000e+00> : vector<128xf32>
    %6 = vector.multi_reduction <add>, %3, %cst_7 [0] : vector<128x128xf32> to vector<128xf32>
    %7 = vector.shape_cast %6 : vector<128xf32> to vector<1x128xf32>
    %cst_8 = arith.constant 7.812500e-03 : f32
    %8 = vector.broadcast %cst_8 : f32 to vector<1x128xf32>
    %9 = arith.mulf %7, %8 : vector<1x128xf32>
    %10 = arith.mulf %3, %3 : vector<128x128xf32>
    %cst_9 = arith.constant dense<0.000000e+00> : vector<128xf32>
    %11 = vector.multi_reduction <add>, %10, %cst_9 [0] : vector<128x128xf32> to vector<128xf32>
    %12 = vector.shape_cast %11 : vector<128xf32> to vector<1x128xf32>
    %cst_10 = arith.constant 7.812500e-03 : f32
    %13 = vector.broadcast %cst_10 : f32 to vector<1x128xf32>
    %14 = arith.mulf %12, %13 : vector<1x128xf32>
    %15 = arith.mulf %9, %9 : vector<1x128xf32>
    %16 = arith.subf %14, %15 : vector<1x128xf32>
    %cst_11 = arith.constant 0.000000e+00 : f32
    %17 = vector.broadcast %cst_11 : f32 to vector<1x128xf32>
    %18 = arith.maximumf %16, %17 : vector<1x128xf32>
    %cst_12 = arith.constant 9.99999974E-6 : f32
    %19 = vector.broadcast %cst_12 : f32 to vector<1x128xf32>
    %20 = arith.addf %18, %19 : vector<1x128xf32>
    %21 = math.rsqrt %20 : vector<1x128xf32>
    %22 = arith.mulf %4, %21 : vector<1x128xf32>
    %23 = arith.mulf %9, %22 : vector<1x128xf32>
    %24 = arith.subf %5, %23 : vector<1x128xf32>
    %25 = vector.broadcast %22 : vector<1x128xf32> to vector<128x128xf32>
    %26 = arith.mulf %3, %25 : vector<128x128xf32>
    %27 = vector.broadcast %24 : vector<1x128xf32> to vector<128x128xf32>
    %28 = arith.addf %26, %27 : vector<128x128xf32>
    %cst_13 = arith.constant 0.000000e+00 : f32
    %29 = vector.broadcast %cst_13 : f32 to vector<128x128xf32>
    %30 = arith.maximumf %28, %29 : vector<128x128xf32>
    %cst_14 = arith.constant 0.000000e+00 : f32
    %31 = vector.broadcast %cst_14 : f32 to vector<200x128xf32>
    %c0_15 = arith.constant 0 : index
    %c0_16 = arith.constant 0 : index
    %32 = vector.load %arg26[%c0_15, %c0_16] : memref<200x128xf32, #tpu.memory_space<vmem>>, vector<200x128xf32>
    tpu.vector_store %arg26[%c0_15, %c0_16], %31 {strides = array<i32>} : memref<200x128xf32, #tpu.memory_space<vmem>>, vector<200x128xf32>,
    %33 = vector.extract_strided_slice %30 {offsets = [0, 0], sizes = [8, 128], strides = [1, 1]} : vector<128x128xf32> to vector<8x128xf32>
    %c11 = arith.constant 11 : index
    %c0_17 = arith.constant 0 : index
    %34 = vector.load %arg26[%c11, %c0_17] : memref<200x128xf32, #tpu.memory_space<vmem>>, vector<8x128xf32>
    tpu.vector_store %arg26[%c11, %c0_17], %33 {strides = array<i32>} : memref<200x128xf32, #tpu.memory_space<vmem>>, vector<8x128xf32>,
    %35 = vector.extract_strided_slice %30 {offsets = [8, 0], sizes = [8, 128], strides = [1, 1]} : vector<128x128xf32> to vector<8x128xf32>
    %c21 = arith.constant 21 : index
    %c0_18 = arith.constant 0 : index
    %36 = vector.load %arg26[%c21, %c0_18] : memref<200x128xf32, #tpu.memory_space<vmem>>, vector<8x128xf32>
    tpu.vector_store %arg26[%c21, %c0_18], %35 {strides = array<i32>} : memref<200x128xf32, #tpu.memory_space<vmem>>, vector<8x128xf32>,
    %37 = vector.extract_strided_slice %30 {offsets = [16, 0], sizes = [8, 128], strides = [1, 1]} : vector<128x128xf32> to vector<8x128xf32>
    %c31 = arith.constant 31 : index
    %c0_19 = arith.constant 0 : index
    %38 = vector.load %arg26[%c31, %c0_19] : memref<200x128xf32, #tpu.memory_space<vmem>>, vector<8x128xf32>
    tpu.vector_store %arg26[%c31, %c0_19], %37 {strides = array<i32>} : memref<200x128xf32, #tpu.memory_space<vmem>>, vector<8x128xf32>,
    %39 = vector.extract_strided_slice %30 {offsets = [24, 0], sizes = [8, 128], strides = [1, 1]} : vector<128x128xf32> to vector<8x128xf32>
    %c41 = arith.constant 41 : index
    %c0_20 = arith.constant 0 : index
    %40 = vector.load %arg26[%c41, %c0_20] : memref<200x128xf32, #tpu.memory_space<vmem>>, vector<8x128xf32>
    tpu.vector_store %arg26[%c41, %c0_20], %39 {strides = array<i32>} : memref<200x128xf32, #tpu.memory_space<vmem>>, vector<8x128xf32>,
    %41 = vector.extract_strided_slice %30 {offsets = [32, 0], sizes = [8, 128], strides = [1, 1]} : vector<128x128xf32> to vector<8x128xf32>
    %c51 = arith.constant 51 : index
    %c0_21 = arith.constant 0 : index
    %42 = vector.load %arg26[%c51, %c0_21] : memref<200x128xf32, #tpu.memory_space<vmem>>, vector<8x128xf32>
    tpu.vector_store %arg26[%c51, %c0_21], %41 {strides = array<i32>} : memref<200x128xf32, #tpu.memory_space<vmem>>, vector<8x128xf32>,
    %43 = vector.extract_strided_slice %30 {offsets = [40, 0], sizes = [8, 128], strides = [1, 1]} : vector<128x128xf32> to vector<8x128xf32>
    %c61 = arith.constant 61 : index
    %c0_22 = arith.constant 0 : index
    %44 = vector.load %arg26[%c61, %c0_22] : memref<200x128xf32, #tpu.memory_space<vmem>>, vector<8x128xf32>
    tpu.vector_store %arg26[%c61, %c0_22], %43 {strides = array<i32>} : memref<200x128xf32, #tpu.memory_space<vmem>>, vector<8x128xf32>,
    %45 = vector.extract_strided_slice %30 {offsets = [48, 0], sizes = [8, 128], strides = [1, 1]} : vector<128x128xf32> to vector<8x128xf32>
    %c71 = arith.constant 71 : index
    %c0_23 = arith.constant 0 : index
    %46 = vector.load %arg26[%c71, %c0_23] : memref<200x128xf32, #tpu.memory_space<vmem>>, vector<8x128xf32>
    tpu.vector_store %arg26[%c71, %c0_23], %45 {strides = array<i32>} : memref<200x128xf32, #tpu.memory_space<vmem>>, vector<8x128xf32>,
    %47 = vector.extract_strided_slice %30 {offsets = [56, 0], sizes = [8, 128], strides = [1, 1]} : vector<128x128xf32> to vector<8x128xf32>
    %c81 = arith.constant 81 : index
    %c0_24 = arith.constant 0 : index
    %48 = vector.load %arg26[%c81, %c0_24] : memref<200x128xf32, #tpu.memory_space<vmem>>, vector<8x128xf32>
    tpu.vector_store %arg26[%c81, %c0_24], %47 {strides = array<i32>} : memref<200x128xf32, #tpu.memory_space<vmem>>, vector<8x128xf32>,
    %49 = vector.extract_strided_slice %30 {offsets = [64, 0], sizes = [8, 128], strides = [1, 1]} : vector<128x128xf32> to vector<8x128xf32>
    %c111 = arith.constant 111 : index
    %c0_25 = arith.constant 0 : index
    %50 = vector.load %arg26[%c111, %c0_25] : memref<200x128xf32, #tpu.memory_space<vmem>>, vector<8x128xf32>
    tpu.vector_store %arg26[%c111, %c0_25], %49 {strides = array<i32>} : memref<200x128xf32, #tpu.memory_space<vmem>>, vector<8x128xf32>,
    %51 = vector.extract_strided_slice %30 {offsets = [72, 0], sizes = [8, 128], strides = [1, 1]} : vector<128x128xf32> to vector<8x128xf32>
    %c121 = arith.constant 121 : index
    %c0_26 = arith.constant 0 : index
    %52 = vector.load %arg26[%c121, %c0_26] : memref<200x128xf32, #tpu.memory_space<vmem>>, vector<8x128xf32>
    tpu.vector_store %arg26[%c121, %c0_26], %51 {strides = array<i32>} : memref<200x128xf32, #tpu.memory_space<vmem>>, vector<8x128xf32>,
    %53 = vector.extract_strided_slice %30 {offsets = [80, 0], sizes = [8, 128], strides = [1, 1]} : vector<128x128xf32> to vector<8x128xf32>
    %c131 = arith.constant 131 : index
    %c0_27 = arith.constant 0 : index
    %54 = vector.load %arg26[%c131, %c0_27] : memref<200x128xf32, #tpu.memory_space<vmem>>, vector<8x128xf32>
    tpu.vector_store %arg26[%c131, %c0_27], %53 {strides = array<i32>} : memref<200x128xf32, #tpu.memory_space<vmem>>, vector<8x128xf32>,
    %55 = vector.extract_strided_slice %30 {offsets = [88, 0], sizes = [8, 128], strides = [1, 1]} : vector<128x128xf32> to vector<8x128xf32>
    %c141 = arith.constant 141 : index
    %c0_28 = arith.constant 0 : index
    %56 = vector.load %arg26[%c141, %c0_28] : memref<200x128xf32, #tpu.memory_space<vmem>>, vector<8x128xf32>
    tpu.vector_store %arg26[%c141, %c0_28], %55 {strides = array<i32>} : memref<200x128xf32, #tpu.memory_space<vmem>>, vector<8x128xf32>,
    %57 = vector.extract_strided_slice %30 {offsets = [96, 0], sizes = [8, 128], strides = [1, 1]} : vector<128x128xf32> to vector<8x128xf32>
    %c151 = arith.constant 151 : index
    %c0_29 = arith.constant 0 : index
    %58 = vector.load %arg26[%c151, %c0_29] : memref<200x128xf32, #tpu.memory_space<vmem>>, vector<8x128xf32>
    tpu.vector_store %arg26[%c151, %c0_29], %57 {strides = array<i32>} : memref<200x128xf32, #tpu.memory_space<vmem>>, vector<8x128xf32>,
    %59 = vector.extract_strided_slice %30 {offsets = [104, 0], sizes = [8, 128], strides = [1, 1]} : vector<128x128xf32> to vector<8x128xf32>
    %c161 = arith.constant 161 : index
    %c0_30 = arith.constant 0 : index
    %60 = vector.load %arg26[%c161, %c0_30] : memref<200x128xf32, #tpu.memory_space<vmem>>, vector<8x128xf32>
    tpu.vector_store %arg26[%c161, %c0_30], %59 {strides = array<i32>} : memref<200x128xf32, #tpu.memory_space<vmem>>, vector<8x128xf32>,
    %61 = vector.extract_strided_slice %30 {offsets = [112, 0], sizes = [8, 128], strides = [1, 1]} : vector<128x128xf32> to vector<8x128xf32>
    %c171 = arith.constant 171 : index
    %c0_31 = arith.constant 0 : index
    %62 = vector.load %arg26[%c171, %c0_31] : memref<200x128xf32, #tpu.memory_space<vmem>>, vector<8x128xf32>
    tpu.vector_store %arg26[%c171, %c0_31], %61 {strides = array<i32>} : memref<200x128xf32, #tpu.memory_space<vmem>>, vector<8x128xf32>,
    %63 = vector.extract_strided_slice %30 {offsets = [120, 0], sizes = [8, 128], strides = [1, 1]} : vector<128x128xf32> to vector<8x128xf32>
    %c181 = arith.constant 181 : index
    %c0_32 = arith.constant 0 : index
    %64 = vector.load %arg26[%c181, %c0_32] : memref<200x128xf32, #tpu.memory_space<vmem>>, vector<8x128xf32>
    tpu.vector_store %arg26[%c181, %c0_32], %63 {strides = array<i32>} : memref<200x128xf32, #tpu.memory_space<vmem>>, vector<8x128xf32>,
    %c0_33 = arith.constant 0 : index
    %c0_34 = arith.constant 0 : index
    %65 = tpu.strided_load %arg26[%c0_33, %c0_34] {strides = array<i32: 2, 1>} : memref<200x128xf32, #tpu.memory_space<vmem>>, vector<4x128xf32>
    %c0_35 = arith.constant 0 : index
    %c0_36 = arith.constant 0 : index
    %66 = vector.load %arg27[%c0_35, %c0_36] : memref<32x1152xf32, #tpu.memory_space<vmem>>, vector<4x128xf32>
    tpu.vector_store %arg27[%c0_35, %c0_36], %65 {strides = array<i32>} : memref<32x1152xf32, #tpu.memory_space<vmem>>, vector<4x128xf32>,
    %c1 = arith.constant 1 : index
    %c0_37 = arith.constant 0 : index
    %67 = tpu.strided_load %arg26[%c1, %c0_37] {strides = array<i32: 2, 1>} : memref<200x128xf32, #tpu.memory_space<vmem>>, vector<4x128xf32>
    %c0_38 = arith.constant 0 : index
    %c128 = arith.constant 128 : index
    %68 = vector.load %arg27[%c0_38, %c128] : memref<32x1152xf32, #tpu.memory_space<vmem>>, vector<4x128xf32>
    tpu.vector_store %arg27[%c0_38, %c128], %67 {strides = array<i32>} : memref<32x1152xf32, #tpu.memory_space<vmem>>, vector<4x128xf32>,
    %c2 = arith.constant 2 : index
    %c0_39 = arith.constant 0 : index
    %69 = tpu.strided_load %arg26[%c2, %c0_39] {strides = array<i32: 2, 1>} : memref<200x128xf32, #tpu.memory_space<vmem>>, vector<4x128xf32>
    %c0_40 = arith.constant 0 : index
    %c256 = arith.constant 256 : index
    %70 = vector.load %arg27[%c0_40, %c256] : memref<32x1152xf32, #tpu.memory_space<vmem>>, vector<4x128xf32>
    tpu.vector_store %arg27[%c0_40, %c256], %69 {strides = array<i32>} : memref<32x1152xf32, #tpu.memory_space<vmem>>, vector<4x128xf32>,
    %c10 = arith.constant 10 : index
    %c0_41 = arith.constant 0 : index
    %71 = tpu.strided_load %arg26[%c10, %c0_41] {strides = array<i32: 2, 1>} : memref<200x128xf32, #tpu.memory_space<vmem>>, vector<4x128xf32>
    %c0_42 = arith.constant 0 : index
    %c384 = arith.constant 384 : index
    %72 = vector.load %arg27[%c0_42, %c384] : memref<32x1152xf32, #tpu.memory_space<vmem>>, vector<4x128xf32>
    tpu.vector_store %arg27[%c0_42, %c384], %71 {strides = array<i32>} : memref<32x1152xf32, #tpu.memory_space<vmem>>, vector<4x128xf32>,
    %c11_43 = arith.constant 11 : index
    %c0_44 = arith.constant 0 : index
    %73 = tpu.strided_load %arg26[%c11_43, %c0_44] {strides = array<i32: 2, 1>} : memref<200x128xf32, #tpu.memory_space<vmem>>, vector<4x128xf32>
    %c0_45 = arith.constant 0 : index
    %c512 = arith.constant 512 : index
    %74 = vector.load %arg27[%c0_45, %c512] : memref<32x1152xf32, #tpu.memory_space<vmem>>, vector<4x128xf32>
    tpu.vector_store %arg27[%c0_45, %c512], %73 {strides = array<i32>} : memref<32x1152xf32, #tpu.memory_space<vmem>>, vector<4x128xf32>,
    %c12 = arith.constant 12 : index
    %c0_46 = arith.constant 0 : index
    %75 = tpu.strided_load %arg26[%c12, %c0_46] {strides = array<i32: 2, 1>} : memref<200x128xf32, #tpu.memory_space<vmem>>, vector<4x128xf32>
    %c0_47 = arith.constant 0 : index
    %c640 = arith.constant 640 : index
    %76 = vector.load %arg27[%c0_47, %c640] : memref<32x1152xf32, #tpu.memory_space<vmem>>, vector<4x128xf32>
    tpu.vector_store %arg27[%c0_47, %c640], %75 {strides = array<i32>} : memref<32x1152xf32, #tpu.memory_space<vmem>>, vector<4x128xf32>,
    %c20 = arith.constant 20 : index
    %c0_48 = arith.constant 0 : index
    %77 = tpu.strided_load %arg26[%c20, %c0_48] {strides = array<i32: 2, 1>} : memref<200x128xf32, #tpu.memory_space<vmem>>, vector<4x128xf32>
    %c0_49 = arith.constant 0 : index
    %c768 = arith.constant 768 : index
    %78 = vector.load %arg27[%c0_49, %c768] : memref<32x1152xf32, #tpu.memory_space<vmem>>, vector<4x128xf32>
    tpu.vector_store %arg27[%c0_49, %c768], %77 {strides = array<i32>} : memref<32x1152xf32, #tpu.memory_space<vmem>>, vector<4x128xf32>,
    %c21_50 = arith.constant 21 : index
    %c0_51 = arith.constant 0 : index
    %79 = tpu.strided_load %arg26[%c21_50, %c0_51] {strides = array<i32: 2, 1>} : memref<200x128xf32, #tpu.memory_space<vmem>>, vector<4x128xf32>
    %c0_52 = arith.constant 0 : index
    %c896 = arith.constant 896 : index
    %80 = vector.load %arg27[%c0_52, %c896] : memref<32x1152xf32, #tpu.memory_space<vmem>>, vector<4x128xf32>
    tpu.vector_store %arg27[%c0_52, %c896], %79 {strides = array<i32>} : memref<32x1152xf32, #tpu.memory_space<vmem>>, vector<4x128xf32>,
    %c22 = arith.constant 22 : index
    %c0_53 = arith.constant 0 : index
    %81 = tpu.strided_load %arg26[%c22, %c0_53] {strides = array<i32: 2, 1>} : memref<200x128xf32, #tpu.memory_space<vmem>>, vector<4x128xf32>
    %c0_54 = arith.constant 0 : index
    %c1024 = arith.constant 1024 : index
    %82 = vector.load %arg27[%c0_54, %c1024] : memref<32x1152xf32, #tpu.memory_space<vmem>>, vector<4x128xf32>
    tpu.vector_store %arg27[%c0_54, %c1024], %81 {strides = array<i32>} : memref<32x1152xf32, #tpu.memory_space<vmem>>, vector<4x128xf32>,
    %c20_55 = arith.constant 20 : index
    %c0_56 = arith.constant 0 : index
    %83 = tpu.strided_load %arg26[%c20_55, %c0_56] {strides = array<i32: 2, 1>} : memref<200x128xf32, #tpu.memory_space<vmem>>, vector<4x128xf32>
    %c4 = arith.constant 4 : index
    %c0_57 = arith.constant 0 : index
    %84 = vector.load %arg27[%c4, %c0_57] : memref<32x1152xf32, #tpu.memory_space<vmem>>, vector<4x128xf32>
    tpu.vector_store %arg27[%c4, %c0_57], %83 {strides = array<i32>} : memref<32x1152xf32, #tpu.memory_space<vmem>>, vector<4x128xf32>,
    %c21_58 = arith.constant 21 : index
    %c0_59 = arith.constant 0 : index
    %85 = tpu.strided_load %arg26[%c21_58, %c0_59] {strides = array<i32: 2, 1>} : memref<200x128xf32, #tpu.memory_space<vmem>>, vector<4x128xf32>
    %c4_60 = arith.constant 4 : index
    %c128_61 = arith.constant 128 : index
    %86 = vector.load %arg27[%c4_60, %c128_61] : memref<32x1152xf32, #tpu.memory_space<vmem>>, vector<4x128xf32>
    tpu.vector_store %arg27[%c4_60, %c128_61], %85 {strides = array<i32>} : memref<32x1152xf32, #tpu.memory_space<vmem>>, vector<4x128xf32>,
    %c22_62 = arith.constant 22 : index
    %c0_63 = arith.constant 0 : index
    %87 = tpu.strided_load %arg26[%c22_62, %c0_63] {strides = array<i32: 2, 1>} : memref<200x128xf32, #tpu.memory_space<vmem>>, vector<4x128xf32>
    %c4_64 = arith.constant 4 : index
    %c256_65 = arith.constant 256 : index
    %88 = vector.load %arg27[%c4_64, %c256_65] : memref<32x1152xf32, #tpu.memory_space<vmem>>, vector<4x128xf32>
    tpu.vector_store %arg27[%c4_64, %c256_65], %87 {strides = array<i32>} : memref<32x1152xf32, #tpu.memory_space<vmem>>, vector<4x128xf32>,
    %c30 = arith.constant 30 : index
    %c0_66 = arith.constant 0 : index
    %89 = tpu.strided_load %arg26[%c30, %c0_66] {strides = array<i32: 2, 1>} : memref<200x128xf32, #tpu.memory_space<vmem>>, vector<4x128xf32>
    %c4_67 = arith.constant 4 : index
    %c384_68 = arith.constant 384 : index
    %90 = vector.load %arg27[%c4_67, %c384_68] : memref<32x1152xf32, #tpu.memory_space<vmem>>, vector<4x128xf32>
    tpu.vector_store %arg27[%c4_67, %c384_68], %89 {strides = array<i32>} : memref<32x1152xf32, #tpu.memory_space<vmem>>, vector<4x128xf32>,
    %c31_69 = arith.constant 31 : index
    %c0_70 = arith.constant 0 : index
    %91 = tpu.strided_load %arg26[%c31_69, %c0_70] {strides = array<i32: 2, 1>} : memref<200x128xf32, #tpu.memory_space<vmem>>, vector<4x128xf32>
    %c4_71 = arith.constant 4 : index
    %c512_72 = arith.constant 512 : index
    %92 = vector.load %arg27[%c4_71, %c512_72] : memref<32x1152xf32, #tpu.memory_space<vmem>>, vector<4x128xf32>
    tpu.vector_store %arg27[%c4_71, %c512_72], %91 {strides = array<i32>} : memref<32x1152xf32, #tpu.memory_space<vmem>>, vector<4x128xf32>,
    %c32 = arith.constant 32 : index
    %c0_73 = arith.constant 0 : index
    %93 = tpu.strided_load %arg26[%c32, %c0_73] {strides = array<i32: 2, 1>} : memref<200x128xf32, #tpu.memory_space<vmem>>, vector<4x128xf32>
    %c4_74 = arith.constant 4 : index
    %c640_75 = arith.constant 640 : index
    %94 = vector.load %arg27[%c4_74, %c640_75] : memref<32x1152xf32, #tpu.memory_space<vmem>>, vector<4x128xf32>
    tpu.vector_store %arg27[%c4_74, %c640_75], %93 {strides = array<i32>} : memref<32x1152xf32, #tpu.memory_space<vmem>>, vector<4x128xf32>,
    %c40 = arith.constant 40 : index
    %c0_76 = arith.constant 0 : index
    %95 = tpu.strided_load %arg26[%c40, %c0_76] {strides = array<i32: 2, 1>} : memref<200x128xf32, #tpu.memory_space<vmem>>, vector<4x128xf32>
    %c4_77 = arith.constant 4 : index
    %c768_78 = arith.constant 768 : index
    %96 = vector.load %arg27[%c4_77, %c768_78] : memref<32x1152xf32, #tpu.memory_space<vmem>>, vector<4x128xf32>
    tpu.vector_store %arg27[%c4_77, %c768_78], %95 {strides = array<i32>} : memref<32x1152xf32, #tpu.memory_space<vmem>>, vector<4x128xf32>,
    %c41_79 = arith.constant 41 : index
    %c0_80 = arith.constant 0 : index
    %97 = tpu.strided_load %arg26[%c41_79, %c0_80] {strides = array<i32: 2, 1>} : memref<200x128xf32, #tpu.memory_space<vmem>>, vector<4x128xf32>
    %c4_81 = arith.constant 4 : index
    %c896_82 = arith.constant 896 : index
    %98 = vector.load %arg27[%c4_81, %c896_82] : memref<32x1152xf32, #tpu.memory_space<vmem>>, vector<4x128xf32>
    tpu.vector_store %arg27[%c4_81, %c896_82], %97 {strides = array<i32>} : memref<32x1152xf32, #tpu.memory_space<vmem>>, vector<4x128xf32>,
    %c42 = arith.constant 42 : index
    %c0_83 = arith.constant 0 : index
    %99 = tpu.strided_load %arg26[%c42, %c0_83] {strides = array<i32: 2, 1>} : memref<200x128xf32, #tpu.memory_space<vmem>>, vector<4x128xf32>
    %c4_84 = arith.constant 4 : index
    %c1024_85 = arith.constant 1024 : index
    %100 = vector.load %arg27[%c4_84, %c1024_85] : memref<32x1152xf32, #tpu.memory_space<vmem>>, vector<4x128xf32>
    tpu.vector_store %arg27[%c4_84, %c1024_85], %99 {strides = array<i32>} : memref<32x1152xf32, #tpu.memory_space<vmem>>, vector<4x128xf32>,
    %c40_86 = arith.constant 40 : index
    %c0_87 = arith.constant 0 : index
    %101 = tpu.strided_load %arg26[%c40_86, %c0_87] {strides = array<i32: 2, 1>} : memref<200x128xf32, #tpu.memory_space<vmem>>, vector<4x128xf32>
    %c8 = arith.constant 8 : index
    %c0_88 = arith.constant 0 : index
    %102 = vector.load %arg27[%c8, %c0_88] : memref<32x1152xf32, #tpu.memory_space<vmem>>, vector<4x128xf32>
    tpu.vector_store %arg27[%c8, %c0_88], %101 {strides = array<i32>} : memref<32x1152xf32, #tpu.memory_space<vmem>>, vector<4x128xf32>,
    %c41_89 = arith.constant 41 : index
    %c0_90 = arith.constant 0 : index
    %103 = tpu.strided_load %arg26[%c41_89, %c0_90] {strides = array<i32: 2, 1>} : memref<200x128xf32, #tpu.memory_space<vmem>>, vector<4x128xf32>
    %c8_91 = arith.constant 8 : index
    %c128_92 = arith.constant 128 : index
    %104 = vector.load %arg27[%c8_91, %c128_92] : memref<32x1152xf32, #tpu.memory_space<vmem>>, vector<4x128xf32>
    tpu.vector_store %arg27[%c8_91, %c128_92], %103 {strides = array<i32>} : memref<32x1152xf32, #tpu.memory_space<vmem>>, vector<4x128xf32>,
    %c42_93 = arith.constant 42 : index
    %c0_94 = arith.constant 0 : index
    %105 = tpu.strided_load %arg26[%c42_93, %c0_94] {strides = array<i32: 2, 1>} : memref<200x128xf32, #tpu.memory_space<vmem>>, vector<4x128xf32>
    %c8_95 = arith.constant 8 : index
    %c256_96 = arith.constant 256 : index
    %106 = vector.load %arg27[%c8_95, %c256_96] : memref<32x1152xf32, #tpu.memory_space<vmem>>, vector<4x128xf32>
    tpu.vector_store %arg27[%c8_95, %c256_96], %105 {strides = array<i32>} : memref<32x1152xf32, #tpu.memory_space<vmem>>, vector<4x128xf32>,
    %c50 = arith.constant 50 : index
    %c0_97 = arith.constant 0 : index
    %107 = tpu.strided_load %arg26[%c50, %c0_97] {strides = array<i32: 2, 1>} : memref<200x128xf32, #tpu.memory_space<vmem>>, vector<4x128xf32>
    %c8_98 = arith.constant 8 : index
    %c384_99 = arith.constant 384 : index
    %108 = vector.load %arg27[%c8_98, %c384_99] : memref<32x1152xf32, #tpu.memory_space<vmem>>, vector<4x128xf32>
    tpu.vector_store %arg27[%c8_98, %c384_99], %107 {strides = array<i32>} : memref<32x1152xf32, #tpu.memory_space<vmem>>, vector<4x128xf32>,
    %c51_100 = arith.constant 51 : index
    %c0_101 = arith.constant 0 : index
    %109 = tpu.strided_load %arg26[%c51_100, %c0_101] {strides = array<i32: 2, 1>} : memref<200x128xf32, #tpu.memory_space<vmem>>, vector<4x128xf32>
    %c8_102 = arith.constant 8 : index
    %c512_103 = arith.constant 512 : index
    %110 = vector.load %arg27[%c8_102, %c512_103] : memref<32x1152xf32, #tpu.memory_space<vmem>>, vector<4x128xf32>
    tpu.vector_store %arg27[%c8_102, %c512_103], %109 {strides = array<i32>} : memref<32x1152xf32, #tpu.memory_space<vmem>>, vector<4x128xf32>,
    %c52 = arith.constant 52 : index
    %c0_104 = arith.constant 0 : index
    %111 = tpu.strided_load %arg26[%c52, %c0_104] {strides = array<i32: 2, 1>} : memref<200x128xf32, #tpu.memory_space<vmem>>, vector<4x128xf32>
    %c8_105 = arith.constant 8 : index
    %c640_106 = arith.constant 640 : index
    %112 = vector.load %arg27[%c8_105, %c640_106] : memref<32x1152xf32, #tpu.memory_space<vmem>>, vector<4x128xf32>
    tpu.vector_store %arg27[%c8_105, %c640_106], %111 {strides = array<i32>} : memref<32x1152xf32, #tpu.memory_space<vmem>>, vector<4x128xf32>,
    %c60 = arith.constant 60 : index
    %c0_107 = arith.constant 0 : index
    %113 = tpu.strided_load %arg26[%c60, %c0_107] {strides = array<i32: 2, 1>} : memref<200x128xf32, #tpu.memory_space<vmem>>, vector<4x128xf32>
    %c8_108 = arith.constant 8 : index
    %c768_109 = arith.constant 768 : index
    %114 = vector.load %arg27[%c8_108, %c768_109] : memref<32x1152xf32, #tpu.memory_space<vmem>>, vector<4x128xf32>
    tpu.vector_store %arg27[%c8_108, %c768_109], %113 {strides = array<i32>} : memref<32x1152xf32, #tpu.memory_space<vmem>>, vector<4x128xf32>,
    %c61_110 = arith.constant 61 : index
    %c0_111 = arith.constant 0 : index
    %115 = tpu.strided_load %arg26[%c61_110, %c0_111] {strides = array<i32: 2, 1>} : memref<200x128xf32, #tpu.memory_space<vmem>>, vector<4x128xf32>
    %c8_112 = arith.constant 8 : index
    %c896_113 = arith.constant 896 : index
    %116 = vector.load %arg27[%c8_112, %c896_113] : memref<32x1152xf32, #tpu.memory_space<vmem>>, vector<4x128xf32>
    tpu.vector_store %arg27[%c8_112, %c896_113], %115 {strides = array<i32>} : memref<32x1152xf32, #tpu.memory_space<vmem>>, vector<4x128xf32>,
    %c62 = arith.constant 62 : index
    %c0_114 = arith.constant 0 : index
    %117 = tpu.strided_load %arg26[%c62, %c0_114] {strides = array<i32: 2, 1>} : memref<200x128xf32, #tpu.memory_space<vmem>>, vector<4x128xf32>
    %c8_115 = arith.constant 8 : index
    %c1024_116 = arith.constant 1024 : index
    %118 = vector.load %arg27[%c8_115, %c1024_116] : memref<32x1152xf32, #tpu.memory_space<vmem>>, vector<4x128xf32>
    tpu.vector_store %arg27[%c8_115, %c1024_116], %117 {strides = array<i32>} : memref<32x1152xf32, #tpu.memory_space<vmem>>, vector<4x128xf32>,
    %c60_117 = arith.constant 60 : index
    %c0_118 = arith.constant 0 : index
    %119 = tpu.strided_load %arg26[%c60_117, %c0_118] {strides = array<i32: 2, 1>} : memref<200x128xf32, #tpu.memory_space<vmem>>, vector<4x128xf32>
    %c12_119 = arith.constant 12 : index
    %c0_120 = arith.constant 0 : index
    %120 = vector.load %arg27[%c12_119, %c0_120] : memref<32x1152xf32, #tpu.memory_space<vmem>>, vector<4x128xf32>
    tpu.vector_store %arg27[%c12_119, %c0_120], %119 {strides = array<i32>} : memref<32x1152xf32, #tpu.memory_space<vmem>>, vector<4x128xf32>,
    %c61_121 = arith.constant 61 : index
    %c0_122 = arith.constant 0 : index
    %121 = tpu.strided_load %arg26[%c61_121, %c0_122] {strides = array<i32: 2, 1>} : memref<200x128xf32, #tpu.memory_space<vmem>>, vector<4x128xf32>
    %c12_123 = arith.constant 12 : index
    %c128_124 = arith.constant 128 : index
    %122 = vector.load %arg27[%c12_123, %c128_124] : memref<32x1152xf32, #tpu.memory_space<vmem>>, vector<4x128xf32>
    tpu.vector_store %arg27[%c12_123, %c128_124], %121 {strides = array<i32>} : memref<32x1152xf32, #tpu.memory_space<vmem>>, vector<4x128xf32>,
    %c62_125 = arith.constant 62 : index
    %c0_126 = arith.constant 0 : index
    %123 = tpu.strided_load %arg26[%c62_125, %c0_126] {strides = array<i32: 2, 1>} : memref<200x128xf32, #tpu.memory_space<vmem>>, vector<4x128xf32>
    %c12_127 = arith.constant 12 : index
    %c256_128 = arith.constant 256 : index
    %124 = vector.load %arg27[%c12_127, %c256_128] : memref<32x1152xf32, #tpu.memory_space<vmem>>, vector<4x128xf32>
    tpu.vector_store %arg27[%c12_127, %c256_128], %123 {strides = array<i32>} : memref<32x1152xf32, #tpu.memory_space<vmem>>, vector<4x128xf32>,
    %c70 = arith.constant 70 : index
    %c0_129 = arith.constant 0 : index
    %125 = tpu.strided_load %arg26[%c70, %c0_129] {strides = array<i32: 2, 1>} : memref<200x128xf32, #tpu.memory_space<vmem>>, vector<4x128xf32>
    %c12_130 = arith.constant 12 : index
    %c384_131 = arith.constant 384 : index
    %126 = vector.load %arg27[%c12_130, %c384_131] : memref<32x1152xf32, #tpu.memory_space<vmem>>, vector<4x128xf32>
    tpu.vector_store %arg27[%c12_130, %c384_131], %125 {strides = array<i32>} : memref<32x1152xf32, #tpu.memory_space<vmem>>, vector<4x128xf32>,
    %c71_132 = arith.constant 71 : index
    %c0_133 = arith.constant 0 : index
    %127 = tpu.strided_load %arg26[%c71_132, %c0_133] {strides = array<i32: 2, 1>} : memref<200x128xf32, #tpu.memory_space<vmem>>, vector<4x128xf32>
    %c12_134 = arith.constant 12 : index
    %c512_135 = arith.constant 512 : index
    %128 = vector.load %arg27[%c12_134, %c512_135] : memref<32x1152xf32, #tpu.memory_space<vmem>>, vector<4x128xf32>
    tpu.vector_store %arg27[%c12_134, %c512_135], %127 {strides = array<i32>} : memref<32x1152xf32, #tpu.memory_space<vmem>>, vector<4x128xf32>,
    %c72 = arith.constant 72 : index
    %c0_136 = arith.constant 0 : index
    %129 = tpu.strided_load %arg26[%c72, %c0_136] {strides = array<i32: 2, 1>} : memref<200x128xf32, #tpu.memory_space<vmem>>, vector<4x128xf32>
    %c12_137 = arith.constant 12 : index
    %c640_138 = arith.constant 640 : index
    %130 = vector.load %arg27[%c12_137, %c640_138] : memref<32x1152xf32, #tpu.memory_space<vmem>>, vector<4x128xf32>
    tpu.vector_store %arg27[%c12_137, %c640_138], %129 {strides = array<i32>} : memref<32x1152xf32, #tpu.memory_space<vmem>>, vector<4x128xf32>,
    %c80 = arith.constant 80 : index
    %c0_139 = arith.constant 0 : index
    %131 = tpu.strided_load %arg26[%c80, %c0_139] {strides = array<i32: 2, 1>} : memref<200x128xf32, #tpu.memory_space<vmem>>, vector<4x128xf32>
    %c12_140 = arith.constant 12 : index
    %c768_141 = arith.constant 768 : index
    %132 = vector.load %arg27[%c12_140, %c768_141] : memref<32x1152xf32, #tpu.memory_space<vmem>>, vector<4x128xf32>
    tpu.vector_store %arg27[%c12_140, %c768_141], %131 {strides = array<i32>} : memref<32x1152xf32, #tpu.memory_space<vmem>>, vector<4x128xf32>,
    %c81_142 = arith.constant 81 : index
    %c0_143 = arith.constant 0 : index
    %133 = tpu.strided_load %arg26[%c81_142, %c0_143] {strides = array<i32: 2, 1>} : memref<200x128xf32, #tpu.memory_space<vmem>>, vector<4x128xf32>
    %c12_144 = arith.constant 12 : index
    %c896_145 = arith.constant 896 : index
    %134 = vector.load %arg27[%c12_144, %c896_145] : memref<32x1152xf32, #tpu.memory_space<vmem>>, vector<4x128xf32>
    tpu.vector_store %arg27[%c12_144, %c896_145], %133 {strides = array<i32>} : memref<32x1152xf32, #tpu.memory_space<vmem>>, vector<4x128xf32>,
    %c82 = arith.constant 82 : index
    %c0_146 = arith.constant 0 : index
    %135 = tpu.strided_load %arg26[%c82, %c0_146] {strides = array<i32: 2, 1>} : memref<200x128xf32, #tpu.memory_space<vmem>>, vector<4x128xf32>
    %c12_147 = arith.constant 12 : index
    %c1024_148 = arith.constant 1024 : index
    %136 = vector.load %arg27[%c12_147, %c1024_148] : memref<32x1152xf32, #tpu.memory_space<vmem>>, vector<4x128xf32>
    tpu.vector_store %arg27[%c12_147, %c1024_148], %135 {strides = array<i32>} : memref<32x1152xf32, #tpu.memory_space<vmem>>, vector<4x128xf32>,
    %c100 = arith.constant 100 : index
    %c0_149 = arith.constant 0 : index
    %137 = tpu.strided_load %arg26[%c100, %c0_149] {strides = array<i32: 2, 1>} : memref<200x128xf32, #tpu.memory_space<vmem>>, vector<4x128xf32>
    %c16 = arith.constant 16 : index
    %c0_150 = arith.constant 0 : index
    %138 = vector.load %arg27[%c16, %c0_150] : memref<32x1152xf32, #tpu.memory_space<vmem>>, vector<4x128xf32>
    tpu.vector_store %arg27[%c16, %c0_150], %137 {strides = array<i32>} : memref<32x1152xf32, #tpu.memory_space<vmem>>, vector<4x128xf32>,
    %c101 = arith.constant 101 : index
    %c0_151 = arith.constant 0 : index
    %139 = tpu.strided_load %arg26[%c101, %c0_151] {strides = array<i32: 2, 1>} : memref<200x128xf32, #tpu.memory_space<vmem>>, vector<4x128xf32>
    %c16_152 = arith.constant 16 : index
    %c128_153 = arith.constant 128 : index
    %140 = vector.load %arg27[%c16_152, %c128_153] : memref<32x1152xf32, #tpu.memory_space<vmem>>, vector<4x128xf32>
    tpu.vector_store %arg27[%c16_152, %c128_153], %139 {strides = array<i32>} : memref<32x1152xf32, #tpu.memory_space<vmem>>, vector<4x128xf32>,
    %c102 = arith.constant 102 : index
    %c0_154 = arith.constant 0 : index
    %141 = tpu.strided_load %arg26[%c102, %c0_154] {strides = array<i32: 2, 1>} : memref<200x128xf32, #tpu.memory_space<vmem>>, vector<4x128xf32>
    %c16_155 = arith.constant 16 : index
    %c256_156 = arith.constant 256 : index
    %142 = vector.load %arg27[%c16_155, %c256_156] : memref<32x1152xf32, #tpu.memory_space<vmem>>, vector<4x128xf32>
    tpu.vector_store %arg27[%c16_155, %c256_156], %141 {strides = array<i32>} : memref<32x1152xf32, #tpu.memory_space<vmem>>, vector<4x128xf32>,
    %c110 = arith.constant 110 : index
    %c0_157 = arith.constant 0 : index
    %143 = tpu.strided_load %arg26[%c110, %c0_157] {strides = array<i32: 2, 1>} : memref<200x128xf32, #tpu.memory_space<vmem>>, vector<4x128xf32>
    %c16_158 = arith.constant 16 : index
    %c384_159 = arith.constant 384 : index
    %144 = vector.load %arg27[%c16_158, %c384_159] : memref<32x1152xf32, #tpu.memory_space<vmem>>, vector<4x128xf32>
    tpu.vector_store %arg27[%c16_158, %c384_159], %143 {strides = array<i32>} : memref<32x1152xf32, #tpu.memory_space<vmem>>, vector<4x128xf32>,
    %c111_160 = arith.constant 111 : index
    %c0_161 = arith.constant 0 : index
    %145 = tpu.strided_load %arg26[%c111_160, %c0_161] {strides = array<i32: 2, 1>} : memref<200x128xf32, #tpu.memory_space<vmem>>, vector<4x128xf32>
    %c16_162 = arith.constant 16 : index
    %c512_163 = arith.constant 512 : index
    %146 = vector.load %arg27[%c16_162, %c512_163] : memref<32x1152xf32, #tpu.memory_space<vmem>>, vector<4x128xf32>
    tpu.vector_store %arg27[%c16_162, %c512_163], %145 {strides = array<i32>} : memref<32x1152xf32, #tpu.memory_space<vmem>>, vector<4x128xf32>,
    %c112 = arith.constant 112 : index
    %c0_164 = arith.constant 0 : index
    %147 = tpu.strided_load %arg26[%c112, %c0_164] {strides = array<i32: 2, 1>} : memref<200x128xf32, #tpu.memory_space<vmem>>, vector<4x128xf32>
    %c16_165 = arith.constant 16 : index
    %c640_166 = arith.constant 640 : index
    %148 = vector.load %arg27[%c16_165, %c640_166] : memref<32x1152xf32, #tpu.memory_space<vmem>>, vector<4x128xf32>
    tpu.vector_store %arg27[%c16_165, %c640_166], %147 {strides = array<i32>} : memref<32x1152xf32, #tpu.memory_space<vmem>>, vector<4x128xf32>,
    %c120 = arith.constant 120 : index
    %c0_167 = arith.constant 0 : index
    %149 = tpu.strided_load %arg26[%c120, %c0_167] {strides = array<i32: 2, 1>} : memref<200x128xf32, #tpu.memory_space<vmem>>, vector<4x128xf32>
    %c16_168 = arith.constant 16 : index
    %c768_169 = arith.constant 768 : index
    %150 = vector.load %arg27[%c16_168, %c768_169] : memref<32x1152xf32, #tpu.memory_space<vmem>>, vector<4x128xf32>
    tpu.vector_store %arg27[%c16_168, %c768_169], %149 {strides = array<i32>} : memref<32x1152xf32, #tpu.memory_space<vmem>>, vector<4x128xf32>,
    %c121_170 = arith.constant 121 : index
    %c0_171 = arith.constant 0 : index
    %151 = tpu.strided_load %arg26[%c121_170, %c0_171] {strides = array<i32: 2, 1>} : memref<200x128xf32, #tpu.memory_space<vmem>>, vector<4x128xf32>
    %c16_172 = arith.constant 16 : index
    %c896_173 = arith.constant 896 : index
    %152 = vector.load %arg27[%c16_172, %c896_173] : memref<32x1152xf32, #tpu.memory_space<vmem>>, vector<4x128xf32>
    tpu.vector_store %arg27[%c16_172, %c896_173], %151 {strides = array<i32>} : memref<32x1152xf32, #tpu.memory_space<vmem>>, vector<4x128xf32>,
    %c122 = arith.constant 122 : index
    %c0_174 = arith.constant 0 : index
    %153 = tpu.strided_load %arg26[%c122, %c0_174] {strides = array<i32: 2, 1>} : memref<200x128xf32, #tpu.memory_space<vmem>>, vector<4x128xf32>
    %c16_175 = arith.constant 16 : index
    %c1024_176 = arith.constant 1024 : index
    %154 = vector.load %arg27[%c16_175, %c1024_176] : memref<32x1152xf32, #tpu.memory_space<vmem>>, vector<4x128xf32>
    tpu.vector_store %arg27[%c16_175, %c1024_176], %153 {strides = array<i32>} : memref<32x1152xf32, #tpu.memory_space<vmem>>, vector<4x128xf32>,
    %c120_177 = arith.constant 120 : index
    %c0_178 = arith.constant 0 : index
    %155 = tpu.strided_load %arg26[%c120_177, %c0_178] {strides = array<i32: 2, 1>} : memref<200x128xf32, #tpu.memory_space<vmem>>, vector<4x128xf32>
    %c20_179 = arith.constant 20 : index
    %c0_180 = arith.constant 0 : index
    %156 = vector.load %arg27[%c20_179, %c0_180] : memref<32x1152xf32, #tpu.memory_space<vmem>>, vector<4x128xf32>
    tpu.vector_store %arg27[%c20_179, %c0_180], %155 {strides = array<i32>} : memref<32x1152xf32, #tpu.memory_space<vmem>>, vector<4x128xf32>,
    %c121_181 = arith.constant 121 : index
    %c0_182 = arith.constant 0 : index
    %157 = tpu.strided_load %arg26[%c121_181, %c0_182] {strides = array<i32: 2, 1>} : memref<200x128xf32, #tpu.memory_space<vmem>>, vector<4x128xf32>
    %c20_183 = arith.constant 20 : index
    %c128_184 = arith.constant 128 : index
    %158 = vector.load %arg27[%c20_183, %c128_184] : memref<32x1152xf32, #tpu.memory_space<vmem>>, vector<4x128xf32>
    tpu.vector_store %arg27[%c20_183, %c128_184], %157 {strides = array<i32>} : memref<32x1152xf32, #tpu.memory_space<vmem>>, vector<4x128xf32>,
    %c122_185 = arith.constant 122 : index
    %c0_186 = arith.constant 0 : index
    %159 = tpu.strided_load %arg26[%c122_185, %c0_186] {strides = array<i32: 2, 1>} : memref<200x128xf32, #tpu.memory_space<vmem>>, vector<4x128xf32>
    %c20_187 = arith.constant 20 : index
    %c256_188 = arith.constant 256 : index
    %160 = vector.load %arg27[%c20_187, %c256_188] : memref<32x1152xf32, #tpu.memory_space<vmem>>, vector<4x128xf32>
    tpu.vector_store %arg27[%c20_187, %c256_188], %159 {strides = array<i32>} : memref<32x1152xf32, #tpu.memory_space<vmem>>, vector<4x128xf32>,
    %c130 = arith.constant 130 : index
    %c0_189 = arith.constant 0 : index
    %161 = tpu.strided_load %arg26[%c130, %c0_189] {strides = array<i32: 2, 1>} : memref<200x128xf32, #tpu.memory_space<vmem>>, vector<4x128xf32>
    %c20_190 = arith.constant 20 : index
    %c384_191 = arith.constant 384 : index
    %162 = vector.load %arg27[%c20_190, %c384_191] : memref<32x1152xf32, #tpu.memory_space<vmem>>, vector<4x128xf32>
    tpu.vector_store %arg27[%c20_190, %c384_191], %161 {strides = array<i32>} : memref<32x1152xf32, #tpu.memory_space<vmem>>, vector<4x128xf32>,
    %c131_192 = arith.constant 131 : index
    %c0_193 = arith.constant 0 : index
    %163 = tpu.strided_load %arg26[%c131_192, %c0_193] {strides = array<i32: 2, 1>} : memref<200x128xf32, #tpu.memory_space<vmem>>, vector<4x128xf32>
    %c20_194 = arith.constant 20 : index
    %c512_195 = arith.constant 512 : index
    %164 = vector.load %arg27[%c20_194, %c512_195] : memref<32x1152xf32, #tpu.memory_space<vmem>>, vector<4x128xf32>
    tpu.vector_store %arg27[%c20_194, %c512_195], %163 {strides = array<i32>} : memref<32x1152xf32, #tpu.memory_space<vmem>>, vector<4x128xf32>,
    %c132 = arith.constant 132 : index
    %c0_196 = arith.constant 0 : index
    %165 = tpu.strided_load %arg26[%c132, %c0_196] {strides = array<i32: 2, 1>} : memref<200x128xf32, #tpu.memory_space<vmem>>, vector<4x128xf32>
    %c20_197 = arith.constant 20 : index
    %c640_198 = arith.constant 640 : index
    %166 = vector.load %arg27[%c20_197, %c640_198] : memref<32x1152xf32, #tpu.memory_space<vmem>>, vector<4x128xf32>
    tpu.vector_store %arg27[%c20_197, %c640_198], %165 {strides = array<i32>} : memref<32x1152xf32, #tpu.memory_space<vmem>>, vector<4x128xf32>,
    %c140 = arith.constant 140 : index
    %c0_199 = arith.constant 0 : index
    %167 = tpu.strided_load %arg26[%c140, %c0_199] {strides = array<i32: 2, 1>} : memref<200x128xf32, #tpu.memory_space<vmem>>, vector<4x128xf32>
    %c20_200 = arith.constant 20 : index
    %c768_201 = arith.constant 768 : index
    %168 = vector.load %arg27[%c20_200, %c768_201] : memref<32x1152xf32, #tpu.memory_space<vmem>>, vector<4x128xf32>
    tpu.vector_store %arg27[%c20_200, %c768_201], %167 {strides = array<i32>} : memref<32x1152xf32, #tpu.memory_space<vmem>>, vector<4x128xf32>,
    %c141_202 = arith.constant 141 : index
    %c0_203 = arith.constant 0 : index
    %169 = tpu.strided_load %arg26[%c141_202, %c0_203] {strides = array<i32: 2, 1>} : memref<200x128xf32, #tpu.memory_space<vmem>>, vector<4x128xf32>
    %c20_204 = arith.constant 20 : index
    %c896_205 = arith.constant 896 : index
    %170 = vector.load %arg27[%c20_204, %c896_205] : memref<32x1152xf32, #tpu.memory_space<vmem>>, vector<4x128xf32>
    tpu.vector_store %arg27[%c20_204, %c896_205], %169 {strides = array<i32>} : memref<32x1152xf32, #tpu.memory_space<vmem>>, vector<4x128xf32>,
    %c142 = arith.constant 142 : index
    %c0_206 = arith.constant 0 : index
    %171 = tpu.strided_load %arg26[%c142, %c0_206] {strides = array<i32: 2, 1>} : memref<200x128xf32, #tpu.memory_space<vmem>>, vector<4x128xf32>
    %c20_207 = arith.constant 20 : index
    %c1024_208 = arith.constant 1024 : index
    %172 = vector.load %arg27[%c20_207, %c1024_208] : memref<32x1152xf32, #tpu.memory_space<vmem>>, vector<4x128xf32>
    tpu.vector_store %arg27[%c20_207, %c1024_208], %171 {strides = array<i32>} : memref<32x1152xf32, #tpu.memory_space<vmem>>, vector<4x128xf32>,
    %c140_209 = arith.constant 140 : index
    %c0_210 = arith.constant 0 : index
    %173 = tpu.strided_load %arg26[%c140_209, %c0_210] {strides = array<i32: 2, 1>} : memref<200x128xf32, #tpu.memory_space<vmem>>, vector<4x128xf32>
    %c24 = arith.constant 24 : index
    %c0_211 = arith.constant 0 : index
    %174 = vector.load %arg27[%c24, %c0_211] : memref<32x1152xf32, #tpu.memory_space<vmem>>, vector<4x128xf32>
    tpu.vector_store %arg27[%c24, %c0_211], %173 {strides = array<i32>} : memref<32x1152xf32, #tpu.memory_space<vmem>>, vector<4x128xf32>,
    %c141_212 = arith.constant 141 : index
    %c0_213 = arith.constant 0 : index
    %175 = tpu.strided_load %arg26[%c141_212, %c0_213] {strides = array<i32: 2, 1>} : memref<200x128xf32, #tpu.memory_space<vmem>>, vector<4x128xf32>
    %c24_214 = arith.constant 24 : index
    %c128_215 = arith.constant 128 : index
    %176 = vector.load %arg27[%c24_214, %c128_215] : memref<32x1152xf32, #tpu.memory_space<vmem>>, vector<4x128xf32>
    tpu.vector_store %arg27[%c24_214, %c128_215], %175 {strides = array<i32>} : memref<32x1152xf32, #tpu.memory_space<vmem>>, vector<4x128xf32>,
    %c142_216 = arith.constant 142 : index
    %c0_217 = arith.constant 0 : index
    %177 = tpu.strided_load %arg26[%c142_216, %c0_217] {strides = array<i32: 2, 1>} : memref<200x128xf32, #tpu.memory_space<vmem>>, vector<4x128xf32>
    %c24_218 = arith.constant 24 : index
    %c256_219 = arith.constant 256 : index
    %178 = vector.load %arg27[%c24_218, %c256_219] : memref<32x1152xf32, #tpu.memory_space<vmem>>, vector<4x128xf32>
    tpu.vector_store %arg27[%c24_218, %c256_219], %177 {strides = array<i32>} : memref<32x1152xf32, #tpu.memory_space<vmem>>, vector<4x128xf32>,
    %c150 = arith.constant 150 : index
    %c0_220 = arith.constant 0 : index
    %179 = tpu.strided_load %arg26[%c150, %c0_220] {strides = array<i32: 2, 1>} : memref<200x128xf32, #tpu.memory_space<vmem>>, vector<4x128xf32>
    %c24_221 = arith.constant 24 : index
    %c384_222 = arith.constant 384 : index
    %180 = vector.load %arg27[%c24_221, %c384_222] : memref<32x1152xf32, #tpu.memory_space<vmem>>, vector<4x128xf32>
    tpu.vector_store %arg27[%c24_221, %c384_222], %179 {strides = array<i32>} : memref<32x1152xf32, #tpu.memory_space<vmem>>, vector<4x128xf32>,
    %c151_223 = arith.constant 151 : index
    %c0_224 = arith.constant 0 : index
    %181 = tpu.strided_load %arg26[%c151_223, %c0_224] {strides = array<i32: 2, 1>} : memref<200x128xf32, #tpu.memory_space<vmem>>, vector<4x128xf32>
    %c24_225 = arith.constant 24 : index
    %c512_226 = arith.constant 512 : index
    %182 = vector.load %arg27[%c24_225, %c512_226] : memref<32x1152xf32, #tpu.memory_space<vmem>>, vector<4x128xf32>
    tpu.vector_store %arg27[%c24_225, %c512_226], %181 {strides = array<i32>} : memref<32x1152xf32, #tpu.memory_space<vmem>>, vector<4x128xf32>,
    %c152 = arith.constant 152 : index
    %c0_227 = arith.constant 0 : index
    %183 = tpu.strided_load %arg26[%c152, %c0_227] {strides = array<i32: 2, 1>} : memref<200x128xf32, #tpu.memory_space<vmem>>, vector<4x128xf32>
    %c24_228 = arith.constant 24 : index
    %c640_229 = arith.constant 640 : index
    %184 = vector.load %arg27[%c24_228, %c640_229] : memref<32x1152xf32, #tpu.memory_space<vmem>>, vector<4x128xf32>
    tpu.vector_store %arg27[%c24_228, %c640_229], %183 {strides = array<i32>} : memref<32x1152xf32, #tpu.memory_space<vmem>>, vector<4x128xf32>,
    %c160 = arith.constant 160 : index
    %c0_230 = arith.constant 0 : index
    %185 = tpu.strided_load %arg26[%c160, %c0_230] {strides = array<i32: 2, 1>} : memref<200x128xf32, #tpu.memory_space<vmem>>, vector<4x128xf32>
    %c24_231 = arith.constant 24 : index
    %c768_232 = arith.constant 768 : index
    %186 = vector.load %arg27[%c24_231, %c768_232] : memref<32x1152xf32, #tpu.memory_space<vmem>>, vector<4x128xf32>
    tpu.vector_store %arg27[%c24_231, %c768_232], %185 {strides = array<i32>} : memref<32x1152xf32, #tpu.memory_space<vmem>>, vector<4x128xf32>,
    %c161_233 = arith.constant 161 : index
    %c0_234 = arith.constant 0 : index
    %187 = tpu.strided_load %arg26[%c161_233, %c0_234] {strides = array<i32: 2, 1>} : memref<200x128xf32, #tpu.memory_space<vmem>>, vector<4x128xf32>
    %c24_235 = arith.constant 24 : index
    %c896_236 = arith.constant 896 : index
    %188 = vector.load %arg27[%c24_235, %c896_236] : memref<32x1152xf32, #tpu.memory_space<vmem>>, vector<4x128xf32>
    tpu.vector_store %arg27[%c24_235, %c896_236], %187 {strides = array<i32>} : memref<32x1152xf32, #tpu.memory_space<vmem>>, vector<4x128xf32>,
    %c162 = arith.constant 162 : index
    %c0_237 = arith.constant 0 : index
    %189 = tpu.strided_load %arg26[%c162, %c0_237] {strides = array<i32: 2, 1>} : memref<200x128xf32, #tpu.memory_space<vmem>>, vector<4x128xf32>
    %c24_238 = arith.constant 24 : index
    %c1024_239 = arith.constant 1024 : index
    %190 = vector.load %arg27[%c24_238, %c1024_239] : memref<32x1152xf32, #tpu.memory_space<vmem>>, vector<4x128xf32>
    tpu.vector_store %arg27[%c24_238, %c1024_239], %189 {strides = array<i32>} : memref<32x1152xf32, #tpu.memory_space<vmem>>, vector<4x128xf32>,
    %c160_240 = arith.constant 160 : index
    %c0_241 = arith.constant 0 : index
    %191 = tpu.strided_load %arg26[%c160_240, %c0_241] {strides = array<i32: 2, 1>} : memref<200x128xf32, #tpu.memory_space<vmem>>, vector<4x128xf32>
    %c28 = arith.constant 28 : index
    %c0_242 = arith.constant 0 : index
    %192 = vector.load %arg27[%c28, %c0_242] : memref<32x1152xf32, #tpu.memory_space<vmem>>, vector<4x128xf32>
    tpu.vector_store %arg27[%c28, %c0_242], %191 {strides = array<i32>} : memref<32x1152xf32, #tpu.memory_space<vmem>>, vector<4x128xf32>,
    %c161_243 = arith.constant 161 : index
    %c0_244 = arith.constant 0 : index
    %193 = tpu.strided_load %arg26[%c161_243, %c0_244] {strides = array<i32: 2, 1>} : memref<200x128xf32, #tpu.memory_space<vmem>>, vector<4x128xf32>
    %c28_245 = arith.constant 28 : index
    %c128_246 = arith.constant 128 : index
    %194 = vector.load %arg27[%c28_245, %c128_246] : memref<32x1152xf32, #tpu.memory_space<vmem>>, vector<4x128xf32>
    tpu.vector_store %arg27[%c28_245, %c128_246], %193 {strides = array<i32>} : memref<32x1152xf32, #tpu.memory_space<vmem>>, vector<4x128xf32>,
    %c162_247 = arith.constant 162 : index
    %c0_248 = arith.constant 0 : index
    %195 = tpu.strided_load %arg26[%c162_247, %c0_248] {strides = array<i32: 2, 1>} : memref<200x128xf32, #tpu.memory_space<vmem>>, vector<4x128xf32>
    %c28_249 = arith.constant 28 : index
    %c256_250 = arith.constant 256 : index
    %196 = vector.load %arg27[%c28_249, %c256_250] : memref<32x1152xf32, #tpu.memory_space<vmem>>, vector<4x128xf32>
    tpu.vector_store %arg27[%c28_249, %c256_250], %195 {strides = array<i32>} : memref<32x1152xf32, #tpu.memory_space<vmem>>, vector<4x128xf32>,
    %c170 = arith.constant 170 : index
    %c0_251 = arith.constant 0 : index
    %197 = tpu.strided_load %arg26[%c170, %c0_251] {strides = array<i32: 2, 1>} : memref<200x128xf32, #tpu.memory_space<vmem>>, vector<4x128xf32>
    %c28_252 = arith.constant 28 : index
    %c384_253 = arith.constant 384 : index
    %198 = vector.load %arg27[%c28_252, %c384_253] : memref<32x1152xf32, #tpu.memory_space<vmem>>, vector<4x128xf32>
    tpu.vector_store %arg27[%c28_252, %c384_253], %197 {strides = array<i32>} : memref<32x1152xf32, #tpu.memory_space<vmem>>, vector<4x128xf32>,
    %c171_254 = arith.constant 171 : index
    %c0_255 = arith.constant 0 : index
    %199 = tpu.strided_load %arg26[%c171_254, %c0_255] {strides = array<i32: 2, 1>} : memref<200x128xf32, #tpu.memory_space<vmem>>, vector<4x128xf32>
    %c28_256 = arith.constant 28 : index
    %c512_257 = arith.constant 512 : index
    %200 = vector.load %arg27[%c28_256, %c512_257] : memref<32x1152xf32, #tpu.memory_space<vmem>>, vector<4x128xf32>
    tpu.vector_store %arg27[%c28_256, %c512_257], %199 {strides = array<i32>} : memref<32x1152xf32, #tpu.memory_space<vmem>>, vector<4x128xf32>,
    %c172 = arith.constant 172 : index
    %c0_258 = arith.constant 0 : index
    %201 = tpu.strided_load %arg26[%c172, %c0_258] {strides = array<i32: 2, 1>} : memref<200x128xf32, #tpu.memory_space<vmem>>, vector<4x128xf32>
    %c28_259 = arith.constant 28 : index
    %c640_260 = arith.constant 640 : index
    %202 = vector.load %arg27[%c28_259, %c640_260] : memref<32x1152xf32, #tpu.memory_space<vmem>>, vector<4x128xf32>
    tpu.vector_store %arg27[%c28_259, %c640_260], %201 {strides = array<i32>} : memref<32x1152xf32, #tpu.memory_space<vmem>>, vector<4x128xf32>,
    %c180 = arith.constant 180 : index
    %c0_261 = arith.constant 0 : index
    %203 = tpu.strided_load %arg26[%c180, %c0_261] {strides = array<i32: 2, 1>} : memref<200x128xf32, #tpu.memory_space<vmem>>, vector<4x128xf32>
    %c28_262 = arith.constant 28 : index
    %c768_263 = arith.constant 768 : index
    %204 = vector.load %arg27[%c28_262, %c768_263] : memref<32x1152xf32, #tpu.memory_space<vmem>>, vector<4x128xf32>
    tpu.vector_store %arg27[%c28_262, %c768_263], %203 {strides = array<i32>} : memref<32x1152xf32, #tpu.memory_space<vmem>>, vector<4x128xf32>,
    %c181_264 = arith.constant 181 : index
    %c0_265 = arith.constant 0 : index
    %205 = tpu.strided_load %arg26[%c181_264, %c0_265] {strides = array<i32: 2, 1>} : memref<200x128xf32, #tpu.memory_space<vmem>>, vector<4x128xf32>
    %c28_266 = arith.constant 28 : index
    %c896_267 = arith.constant 896 : index
    %206 = vector.load %arg27[%c28_266, %c896_267] : memref<32x1152xf32, #tpu.memory_space<vmem>>, vector<4x128xf32>
    tpu.vector_store %arg27[%c28_266, %c896_267], %205 {strides = array<i32>} : memref<32x1152xf32, #tpu.memory_space<vmem>>, vector<4x128xf32>,
    %c182 = arith.constant 182 : index
    %c0_268 = arith.constant 0 : index
    %207 = tpu.strided_load %arg26[%c182, %c0_268] {strides = array<i32: 2, 1>} : memref<200x128xf32, #tpu.memory_space<vmem>>, vector<4x128xf32>
    %c28_269 = arith.constant 28 : index
    %c1024_270 = arith.constant 1024 : index
    %208 = vector.load %arg27[%c28_269, %c1024_270] : memref<32x1152xf32, #tpu.memory_space<vmem>>, vector<4x128xf32>
    tpu.vector_store %arg27[%c28_269, %c1024_270], %207 {strides = array<i32>} : memref<32x1152xf32, #tpu.memory_space<vmem>>, vector<4x128xf32>,
    %c0_271 = arith.constant 0 : index
    %c0_272 = arith.constant 0 : index
    %209 = vector.load %arg27[%c0_271, %c0_272] : memref<32x1152xf32, #tpu.memory_space<vmem>>, vector<32x1152xf32>
    %210 = arith.truncf %209 : vector<32x1152xf32> to vector<32x1152xbf16>
    %c0_273 = arith.constant 0 : index
    %c0_274 = arith.constant 0 : index
    %211 = vector.load %arg4[%c0_273, %c0_274] : memref<1152x128xbf16, #tpu.memory_space<vmem>>, vector<1152x128xbf16>
    %cst_275 = arith.constant dense<0.000000e+00> : vector<32x128xf32>
    %212 = tpu.matmul %210, %211, %cst_275 {dimension_numbers = #tpu.dot_dimension_numbers<[1], [0], [0], [1], [0, 0, 1, 1], [], []>} : vector<32x1152xbf16>, vector<1152x128xbf16>, vector<32x128xf32> -> vector<32x128xf32>
    %c0_276 = arith.constant 0 : index
    %c0_277 = arith.constant 0 : index
    %213 = vector.load %arg5[%c0_276, %c0_277] : memref<1x128xf32, #tpu.memory_space<vmem>>, vector<1x128xf32>
    %c0_278 = arith.constant 0 : index
    %c0_279 = arith.constant 0 : index
    %214 = vector.load %arg6[%c0_278, %c0_279] : memref<1x128xf32, #tpu.memory_space<vmem>>, vector<1x128xf32>
    %cst_280 = arith.constant dense<0.000000e+00> : vector<128xf32>
    %215 = vector.multi_reduction <add>, %212, %cst_280 [0] : vector<32x128xf32> to vector<128xf32>
    %216 = vector.shape_cast %215 : vector<128xf32> to vector<1x128xf32>
    %cst_281 = arith.constant 3.125000e-02 : f32
    %217 = vector.broadcast %cst_281 : f32 to vector<1x128xf32>
    %218 = arith.mulf %216, %217 : vector<1x128xf32>
    %219 = arith.mulf %212, %212 : vector<32x128xf32>
    %cst_282 = arith.constant dense<0.000000e+00> : vector<128xf32>
    %220 = vector.multi_reduction <add>, %219, %cst_282 [0] : vector<32x128xf32> to vector<128xf32>
    %221 = vector.shape_cast %220 : vector<128xf32> to vector<1x128xf32>
    %cst_283 = arith.constant 3.125000e-02 : f32
    %222 = vector.broadcast %cst_283 : f32 to vector<1x128xf32>
    %223 = arith.mulf %221, %222 : vector<1x128xf32>
    %224 = arith.mulf %218, %218 : vector<1x128xf32>
    %225 = arith.subf %223, %224 : vector<1x128xf32>
    %cst_284 = arith.constant 0.000000e+00 : f32
    %226 = vector.broadcast %cst_284 : f32 to vector<1x128xf32>
    %227 = arith.maximumf %225, %226 : vector<1x128xf32>
    %cst_285 = arith.constant 9.99999974E-6 : f32
    %228 = vector.broadcast %cst_285 : f32 to vector<1x128xf32>
    %229 = arith.addf %227, %228 : vector<1x128xf32>
    %230 = math.rsqrt %229 : vector<1x128xf32>
    %231 = arith.mulf %213, %230 : vector<1x128xf32>
    %232 = arith.mulf %218, %231 : vector<1x128xf32>
    %233 = arith.subf %214, %232 : vector<1x128xf32>
    %234 = vector.broadcast %231 : vector<1x128xf32> to vector<32x128xf32>
    %235 = arith.mulf %212, %234 : vector<32x128xf32>
    %236 = vector.broadcast %233 : vector<1x128xf32> to vector<32x128xf32>
    %237 = arith.addf %235, %236 : vector<32x128xf32>
    %cst_286 = arith.constant 0.000000e+00 : f32
    %238 = vector.broadcast %cst_286 : f32 to vector<32x128xf32>
    %239 = arith.maximumf %237, %238 : vector<32x128xf32>
    %240 = arith.truncf %239 : vector<32x128xf32> to vector<32x128xbf16>
    %c0_287 = arith.constant 0 : index
    %c0_288 = arith.constant 0 : index
    %241 = tpu.strided_load %arg0[%c0_287, %c0_288] {strides = array<i32: 2, 1>} : memref<128x128xf32, #tpu.memory_space<vmem>>, vector<4x128xf32>
    %c0_289 = arith.constant 0 : index
    %c0_290 = arith.constant 0 : index
    %242 = vector.load %arg28[%c0_289, %c0_290] : memref<32x128xf32, #tpu.memory_space<vmem>>, vector<4x128xf32>
    tpu.vector_store %arg28[%c0_289, %c0_290], %241 {strides = array<i32>} : memref<32x128xf32, #tpu.memory_space<vmem>>, vector<4x128xf32>,
    %c16_291 = arith.constant 16 : index
    %c0_292 = arith.constant 0 : index
    %243 = tpu.strided_load %arg0[%c16_291, %c0_292] {strides = array<i32: 2, 1>} : memref<128x128xf32, #tpu.memory_space<vmem>>, vector<4x128xf32>
    %c4_293 = arith.constant 4 : index
    %c0_294 = arith.constant 0 : index
    %244 = vector.load %arg28[%c4_293, %c0_294] : memref<32x128xf32, #tpu.memory_space<vmem>>, vector<4x128xf32>
    tpu.vector_store %arg28[%c4_293, %c0_294], %243 {strides = array<i32>} : memref<32x128xf32, #tpu.memory_space<vmem>>, vector<4x128xf32>,
    %c32_295 = arith.constant 32 : index
    %c0_296 = arith.constant 0 : index
    %245 = tpu.strided_load %arg0[%c32_295, %c0_296] {strides = array<i32: 2, 1>} : memref<128x128xf32, #tpu.memory_space<vmem>>, vector<4x128xf32>
    %c8_297 = arith.constant 8 : index
    %c0_298 = arith.constant 0 : index
    %246 = vector.load %arg28[%c8_297, %c0_298] : memref<32x128xf32, #tpu.memory_space<vmem>>, vector<4x128xf32>
    tpu.vector_store %arg28[%c8_297, %c0_298], %245 {strides = array<i32>} : memref<32x128xf32, #tpu.memory_space<vmem>>, vector<4x128xf32>,
    %c48 = arith.constant 48 : index
    %c0_299 = arith.constant 0 : index
    %247 = tpu.strided_load %arg0[%c48, %c0_299] {strides = array<i32: 2, 1>} : memref<128x128xf32, #tpu.memory_space<vmem>>, vector<4x128xf32>
    %c12_300 = arith.constant 12 : index
    %c0_301 = arith.constant 0 : index
    %248 = vector.load %arg28[%c12_300, %c0_301] : memref<32x128xf32, #tpu.memory_space<vmem>>, vector<4x128xf32>
    tpu.vector_store %arg28[%c12_300, %c0_301], %247 {strides = array<i32>} : memref<32x128xf32, #tpu.memory_space<vmem>>, vector<4x128xf32>,
    %c64 = arith.constant 64 : index
    %c0_302 = arith.constant 0 : index
    %249 = tpu.strided_load %arg0[%c64, %c0_302] {strides = array<i32: 2, 1>} : memref<128x128xf32, #tpu.memory_space<vmem>>, vector<4x128xf32>
    %c16_303 = arith.constant 16 : index
    %c0_304 = arith.constant 0 : index
    %250 = vector.load %arg28[%c16_303, %c0_304] : memref<32x128xf32, #tpu.memory_space<vmem>>, vector<4x128xf32>
    tpu.vector_store %arg28[%c16_303, %c0_304], %249 {strides = array<i32>} : memref<32x128xf32, #tpu.memory_space<vmem>>, vector<4x128xf32>,
    %c80_305 = arith.constant 80 : index
    %c0_306 = arith.constant 0 : index
    %251 = tpu.strided_load %arg0[%c80_305, %c0_306] {strides = array<i32: 2, 1>} : memref<128x128xf32, #tpu.memory_space<vmem>>, vector<4x128xf32>
    %c20_307 = arith.constant 20 : index
    %c0_308 = arith.constant 0 : index
    %252 = vector.load %arg28[%c20_307, %c0_308] : memref<32x128xf32, #tpu.memory_space<vmem>>, vector<4x128xf32>
    tpu.vector_store %arg28[%c20_307, %c0_308], %251 {strides = array<i32>} : memref<32x128xf32, #tpu.memory_space<vmem>>, vector<4x128xf32>,
    %c96 = arith.constant 96 : index
    %c0_309 = arith.constant 0 : index
    %253 = tpu.strided_load %arg0[%c96, %c0_309] {strides = array<i32: 2, 1>} : memref<128x128xf32, #tpu.memory_space<vmem>>, vector<4x128xf32>
    %c24_310 = arith.constant 24 : index
    %c0_311 = arith.constant 0 : index
    %254 = vector.load %arg28[%c24_310, %c0_311] : memref<32x128xf32, #tpu.memory_space<vmem>>, vector<4x128xf32>
    tpu.vector_store %arg28[%c24_310, %c0_311], %253 {strides = array<i32>} : memref<32x128xf32, #tpu.memory_space<vmem>>, vector<4x128xf32>,
    %c112_312 = arith.constant 112 : index
    %c0_313 = arith.constant 0 : index
    %255 = tpu.strided_load %arg0[%c112_312, %c0_313] {strides = array<i32: 2, 1>} : memref<128x128xf32, #tpu.memory_space<vmem>>, vector<4x128xf32>
    %c28_314 = arith.constant 28 : index
    %c0_315 = arith.constant 0 : index
    %256 = vector.load %arg28[%c28_314, %c0_315] : memref<32x128xf32, #tpu.memory_space<vmem>>, vector<4x128xf32>
    tpu.vector_store %arg28[%c28_314, %c0_315], %255 {strides = array<i32>} : memref<32x128xf32, #tpu.memory_space<vmem>>, vector<4x128xf32>,
    %c0_316 = arith.constant 0 : index
    %c0_317 = arith.constant 0 : index
    %257 = vector.load %arg28[%c0_316, %c0_317] : memref<32x128xf32, #tpu.memory_space<vmem>>, vector<32x128xf32>
    %258 = arith.truncf %257 : vector<32x128xf32> to vector<32x128xbf16>
    %c0_318 = arith.constant 0 : index
    %c0_319 = arith.constant 0 : index
    %259 = vector.load %arg10[%c0_318, %c0_319] : memref<128x128xbf16, #tpu.memory_space<vmem>>, vector<128x128xbf16>
    %cst_320 = arith.constant dense<0.000000e+00> : vector<32x128xf32>
    %260 = tpu.matmul %258, %259, %cst_320 {dimension_numbers = #tpu.dot_dimension_numbers<[1], [0], [0], [1], [0, 0, 1, 1], [], []>} : vector<32x128xbf16>, vector<128x128xbf16>, vector<32x128xf32> -> vector<32x128xf32>
    %c0_321 = arith.constant 0 : index
    %c0_322 = arith.constant 0 : index
    %261 = vector.load %arg11[%c0_321, %c0_322] : memref<1x128xf32, #tpu.memory_space<vmem>>, vector<1x128xf32>
    %c0_323 = arith.constant 0 : index
    %c0_324 = arith.constant 0 : index
    %262 = vector.load %arg12[%c0_323, %c0_324] : memref<1x128xf32, #tpu.memory_space<vmem>>, vector<1x128xf32>
    %cst_325 = arith.constant dense<0.000000e+00> : vector<128xf32>
    %263 = vector.multi_reduction <add>, %260, %cst_325 [0] : vector<32x128xf32> to vector<128xf32>
    %264 = vector.shape_cast %263 : vector<128xf32> to vector<1x128xf32>
    %cst_326 = arith.constant 3.125000e-02 : f32
    %265 = vector.broadcast %cst_326 : f32 to vector<1x128xf32>
    %266 = arith.mulf %264, %265 : vector<1x128xf32>
    %267 = arith.mulf %260, %260 : vector<32x128xf32>
    %cst_327 = arith.constant dense<0.000000e+00> : vector<128xf32>
    %268 = vector.multi_reduction <add>, %267, %cst_327 [0] : vector<32x128xf32> to vector<128xf32>
    %269 = vector.shape_cast %268 : vector<128xf32> to vector<1x128xf32>
    %cst_328 = arith.constant 3.125000e-02 : f32
    %270 = vector.broadcast %cst_328 : f32 to vector<1x128xf32>
    %271 = arith.mulf %269, %270 : vector<1x128xf32>
    %272 = arith.mulf %266, %266 : vector<1x128xf32>
    %273 = arith.subf %271, %272 : vector<1x128xf32>
    %cst_329 = arith.constant 0.000000e+00 : f32
    %274 = vector.broadcast %cst_329 : f32 to vector<1x128xf32>
    %275 = arith.maximumf %273, %274 : vector<1x128xf32>
    %cst_330 = arith.constant 9.99999974E-6 : f32
    %276 = vector.broadcast %cst_330 : f32 to vector<1x128xf32>
    %277 = arith.addf %275, %276 : vector<1x128xf32>
    %278 = math.rsqrt %277 : vector<1x128xf32>
    %279 = arith.mulf %261, %278 : vector<1x128xf32>
    %280 = arith.mulf %266, %279 : vector<1x128xf32>
    %281 = arith.subf %262, %280 : vector<1x128xf32>
    %282 = vector.broadcast %279 : vector<1x128xf32> to vector<32x128xf32>
    %283 = arith.mulf %260, %282 : vector<32x128xf32>
    %284 = vector.broadcast %281 : vector<1x128xf32> to vector<32x128xf32>
    %285 = arith.addf %283, %284 : vector<32x128xf32>
    %c0_331 = arith.constant 0 : index
    %c0_332 = arith.constant 0 : index
    %286 = vector.load %arg7[%c0_331, %c0_332] : memref<128x128xbf16, #tpu.memory_space<vmem>>, vector<128x128xbf16>
    %cst_333 = arith.constant dense<0.000000e+00> : vector<32x128xf32>
    %287 = tpu.matmul %240, %286, %cst_333 {dimension_numbers = #tpu.dot_dimension_numbers<[1], [0], [0], [1], [0, 0, 1, 1], [], []>} : vector<32x128xbf16>, vector<128x128xbf16>, vector<32x128xf32> -> vector<32x128xf32>
    %c0_334 = arith.constant 0 : index
    %c0_335 = arith.constant 0 : index
    %288 = vector.load %arg8[%c0_334, %c0_335] : memref<1x128xf32, #tpu.memory_space<vmem>>, vector<1x128xf32>
    %c0_336 = arith.constant 0 : index
    %c0_337 = arith.constant 0 : index
    %289 = vector.load %arg9[%c0_336, %c0_337] : memref<1x128xf32, #tpu.memory_space<vmem>>, vector<1x128xf32>
    %cst_338 = arith.constant dense<0.000000e+00> : vector<128xf32>
    %290 = vector.multi_reduction <add>, %287, %cst_338 [0] : vector<32x128xf32> to vector<128xf32>
    %291 = vector.shape_cast %290 : vector<128xf32> to vector<1x128xf32>
    %cst_339 = arith.constant 3.125000e-02 : f32
    %292 = vector.broadcast %cst_339 : f32 to vector<1x128xf32>
    %293 = arith.mulf %291, %292 : vector<1x128xf32>
    %294 = arith.mulf %287, %287 : vector<32x128xf32>
    %cst_340 = arith.constant dense<0.000000e+00> : vector<128xf32>
    %295 = vector.multi_reduction <add>, %294, %cst_340 [0] : vector<32x128xf32> to vector<128xf32>
    %296 = vector.shape_cast %295 : vector<128xf32> to vector<1x128xf32>
    %cst_341 = arith.constant 3.125000e-02 : f32
    %297 = vector.broadcast %cst_341 : f32 to vector<1x128xf32>
    %298 = arith.mulf %296, %297 : vector<1x128xf32>
    %299 = arith.mulf %293, %293 : vector<1x128xf32>
    %300 = arith.subf %298, %299 : vector<1x128xf32>
    %cst_342 = arith.constant 0.000000e+00 : f32
    %301 = vector.broadcast %cst_342 : f32 to vector<1x128xf32>
    %302 = arith.maximumf %300, %301 : vector<1x128xf32>
    %cst_343 = arith.constant 9.99999974E-6 : f32
    %303 = vector.broadcast %cst_343 : f32 to vector<1x128xf32>
    %304 = arith.addf %302, %303 : vector<1x128xf32>
    %305 = math.rsqrt %304 : vector<1x128xf32>
    %306 = arith.mulf %288, %305 : vector<1x128xf32>
    %307 = arith.mulf %293, %306 : vector<1x128xf32>
    %308 = arith.subf %289, %307 : vector<1x128xf32>
    %309 = vector.broadcast %306 : vector<1x128xf32> to vector<32x128xf32>
    %310 = arith.mulf %287, %309 : vector<32x128xf32>
    %311 = vector.broadcast %308 : vector<1x128xf32> to vector<32x128xf32>
    %312 = arith.addf %310, %311 : vector<32x128xf32>
    %313 = arith.addf %312, %285 : vector<32x128xf32>
    %cst_344 = arith.constant 0.000000e+00 : f32
    %314 = vector.broadcast %cst_344 : f32 to vector<32x128xf32>
    %315 = arith.maximumf %313, %314 : vector<32x128xf32>
    %c0_345 = arith.constant 0 : index
    %c0_346 = arith.constant 0 : index
    %316 = vector.load %arg29[%c0_345, %c0_346] : memref<32x128xf32, #tpu.memory_space<vmem>>, vector<32x128xf32>
    tpu.vector_store %arg29[%c0_345, %c0_346], %315 {strides = array<i32>} : memref<32x128xf32, #tpu.memory_space<vmem>>, vector<32x128xf32>,
    %c0_347 = arith.constant 0 : index
    %c0_348 = arith.constant 0 : index
    %317 = vector.load %arg29[%c0_347, %c0_348] : memref<32x128xf32, #tpu.memory_space<vmem>>, vector<32x128xf32>
    %318 = arith.truncf %317 : vector<32x128xf32> to vector<32x128xbf16>
    %c0_349 = arith.constant 0 : index
    %c0_350 = arith.constant 0 : index
    %319 = vector.load %arg13[%c0_349, %c0_350] : memref<128x128xbf16, #tpu.memory_space<vmem>>, vector<128x128xbf16>
    %cst_351 = arith.constant dense<0.000000e+00> : vector<32x128xf32>
    %320 = tpu.matmul %318, %319, %cst_351 {dimension_numbers = #tpu.dot_dimension_numbers<[1], [0], [0], [1], [0, 0, 1, 1], [], []>} : vector<32x128xbf16>, vector<128x128xbf16>, vector<32x128xf32> -> vector<32x128xf32>
    %c0_352 = arith.constant 0 : index
    %c0_353 = arith.constant 0 : index
    %321 = vector.load %arg14[%c0_352, %c0_353] : memref<1x128xf32, #tpu.memory_space<vmem>>, vector<1x128xf32>
    %c0_354 = arith.constant 0 : index
    %c0_355 = arith.constant 0 : index
    %322 = vector.load %arg15[%c0_354, %c0_355] : memref<1x128xf32, #tpu.memory_space<vmem>>, vector<1x128xf32>
    %cst_356 = arith.constant dense<0.000000e+00> : vector<128xf32>
    %323 = vector.multi_reduction <add>, %320, %cst_356 [0] : vector<32x128xf32> to vector<128xf32>
    %324 = vector.shape_cast %323 : vector<128xf32> to vector<1x128xf32>
    %cst_357 = arith.constant 3.125000e-02 : f32
    %325 = vector.broadcast %cst_357 : f32 to vector<1x128xf32>
    %326 = arith.mulf %324, %325 : vector<1x128xf32>
    %327 = arith.mulf %320, %320 : vector<32x128xf32>
    %cst_358 = arith.constant dense<0.000000e+00> : vector<128xf32>
    %328 = vector.multi_reduction <add>, %327, %cst_358 [0] : vector<32x128xf32> to vector<128xf32>
    %329 = vector.shape_cast %328 : vector<128xf32> to vector<1x128xf32>
    %cst_359 = arith.constant 3.125000e-02 : f32
    %330 = vector.broadcast %cst_359 : f32 to vector<1x128xf32>
    %331 = arith.mulf %329, %330 : vector<1x128xf32>
    %332 = arith.mulf %326, %326 : vector<1x128xf32>
    %333 = arith.subf %331, %332 : vector<1x128xf32>
    %cst_360 = arith.constant 0.000000e+00 : f32
    %334 = vector.broadcast %cst_360 : f32 to vector<1x128xf32>
    %335 = arith.maximumf %333, %334 : vector<1x128xf32>
    %cst_361 = arith.constant 9.99999974E-6 : f32
    %336 = vector.broadcast %cst_361 : f32 to vector<1x128xf32>
    %337 = arith.addf %335, %336 : vector<1x128xf32>
    %338 = math.rsqrt %337 : vector<1x128xf32>
    %339 = arith.mulf %321, %338 : vector<1x128xf32>
    %340 = arith.mulf %326, %339 : vector<1x128xf32>
    %341 = arith.subf %322, %340 : vector<1x128xf32>
    %342 = vector.broadcast %339 : vector<1x128xf32> to vector<32x128xf32>
    %343 = arith.mulf %320, %342 : vector<32x128xf32>
    %344 = vector.broadcast %341 : vector<1x128xf32> to vector<32x128xf32>
    %345 = arith.addf %343, %344 : vector<32x128xf32>
    %cst_362 = arith.constant 0.000000e+00 : f32
    %346 = vector.broadcast %cst_362 : f32 to vector<32x128xf32>
    %347 = arith.maximumf %345, %346 : vector<32x128xf32>
    %cst_363 = arith.constant 0.000000e+00 : f32
    %348 = vector.broadcast %cst_363 : f32 to vector<72x128xf32>
    %c0_364 = arith.constant 0 : index
    %c0_365 = arith.constant 0 : index
    %349 = vector.load %arg26[%c0_364, %c0_365] : memref<200x128xf32, #tpu.memory_space<vmem>>, vector<72x128xf32>
    tpu.vector_store %arg26[%c0_364, %c0_365], %348 {strides = array<i32>} : memref<200x128xf32, #tpu.memory_space<vmem>>, vector<72x128xf32>,
    %350 = vector.extract_strided_slice %347 {offsets = [0, 0], sizes = [4, 128], strides = [1, 1]} : vector<32x128xf32> to vector<4x128xf32>
    %c7 = arith.constant 7 : index
    %c0_366 = arith.constant 0 : index
    %351 = vector.load %arg26[%c7, %c0_366] : memref<200x128xf32, #tpu.memory_space<vmem>>, vector<4x128xf32>
    tpu.vector_store %arg26[%c7, %c0_366], %350 {strides = array<i32>} : memref<200x128xf32, #tpu.memory_space<vmem>>, vector<4x128xf32>,
    %352 = vector.extract_strided_slice %347 {offsets = [4, 0], sizes = [4, 128], strides = [1, 1]} : vector<32x128xf32> to vector<4x128xf32>
    %c13 = arith.constant 13 : index
    %c0_367 = arith.constant 0 : index
    %353 = vector.load %arg26[%c13, %c0_367] : memref<200x128xf32, #tpu.memory_space<vmem>>, vector<4x128xf32>
    tpu.vector_store %arg26[%c13, %c0_367], %352 {strides = array<i32>} : memref<200x128xf32, #tpu.memory_space<vmem>>, vector<4x128xf32>,
    %354 = vector.extract_strided_slice %347 {offsets = [8, 0], sizes = [4, 128], strides = [1, 1]} : vector<32x128xf32> to vector<4x128xf32>
    %c19 = arith.constant 19 : index
    %c0_368 = arith.constant 0 : index
    %355 = vector.load %arg26[%c19, %c0_368] : memref<200x128xf32, #tpu.memory_space<vmem>>, vector<4x128xf32>
    tpu.vector_store %arg26[%c19, %c0_368], %354 {strides = array<i32>} : memref<200x128xf32, #tpu.memory_space<vmem>>, vector<4x128xf32>,
    %356 = vector.extract_strided_slice %347 {offsets = [12, 0], sizes = [4, 128], strides = [1, 1]} : vector<32x128xf32> to vector<4x128xf32>
    %c25 = arith.constant 25 : index
    %c0_369 = arith.constant 0 : index
    %357 = vector.load %arg26[%c25, %c0_369] : memref<200x128xf32, #tpu.memory_space<vmem>>, vector<4x128xf32>
    tpu.vector_store %arg26[%c25, %c0_369], %356 {strides = array<i32>} : memref<200x128xf32, #tpu.memory_space<vmem>>, vector<4x128xf32>,
    %358 = vector.extract_strided_slice %347 {offsets = [16, 0], sizes = [4, 128], strides = [1, 1]} : vector<32x128xf32> to vector<4x128xf32>
    %c43 = arith.constant 43 : index
    %c0_370 = arith.constant 0 : index
    %359 = vector.load %arg26[%c43, %c0_370] : memref<200x128xf32, #tpu.memory_space<vmem>>, vector<4x128xf32>
    tpu.vector_store %arg26[%c43, %c0_370], %358 {strides = array<i32>} : memref<200x128xf32, #tpu.memory_space<vmem>>, vector<4x128xf32>,
    %360 = vector.extract_strided_slice %347 {offsets = [20, 0], sizes = [4, 128], strides = [1, 1]} : vector<32x128xf32> to vector<4x128xf32>
    %c49 = arith.constant 49 : index
    %c0_371 = arith.constant 0 : index
    %361 = vector.load %arg26[%c49, %c0_371] : memref<200x128xf32, #tpu.memory_space<vmem>>, vector<4x128xf32>
    tpu.vector_store %arg26[%c49, %c0_371], %360 {strides = array<i32>} : memref<200x128xf32, #tpu.memory_space<vmem>>, vector<4x128xf32>,
    %362 = vector.extract_strided_slice %347 {offsets = [24, 0], sizes = [4, 128], strides = [1, 1]} : vector<32x128xf32> to vector<4x128xf32>
    %c55 = arith.constant 55 : index
    %c0_372 = arith.constant 0 : index
    %363 = vector.load %arg26[%c55, %c0_372] : memref<200x128xf32, #tpu.memory_space<vmem>>, vector<4x128xf32>
    tpu.vector_store %arg26[%c55, %c0_372], %362 {strides = array<i32>} : memref<200x128xf32, #tpu.memory_space<vmem>>, vector<4x128xf32>,
    %364 = vector.extract_strided_slice %347 {offsets = [28, 0], sizes = [4, 128], strides = [1, 1]} : vector<32x128xf32> to vector<4x128xf32>
    %c61_373 = arith.constant 61 : index
    %c0_374 = arith.constant 0 : index
    %365 = vector.load %arg26[%c61_373, %c0_374] : memref<200x128xf32, #tpu.memory_space<vmem>>, vector<4x128xf32>
    tpu.vector_store %arg26[%c61_373, %c0_374], %364 {strides = array<i32>} : memref<200x128xf32, #tpu.memory_space<vmem>>, vector<4x128xf32>,
    %c0_375 = arith.constant 0 : index
    %c0_376 = arith.constant 0 : index
    %366 = vector.load %arg26[%c0_375, %c0_376] : memref<200x128xf32, #tpu.memory_space<vmem>>, vector<4x128xf32>
    %c0_377 = arith.constant 0 : index
    %c0_378 = arith.constant 0 : index
    %367 = vector.load %arg27[%c0_377, %c0_378] : memref<32x1152xf32, #tpu.memory_space<vmem>>, vector<4x128xf32>
    tpu.vector_store %arg27[%c0_377, %c0_378], %366 {strides = array<i32>} : memref<32x1152xf32, #tpu.memory_space<vmem>>, vector<4x128xf32>,
    %c1_379 = arith.constant 1 : index
    %c0_380 = arith.constant 0 : index
    %368 = vector.load %arg26[%c1_379, %c0_380] : memref<200x128xf32, #tpu.memory_space<vmem>>, vector<4x128xf32>
    %c0_381 = arith.constant 0 : index
    %c128_382 = arith.constant 128 : index
    %369 = vector.load %arg27[%c0_381, %c128_382] : memref<32x1152xf32, #tpu.memory_space<vmem>>, vector<4x128xf32>
    tpu.vector_store %arg27[%c0_381, %c128_382], %368 {strides = array<i32>} : memref<32x1152xf32, #tpu.memory_space<vmem>>, vector<4x128xf32>,
    %c2_383 = arith.constant 2 : index
    %c0_384 = arith.constant 0 : index
    %370 = vector.load %arg26[%c2_383, %c0_384] : memref<200x128xf32, #tpu.memory_space<vmem>>, vector<4x128xf32>
    %c0_385 = arith.constant 0 : index
    %c256_386 = arith.constant 256 : index
    %371 = vector.load %arg27[%c0_385, %c256_386] : memref<32x1152xf32, #tpu.memory_space<vmem>>, vector<4x128xf32>
    tpu.vector_store %arg27[%c0_385, %c256_386], %370 {strides = array<i32>} : memref<32x1152xf32, #tpu.memory_space<vmem>>, vector<4x128xf32>,
    %c6 = arith.constant 6 : index
    %c0_387 = arith.constant 0 : index
    %372 = vector.load %arg26[%c6, %c0_387] : memref<200x128xf32, #tpu.memory_space<vmem>>, vector<4x128xf32>
    %c0_388 = arith.constant 0 : index
    %c384_389 = arith.constant 384 : index
    %373 = vector.load %arg27[%c0_388, %c384_389] : memref<32x1152xf32, #tpu.memory_space<vmem>>, vector<4x128xf32>
    tpu.vector_store %arg27[%c0_388, %c384_389], %372 {strides = array<i32>} : memref<32x1152xf32, #tpu.memory_space<vmem>>, vector<4x128xf32>,
    %c7_390 = arith.constant 7 : index
    %c0_391 = arith.constant 0 : index
    %374 = vector.load %arg26[%c7_390, %c0_391] : memref<200x128xf32, #tpu.memory_space<vmem>>, vector<4x128xf32>
    %c0_392 = arith.constant 0 : index
    %c512_393 = arith.constant 512 : index
    %375 = vector.load %arg27[%c0_392, %c512_393] : memref<32x1152xf32, #tpu.memory_space<vmem>>, vector<4x128xf32>
    tpu.vector_store %arg27[%c0_392, %c512_393], %374 {strides = array<i32>} : memref<32x1152xf32, #tpu.memory_space<vmem>>, vector<4x128xf32>,
    %c8_394 = arith.constant 8 : index
    %c0_395 = arith.constant 0 : index
    %376 = vector.load %arg26[%c8_394, %c0_395] : memref<200x128xf32, #tpu.memory_space<vmem>>, vector<4x128xf32>
    %c0_396 = arith.constant 0 : index
    %c640_397 = arith.constant 640 : index
    %377 = vector.load %arg27[%c0_396, %c640_397] : memref<32x1152xf32, #tpu.memory_space<vmem>>, vector<4x128xf32>
    tpu.vector_store %arg27[%c0_396, %c640_397], %376 {strides = array<i32>} : memref<32x1152xf32, #tpu.memory_space<vmem>>, vector<4x128xf32>,
    %c12_398 = arith.constant 12 : index
    %c0_399 = arith.constant 0 : index
    %378 = vector.load %arg26[%c12_398, %c0_399] : memref<200x128xf32, #tpu.memory_space<vmem>>, vector<4x128xf32>
    %c0_400 = arith.constant 0 : index
    %c768_401 = arith.constant 768 : index
    %379 = vector.load %arg27[%c0_400, %c768_401] : memref<32x1152xf32, #tpu.memory_space<vmem>>, vector<4x128xf32>
    tpu.vector_store %arg27[%c0_400, %c768_401], %378 {strides = array<i32>} : memref<32x1152xf32, #tpu.memory_space<vmem>>, vector<4x128xf32>,
    %c13_402 = arith.constant 13 : index
    %c0_403 = arith.constant 0 : index
    %380 = vector.load %arg26[%c13_402, %c0_403] : memref<200x128xf32, #tpu.memory_space<vmem>>, vector<4x128xf32>
    %c0_404 = arith.constant 0 : index
    %c896_405 = arith.constant 896 : index
    %381 = vector.load %arg27[%c0_404, %c896_405] : memref<32x1152xf32, #tpu.memory_space<vmem>>, vector<4x128xf32>
    tpu.vector_store %arg27[%c0_404, %c896_405], %380 {strides = array<i32>} : memref<32x1152xf32, #tpu.memory_space<vmem>>, vector<4x128xf32>,
    %c14 = arith.constant 14 : index
    %c0_406 = arith.constant 0 : index
    %382 = vector.load %arg26[%c14, %c0_406] : memref<200x128xf32, #tpu.memory_space<vmem>>, vector<4x128xf32>
    %c0_407 = arith.constant 0 : index
    %c1024_408 = arith.constant 1024 : index
    %383 = vector.load %arg27[%c0_407, %c1024_408] : memref<32x1152xf32, #tpu.memory_space<vmem>>, vector<4x128xf32>
    tpu.vector_store %arg27[%c0_407, %c1024_408], %382 {strides = array<i32>} : memref<32x1152xf32, #tpu.memory_space<vmem>>, vector<4x128xf32>,
    %c6_409 = arith.constant 6 : index
    %c0_410 = arith.constant 0 : index
    %384 = vector.load %arg26[%c6_409, %c0_410] : memref<200x128xf32, #tpu.memory_space<vmem>>, vector<4x128xf32>
    %c4_411 = arith.constant 4 : index
    %c0_412 = arith.constant 0 : index
    %385 = vector.load %arg27[%c4_411, %c0_412] : memref<32x1152xf32, #tpu.memory_space<vmem>>, vector<4x128xf32>
    tpu.vector_store %arg27[%c4_411, %c0_412], %384 {strides = array<i32>} : memref<32x1152xf32, #tpu.memory_space<vmem>>, vector<4x128xf32>,
    %c7_413 = arith.constant 7 : index
    %c0_414 = arith.constant 0 : index
    %386 = vector.load %arg26[%c7_413, %c0_414] : memref<200x128xf32, #tpu.memory_space<vmem>>, vector<4x128xf32>
    %c4_415 = arith.constant 4 : index
    %c128_416 = arith.constant 128 : index
    %387 = vector.load %arg27[%c4_415, %c128_416] : memref<32x1152xf32, #tpu.memory_space<vmem>>, vector<4x128xf32>
    tpu.vector_store %arg27[%c4_415, %c128_416], %386 {strides = array<i32>} : memref<32x1152xf32, #tpu.memory_space<vmem>>, vector<4x128xf32>,
    %c8_417 = arith.constant 8 : index
    %c0_418 = arith.constant 0 : index
    %388 = vector.load %arg26[%c8_417, %c0_418] : memref<200x128xf32, #tpu.memory_space<vmem>>, vector<4x128xf32>
    %c4_419 = arith.constant 4 : index
    %c256_420 = arith.constant 256 : index
    %389 = vector.load %arg27[%c4_419, %c256_420] : memref<32x1152xf32, #tpu.memory_space<vmem>>, vector<4x128xf32>
    tpu.vector_store %arg27[%c4_419, %c256_420], %388 {strides = array<i32>} : memref<32x1152xf32, #tpu.memory_space<vmem>>, vector<4x128xf32>,
    %c12_421 = arith.constant 12 : index
    %c0_422 = arith.constant 0 : index
    %390 = vector.load %arg26[%c12_421, %c0_422] : memref<200x128xf32, #tpu.memory_space<vmem>>, vector<4x128xf32>
    %c4_423 = arith.constant 4 : index
    %c384_424 = arith.constant 384 : index
    %391 = vector.load %arg27[%c4_423, %c384_424] : memref<32x1152xf32, #tpu.memory_space<vmem>>, vector<4x128xf32>
    tpu.vector_store %arg27[%c4_423, %c384_424], %390 {strides = array<i32>} : memref<32x1152xf32, #tpu.memory_space<vmem>>, vector<4x128xf32>,
    %c13_425 = arith.constant 13 : index
    %c0_426 = arith.constant 0 : index
    %392 = vector.load %arg26[%c13_425, %c0_426] : memref<200x128xf32, #tpu.memory_space<vmem>>, vector<4x128xf32>
    %c4_427 = arith.constant 4 : index
    %c512_428 = arith.constant 512 : index
    %393 = vector.load %arg27[%c4_427, %c512_428] : memref<32x1152xf32, #tpu.memory_space<vmem>>, vector<4x128xf32>
    tpu.vector_store %arg27[%c4_427, %c512_428], %392 {strides = array<i32>} : memref<32x1152xf32, #tpu.memory_space<vmem>>, vector<4x128xf32>,
    %c14_429 = arith.constant 14 : index
    %c0_430 = arith.constant 0 : index
    %394 = vector.load %arg26[%c14_429, %c0_430] : memref<200x128xf32, #tpu.memory_space<vmem>>, vector<4x128xf32>
    %c4_431 = arith.constant 4 : index
    %c640_432 = arith.constant 640 : index
    %395 = vector.load %arg27[%c4_431, %c640_432] : memref<32x1152xf32, #tpu.memory_space<vmem>>, vector<4x128xf32>
    tpu.vector_store %arg27[%c4_431, %c640_432], %394 {strides = array<i32>} : memref<32x1152xf32, #tpu.memory_space<vmem>>, vector<4x128xf32>,
    %c18 = arith.constant 18 : index
    %c0_433 = arith.constant 0 : index
    %396 = vector.load %arg26[%c18, %c0_433] : memref<200x128xf32, #tpu.memory_space<vmem>>, vector<4x128xf32>
    %c4_434 = arith.constant 4 : index
    %c768_435 = arith.constant 768 : index
    %397 = vector.load %arg27[%c4_434, %c768_435] : memref<32x1152xf32, #tpu.memory_space<vmem>>, vector<4x128xf32>
    tpu.vector_store %arg27[%c4_434, %c768_435], %396 {strides = array<i32>} : memref<32x1152xf32, #tpu.memory_space<vmem>>, vector<4x128xf32>,
    %c19_436 = arith.constant 19 : index
    %c0_437 = arith.constant 0 : index
    %398 = vector.load %arg26[%c19_436, %c0_437] : memref<200x128xf32, #tpu.memory_space<vmem>>, vector<4x128xf32>
    %c4_438 = arith.constant 4 : index
    %c896_439 = arith.constant 896 : index
    %399 = vector.load %arg27[%c4_438, %c896_439] : memref<32x1152xf32, #tpu.memory_space<vmem>>, vector<4x128xf32>
    tpu.vector_store %arg27[%c4_438, %c896_439], %398 {strides = array<i32>} : memref<32x1152xf32, #tpu.memory_space<vmem>>, vector<4x128xf32>,
    %c20_440 = arith.constant 20 : index
    %c0_441 = arith.constant 0 : index
    %400 = vector.load %arg26[%c20_440, %c0_441] : memref<200x128xf32, #tpu.memory_space<vmem>>, vector<4x128xf32>
    %c4_442 = arith.constant 4 : index
    %c1024_443 = arith.constant 1024 : index
    %401 = vector.load %arg27[%c4_442, %c1024_443] : memref<32x1152xf32, #tpu.memory_space<vmem>>, vector<4x128xf32>
    tpu.vector_store %arg27[%c4_442, %c1024_443], %400 {strides = array<i32>} : memref<32x1152xf32, #tpu.memory_space<vmem>>, vector<4x128xf32>,
    %c12_444 = arith.constant 12 : index
    %c0_445 = arith.constant 0 : index
    %402 = vector.load %arg26[%c12_444, %c0_445] : memref<200x128xf32, #tpu.memory_space<vmem>>, vector<4x128xf32>
    %c8_446 = arith.constant 8 : index
    %c0_447 = arith.constant 0 : index
    %403 = vector.load %arg27[%c8_446, %c0_447] : memref<32x1152xf32, #tpu.memory_space<vmem>>, vector<4x128xf32>
    tpu.vector_store %arg27[%c8_446, %c0_447], %402 {strides = array<i32>} : memref<32x1152xf32, #tpu.memory_space<vmem>>, vector<4x128xf32>,
    %c13_448 = arith.constant 13 : index
    %c0_449 = arith.constant 0 : index
    %404 = vector.load %arg26[%c13_448, %c0_449] : memref<200x128xf32, #tpu.memory_space<vmem>>, vector<4x128xf32>
    %c8_450 = arith.constant 8 : index
    %c128_451 = arith.constant 128 : index
    %405 = vector.load %arg27[%c8_450, %c128_451] : memref<32x1152xf32, #tpu.memory_space<vmem>>, vector<4x128xf32>
    tpu.vector_store %arg27[%c8_450, %c128_451], %404 {strides = array<i32>} : memref<32x1152xf32, #tpu.memory_space<vmem>>, vector<4x128xf32>,
    %c14_452 = arith.constant 14 : index
    %c0_453 = arith.constant 0 : index
    %406 = vector.load %arg26[%c14_452, %c0_453] : memref<200x128xf32, #tpu.memory_space<vmem>>, vector<4x128xf32>
    %c8_454 = arith.constant 8 : index
    %c256_455 = arith.constant 256 : index
    %407 = vector.load %arg27[%c8_454, %c256_455] : memref<32x1152xf32, #tpu.memory_space<vmem>>, vector<4x128xf32>
    tpu.vector_store %arg27[%c8_454, %c256_455], %406 {strides = array<i32>} : memref<32x1152xf32, #tpu.memory_space<vmem>>, vector<4x128xf32>,
    %c18_456 = arith.constant 18 : index
    %c0_457 = arith.constant 0 : index
    %408 = vector.load %arg26[%c18_456, %c0_457] : memref<200x128xf32, #tpu.memory_space<vmem>>, vector<4x128xf32>
    %c8_458 = arith.constant 8 : index
    %c384_459 = arith.constant 384 : index
    %409 = vector.load %arg27[%c8_458, %c384_459] : memref<32x1152xf32, #tpu.memory_space<vmem>>, vector<4x128xf32>
    tpu.vector_store %arg27[%c8_458, %c384_459], %408 {strides = array<i32>} : memref<32x1152xf32, #tpu.memory_space<vmem>>, vector<4x128xf32>,
    %c19_460 = arith.constant 19 : index
    %c0_461 = arith.constant 0 : index
    %410 = vector.load %arg26[%c19_460, %c0_461] : memref<200x128xf32, #tpu.memory_space<vmem>>, vector<4x128xf32>
    %c8_462 = arith.constant 8 : index
    %c512_463 = arith.constant 512 : index
    %411 = vector.load %arg27[%c8_462, %c512_463] : memref<32x1152xf32, #tpu.memory_space<vmem>>, vector<4x128xf32>
    tpu.vector_store %arg27[%c8_462, %c512_463], %410 {strides = array<i32>} : memref<32x1152xf32, #tpu.memory_space<vmem>>, vector<4x128xf32>,
    %c20_464 = arith.constant 20 : index
    %c0_465 = arith.constant 0 : index
    %412 = vector.load %arg26[%c20_464, %c0_465] : memref<200x128xf32, #tpu.memory_space<vmem>>, vector<4x128xf32>
    %c8_466 = arith.constant 8 : index
    %c640_467 = arith.constant 640 : index
    %413 = vector.load %arg27[%c8_466, %c640_467] : memref<32x1152xf32, #tpu.memory_space<vmem>>, vector<4x128xf32>
    tpu.vector_store %arg27[%c8_466, %c640_467], %412 {strides = array<i32>} : memref<32x1152xf32, #tpu.memory_space<vmem>>, vector<4x128xf32>,
    %c24_468 = arith.constant 24 : index
    %c0_469 = arith.constant 0 : index
    %414 = vector.load %arg26[%c24_468, %c0_469] : memref<200x128xf32, #tpu.memory_space<vmem>>, vector<4x128xf32>
    %c8_470 = arith.constant 8 : index
    %c768_471 = arith.constant 768 : index
    %415 = vector.load %arg27[%c8_470, %c768_471] : memref<32x1152xf32, #tpu.memory_space<vmem>>, vector<4x128xf32>
    tpu.vector_store %arg27[%c8_470, %c768_471], %414 {strides = array<i32>} : memref<32x1152xf32, #tpu.memory_space<vmem>>, vector<4x128xf32>,
    %c25_472 = arith.constant 25 : index
    %c0_473 = arith.constant 0 : index
    %416 = vector.load %arg26[%c25_472, %c0_473] : memref<200x128xf32, #tpu.memory_space<vmem>>, vector<4x128xf32>
    %c8_474 = arith.constant 8 : index
    %c896_475 = arith.constant 896 : index
    %417 = vector.load %arg27[%c8_474, %c896_475] : memref<32x1152xf32, #tpu.memory_space<vmem>>, vector<4x128xf32>
    tpu.vector_store %arg27[%c8_474, %c896_475], %416 {strides = array<i32>} : memref<32x1152xf32, #tpu.memory_space<vmem>>, vector<4x128xf32>,
    %c26 = arith.constant 26 : index
    %c0_476 = arith.constant 0 : index
    %418 = vector.load %arg26[%c26, %c0_476] : memref<200x128xf32, #tpu.memory_space<vmem>>, vector<4x128xf32>
    %c8_477 = arith.constant 8 : index
    %c1024_478 = arith.constant 1024 : index
    %419 = vector.load %arg27[%c8_477, %c1024_478] : memref<32x1152xf32, #tpu.memory_space<vmem>>, vector<4x128xf32>
    tpu.vector_store %arg27[%c8_477, %c1024_478], %418 {strides = array<i32>} : memref<32x1152xf32, #tpu.memory_space<vmem>>, vector<4x128xf32>,
    %c18_479 = arith.constant 18 : index
    %c0_480 = arith.constant 0 : index
    %420 = vector.load %arg26[%c18_479, %c0_480] : memref<200x128xf32, #tpu.memory_space<vmem>>, vector<4x128xf32>
    %c12_481 = arith.constant 12 : index
    %c0_482 = arith.constant 0 : index
    %421 = vector.load %arg27[%c12_481, %c0_482] : memref<32x1152xf32, #tpu.memory_space<vmem>>, vector<4x128xf32>
    tpu.vector_store %arg27[%c12_481, %c0_482], %420 {strides = array<i32>} : memref<32x1152xf32, #tpu.memory_space<vmem>>, vector<4x128xf32>,
    %c19_483 = arith.constant 19 : index
    %c0_484 = arith.constant 0 : index
    %422 = vector.load %arg26[%c19_483, %c0_484] : memref<200x128xf32, #tpu.memory_space<vmem>>, vector<4x128xf32>
    %c12_485 = arith.constant 12 : index
    %c128_486 = arith.constant 128 : index
    %423 = vector.load %arg27[%c12_485, %c128_486] : memref<32x1152xf32, #tpu.memory_space<vmem>>, vector<4x128xf32>
    tpu.vector_store %arg27[%c12_485, %c128_486], %422 {strides = array<i32>} : memref<32x1152xf32, #tpu.memory_space<vmem>>, vector<4x128xf32>,
    %c20_487 = arith.constant 20 : index
    %c0_488 = arith.constant 0 : index
    %424 = vector.load %arg26[%c20_487, %c0_488] : memref<200x128xf32, #tpu.memory_space<vmem>>, vector<4x128xf32>
    %c12_489 = arith.constant 12 : index
    %c256_490 = arith.constant 256 : index
    %425 = vector.load %arg27[%c12_489, %c256_490] : memref<32x1152xf32, #tpu.memory_space<vmem>>, vector<4x128xf32>
    tpu.vector_store %arg27[%c12_489, %c256_490], %424 {strides = array<i32>} : memref<32x1152xf32, #tpu.memory_space<vmem>>, vector<4x128xf32>,
    %c24_491 = arith.constant 24 : index
    %c0_492 = arith.constant 0 : index
    %426 = vector.load %arg26[%c24_491, %c0_492] : memref<200x128xf32, #tpu.memory_space<vmem>>, vector<4x128xf32>
    %c12_493 = arith.constant 12 : index
    %c384_494 = arith.constant 384 : index
    %427 = vector.load %arg27[%c12_493, %c384_494] : memref<32x1152xf32, #tpu.memory_space<vmem>>, vector<4x128xf32>
    tpu.vector_store %arg27[%c12_493, %c384_494], %426 {strides = array<i32>} : memref<32x1152xf32, #tpu.memory_space<vmem>>, vector<4x128xf32>,
    %c25_495 = arith.constant 25 : index
    %c0_496 = arith.constant 0 : index
    %428 = vector.load %arg26[%c25_495, %c0_496] : memref<200x128xf32, #tpu.memory_space<vmem>>, vector<4x128xf32>
    %c12_497 = arith.constant 12 : index
    %c512_498 = arith.constant 512 : index
    %429 = vector.load %arg27[%c12_497, %c512_498] : memref<32x1152xf32, #tpu.memory_space<vmem>>, vector<4x128xf32>
    tpu.vector_store %arg27[%c12_497, %c512_498], %428 {strides = array<i32>} : memref<32x1152xf32, #tpu.memory_space<vmem>>, vector<4x128xf32>,
    %c26_499 = arith.constant 26 : index
    %c0_500 = arith.constant 0 : index
    %430 = vector.load %arg26[%c26_499, %c0_500] : memref<200x128xf32, #tpu.memory_space<vmem>>, vector<4x128xf32>
    %c12_501 = arith.constant 12 : index
    %c640_502 = arith.constant 640 : index
    %431 = vector.load %arg27[%c12_501, %c640_502] : memref<32x1152xf32, #tpu.memory_space<vmem>>, vector<4x128xf32>
    tpu.vector_store %arg27[%c12_501, %c640_502], %430 {strides = array<i32>} : memref<32x1152xf32, #tpu.memory_space<vmem>>, vector<4x128xf32>,
    %c30_503 = arith.constant 30 : index
    %c0_504 = arith.constant 0 : index
    %432 = vector.load %arg26[%c30_503, %c0_504] : memref<200x128xf32, #tpu.memory_space<vmem>>, vector<4x128xf32>
    %c12_505 = arith.constant 12 : index
    %c768_506 = arith.constant 768 : index
    %433 = vector.load %arg27[%c12_505, %c768_506] : memref<32x1152xf32, #tpu.memory_space<vmem>>, vector<4x128xf32>
    tpu.vector_store %arg27[%c12_505, %c768_506], %432 {strides = array<i32>} : memref<32x1152xf32, #tpu.memory_space<vmem>>, vector<4x128xf32>,
    %c31_507 = arith.constant 31 : index
    %c0_508 = arith.constant 0 : index
    %434 = vector.load %arg26[%c31_507, %c0_508] : memref<200x128xf32, #tpu.memory_space<vmem>>, vector<4x128xf32>
    %c12_509 = arith.constant 12 : index
    %c896_510 = arith.constant 896 : index
    %435 = vector.load %arg27[%c12_509, %c896_510] : memref<32x1152xf32, #tpu.memory_space<vmem>>, vector<4x128xf32>
    tpu.vector_store %arg27[%c12_509, %c896_510], %434 {strides = array<i32>} : memref<32x1152xf32, #tpu.memory_space<vmem>>, vector<4x128xf32>,
    %c32_511 = arith.constant 32 : index
    %c0_512 = arith.constant 0 : index
    %436 = vector.load %arg26[%c32_511, %c0_512] : memref<200x128xf32, #tpu.memory_space<vmem>>, vector<4x128xf32>
    %c12_513 = arith.constant 12 : index
    %c1024_514 = arith.constant 1024 : index
    %437 = vector.load %arg27[%c12_513, %c1024_514] : memref<32x1152xf32, #tpu.memory_space<vmem>>, vector<4x128xf32>
    tpu.vector_store %arg27[%c12_513, %c1024_514], %436 {strides = array<i32>} : memref<32x1152xf32, #tpu.memory_space<vmem>>, vector<4x128xf32>,
    %c36 = arith.constant 36 : index
    %c0_515 = arith.constant 0 : index
    %438 = vector.load %arg26[%c36, %c0_515] : memref<200x128xf32, #tpu.memory_space<vmem>>, vector<4x128xf32>
    %c16_516 = arith.constant 16 : index
    %c0_517 = arith.constant 0 : index
    %439 = vector.load %arg27[%c16_516, %c0_517] : memref<32x1152xf32, #tpu.memory_space<vmem>>, vector<4x128xf32>
    tpu.vector_store %arg27[%c16_516, %c0_517], %438 {strides = array<i32>} : memref<32x1152xf32, #tpu.memory_space<vmem>>, vector<4x128xf32>,
    %c37 = arith.constant 37 : index
    %c0_518 = arith.constant 0 : index
    %440 = vector.load %arg26[%c37, %c0_518] : memref<200x128xf32, #tpu.memory_space<vmem>>, vector<4x128xf32>
    %c16_519 = arith.constant 16 : index
    %c128_520 = arith.constant 128 : index
    %441 = vector.load %arg27[%c16_519, %c128_520] : memref<32x1152xf32, #tpu.memory_space<vmem>>, vector<4x128xf32>
    tpu.vector_store %arg27[%c16_519, %c128_520], %440 {strides = array<i32>} : memref<32x1152xf32, #tpu.memory_space<vmem>>, vector<4x128xf32>,
    %c38 = arith.constant 38 : index
    %c0_521 = arith.constant 0 : index
    %442 = vector.load %arg26[%c38, %c0_521] : memref<200x128xf32, #tpu.memory_space<vmem>>, vector<4x128xf32>
    %c16_522 = arith.constant 16 : index
    %c256_523 = arith.constant 256 : index
    %443 = vector.load %arg27[%c16_522, %c256_523] : memref<32x1152xf32, #tpu.memory_space<vmem>>, vector<4x128xf32>
    tpu.vector_store %arg27[%c16_522, %c256_523], %442 {strides = array<i32>} : memref<32x1152xf32, #tpu.memory_space<vmem>>, vector<4x128xf32>,
    %c42_524 = arith.constant 42 : index
    %c0_525 = arith.constant 0 : index
    %444 = vector.load %arg26[%c42_524, %c0_525] : memref<200x128xf32, #tpu.memory_space<vmem>>, vector<4x128xf32>
    %c16_526 = arith.constant 16 : index
    %c384_527 = arith.constant 384 : index
    %445 = vector.load %arg27[%c16_526, %c384_527] : memref<32x1152xf32, #tpu.memory_space<vmem>>, vector<4x128xf32>
    tpu.vector_store %arg27[%c16_526, %c384_527], %444 {strides = array<i32>} : memref<32x1152xf32, #tpu.memory_space<vmem>>, vector<4x128xf32>,
    %c43_528 = arith.constant 43 : index
    %c0_529 = arith.constant 0 : index
    %446 = vector.load %arg26[%c43_528, %c0_529] : memref<200x128xf32, #tpu.memory_space<vmem>>, vector<4x128xf32>
    %c16_530 = arith.constant 16 : index
    %c512_531 = arith.constant 512 : index
    %447 = vector.load %arg27[%c16_530, %c512_531] : memref<32x1152xf32, #tpu.memory_space<vmem>>, vector<4x128xf32>
    tpu.vector_store %arg27[%c16_530, %c512_531], %446 {strides = array<i32>} : memref<32x1152xf32, #tpu.memory_space<vmem>>, vector<4x128xf32>,
    %c44 = arith.constant 44 : index
    %c0_532 = arith.constant 0 : index
    %448 = vector.load %arg26[%c44, %c0_532] : memref<200x128xf32, #tpu.memory_space<vmem>>, vector<4x128xf32>
    %c16_533 = arith.constant 16 : index
    %c640_534 = arith.constant 640 : index
    %449 = vector.load %arg27[%c16_533, %c640_534] : memref<32x1152xf32, #tpu.memory_space<vmem>>, vector<4x128xf32>
    tpu.vector_store %arg27[%c16_533, %c640_534], %448 {strides = array<i32>} : memref<32x1152xf32, #tpu.memory_space<vmem>>, vector<4x128xf32>,
    %c48_535 = arith.constant 48 : index
    %c0_536 = arith.constant 0 : index
    %450 = vector.load %arg26[%c48_535, %c0_536] : memref<200x128xf32, #tpu.memory_space<vmem>>, vector<4x128xf32>
    %c16_537 = arith.constant 16 : index
    %c768_538 = arith.constant 768 : index
    %451 = vector.load %arg27[%c16_537, %c768_538] : memref<32x1152xf32, #tpu.memory_space<vmem>>, vector<4x128xf32>
    tpu.vector_store %arg27[%c16_537, %c768_538], %450 {strides = array<i32>} : memref<32x1152xf32, #tpu.memory_space<vmem>>, vector<4x128xf32>,
    %c49_539 = arith.constant 49 : index
    %c0_540 = arith.constant 0 : index
    %452 = vector.load %arg26[%c49_539, %c0_540] : memref<200x128xf32, #tpu.memory_space<vmem>>, vector<4x128xf32>
    %c16_541 = arith.constant 16 : index
    %c896_542 = arith.constant 896 : index
    %453 = vector.load %arg27[%c16_541, %c896_542] : memref<32x1152xf32, #tpu.memory_space<vmem>>, vector<4x128xf32>
    tpu.vector_store %arg27[%c16_541, %c896_542], %452 {strides = array<i32>} : memref<32x1152xf32, #tpu.memory_space<vmem>>, vector<4x128xf32>,
    %c50_543 = arith.constant 50 : index
    %c0_544 = arith.constant 0 : index
    %454 = vector.load %arg26[%c50_543, %c0_544] : memref<200x128xf32, #tpu.memory_space<vmem>>, vector<4x128xf32>
    %c16_545 = arith.constant 16 : index
    %c1024_546 = arith.constant 1024 : index
    %455 = vector.load %arg27[%c16_545, %c1024_546] : memref<32x1152xf32, #tpu.memory_space<vmem>>, vector<4x128xf32>
    tpu.vector_store %arg27[%c16_545, %c1024_546], %454 {strides = array<i32>} : memref<32x1152xf32, #tpu.memory_space<vmem>>, vector<4x128xf32>,
    %c42_547 = arith.constant 42 : index
    %c0_548 = arith.constant 0 : index
    %456 = vector.load %arg26[%c42_547, %c0_548] : memref<200x128xf32, #tpu.memory_space<vmem>>, vector<4x128xf32>
    %c20_549 = arith.constant 20 : index
    %c0_550 = arith.constant 0 : index
    %457 = vector.load %arg27[%c20_549, %c0_550] : memref<32x1152xf32, #tpu.memory_space<vmem>>, vector<4x128xf32>
    tpu.vector_store %arg27[%c20_549, %c0_550], %456 {strides = array<i32>} : memref<32x1152xf32, #tpu.memory_space<vmem>>, vector<4x128xf32>,
    %c43_551 = arith.constant 43 : index
    %c0_552 = arith.constant 0 : index
    %458 = vector.load %arg26[%c43_551, %c0_552] : memref<200x128xf32, #tpu.memory_space<vmem>>, vector<4x128xf32>
    %c20_553 = arith.constant 20 : index
    %c128_554 = arith.constant 128 : index
    %459 = vector.load %arg27[%c20_553, %c128_554] : memref<32x1152xf32, #tpu.memory_space<vmem>>, vector<4x128xf32>
    tpu.vector_store %arg27[%c20_553, %c128_554], %458 {strides = array<i32>} : memref<32x1152xf32, #tpu.memory_space<vmem>>, vector<4x128xf32>,
    %c44_555 = arith.constant 44 : index
    %c0_556 = arith.constant 0 : index
    %460 = vector.load %arg26[%c44_555, %c0_556] : memref<200x128xf32, #tpu.memory_space<vmem>>, vector<4x128xf32>
    %c20_557 = arith.constant 20 : index
    %c256_558 = arith.constant 256 : index
    %461 = vector.load %arg27[%c20_557, %c256_558] : memref<32x1152xf32, #tpu.memory_space<vmem>>, vector<4x128xf32>
    tpu.vector_store %arg27[%c20_557, %c256_558], %460 {strides = array<i32>} : memref<32x1152xf32, #tpu.memory_space<vmem>>, vector<4x128xf32>,
    %c48_559 = arith.constant 48 : index
    %c0_560 = arith.constant 0 : index
    %462 = vector.load %arg26[%c48_559, %c0_560] : memref<200x128xf32, #tpu.memory_space<vmem>>, vector<4x128xf32>
    %c20_561 = arith.constant 20 : index
    %c384_562 = arith.constant 384 : index
    %463 = vector.load %arg27[%c20_561, %c384_562] : memref<32x1152xf32, #tpu.memory_space<vmem>>, vector<4x128xf32>
    tpu.vector_store %arg27[%c20_561, %c384_562], %462 {strides = array<i32>} : memref<32x1152xf32, #tpu.memory_space<vmem>>, vector<4x128xf32>,
    %c49_563 = arith.constant 49 : index
    %c0_564 = arith.constant 0 : index
    %464 = vector.load %arg26[%c49_563, %c0_564] : memref<200x128xf32, #tpu.memory_space<vmem>>, vector<4x128xf32>
    %c20_565 = arith.constant 20 : index
    %c512_566 = arith.constant 512 : index
    %465 = vector.load %arg27[%c20_565, %c512_566] : memref<32x1152xf32, #tpu.memory_space<vmem>>, vector<4x128xf32>
    tpu.vector_store %arg27[%c20_565, %c512_566], %464 {strides = array<i32>} : memref<32x1152xf32, #tpu.memory_space<vmem>>, vector<4x128xf32>,
    %c50_567 = arith.constant 50 : index
    %c0_568 = arith.constant 0 : index
    %466 = vector.load %arg26[%c50_567, %c0_568] : memref<200x128xf32, #tpu.memory_space<vmem>>, vector<4x128xf32>
    %c20_569 = arith.constant 20 : index
    %c640_570 = arith.constant 640 : index
    %467 = vector.load %arg27[%c20_569, %c640_570] : memref<32x1152xf32, #tpu.memory_space<vmem>>, vector<4x128xf32>
    tpu.vector_store %arg27[%c20_569, %c640_570], %466 {strides = array<i32>} : memref<32x1152xf32, #tpu.memory_space<vmem>>, vector<4x128xf32>,
    %c54 = arith.constant 54 : index
    %c0_571 = arith.constant 0 : index
    %468 = vector.load %arg26[%c54, %c0_571] : memref<200x128xf32, #tpu.memory_space<vmem>>, vector<4x128xf32>
    %c20_572 = arith.constant 20 : index
    %c768_573 = arith.constant 768 : index
    %469 = vector.load %arg27[%c20_572, %c768_573] : memref<32x1152xf32, #tpu.memory_space<vmem>>, vector<4x128xf32>
    tpu.vector_store %arg27[%c20_572, %c768_573], %468 {strides = array<i32>} : memref<32x1152xf32, #tpu.memory_space<vmem>>, vector<4x128xf32>,
    %c55_574 = arith.constant 55 : index
    %c0_575 = arith.constant 0 : index
    %470 = vector.load %arg26[%c55_574, %c0_575] : memref<200x128xf32, #tpu.memory_space<vmem>>, vector<4x128xf32>
    %c20_576 = arith.constant 20 : index
    %c896_577 = arith.constant 896 : index
    %471 = vector.load %arg27[%c20_576, %c896_577] : memref<32x1152xf32, #tpu.memory_space<vmem>>, vector<4x128xf32>
    tpu.vector_store %arg27[%c20_576, %c896_577], %470 {strides = array<i32>} : memref<32x1152xf32, #tpu.memory_space<vmem>>, vector<4x128xf32>,
    %c56 = arith.constant 56 : index
    %c0_578 = arith.constant 0 : index
    %472 = vector.load %arg26[%c56, %c0_578] : memref<200x128xf32, #tpu.memory_space<vmem>>, vector<4x128xf32>
    %c20_579 = arith.constant 20 : index
    %c1024_580 = arith.constant 1024 : index
    %473 = vector.load %arg27[%c20_579, %c1024_580] : memref<32x1152xf32, #tpu.memory_space<vmem>>, vector<4x128xf32>
    tpu.vector_store %arg27[%c20_579, %c1024_580], %472 {strides = array<i32>} : memref<32x1152xf32, #tpu.memory_space<vmem>>, vector<4x128xf32>,
    %c48_581 = arith.constant 48 : index
    %c0_582 = arith.constant 0 : index
    %474 = vector.load %arg26[%c48_581, %c0_582] : memref<200x128xf32, #tpu.memory_space<vmem>>, vector<4x128xf32>
    %c24_583 = arith.constant 24 : index
    %c0_584 = arith.constant 0 : index
    %475 = vector.load %arg27[%c24_583, %c0_584] : memref<32x1152xf32, #tpu.memory_space<vmem>>, vector<4x128xf32>
    tpu.vector_store %arg27[%c24_583, %c0_584], %474 {strides = array<i32>} : memref<32x1152xf32, #tpu.memory_space<vmem>>, vector<4x128xf32>,
    %c49_585 = arith.constant 49 : index
    %c0_586 = arith.constant 0 : index
    %476 = vector.load %arg26[%c49_585, %c0_586] : memref<200x128xf32, #tpu.memory_space<vmem>>, vector<4x128xf32>
    %c24_587 = arith.constant 24 : index
    %c128_588 = arith.constant 128 : index
    %477 = vector.load %arg27[%c24_587, %c128_588] : memref<32x1152xf32, #tpu.memory_space<vmem>>, vector<4x128xf32>
    tpu.vector_store %arg27[%c24_587, %c128_588], %476 {strides = array<i32>} : memref<32x1152xf32, #tpu.memory_space<vmem>>, vector<4x128xf32>,
    %c50_589 = arith.constant 50 : index
    %c0_590 = arith.constant 0 : index
    %478 = vector.load %arg26[%c50_589, %c0_590] : memref<200x128xf32, #tpu.memory_space<vmem>>, vector<4x128xf32>
    %c24_591 = arith.constant 24 : index
    %c256_592 = arith.constant 256 : index
    %479 = vector.load %arg27[%c24_591, %c256_592] : memref<32x1152xf32, #tpu.memory_space<vmem>>, vector<4x128xf32>
    tpu.vector_store %arg27[%c24_591, %c256_592], %478 {strides = array<i32>} : memref<32x1152xf32, #tpu.memory_space<vmem>>, vector<4x128xf32>,
    %c54_593 = arith.constant 54 : index
    %c0_594 = arith.constant 0 : index
    %480 = vector.load %arg26[%c54_593, %c0_594] : memref<200x128xf32, #tpu.memory_space<vmem>>, vector<4x128xf32>
    %c24_595 = arith.constant 24 : index
    %c384_596 = arith.constant 384 : index
    %481 = vector.load %arg27[%c24_595, %c384_596] : memref<32x1152xf32, #tpu.memory_space<vmem>>, vector<4x128xf32>
    tpu.vector_store %arg27[%c24_595, %c384_596], %480 {strides = array<i32>} : memref<32x1152xf32, #tpu.memory_space<vmem>>, vector<4x128xf32>,
    %c55_597 = arith.constant 55 : index
    %c0_598 = arith.constant 0 : index
    %482 = vector.load %arg26[%c55_597, %c0_598] : memref<200x128xf32, #tpu.memory_space<vmem>>, vector<4x128xf32>
    %c24_599 = arith.constant 24 : index
    %c512_600 = arith.constant 512 : index
    %483 = vector.load %arg27[%c24_599, %c512_600] : memref<32x1152xf32, #tpu.memory_space<vmem>>, vector<4x128xf32>
    tpu.vector_store %arg27[%c24_599, %c512_600], %482 {strides = array<i32>} : memref<32x1152xf32, #tpu.memory_space<vmem>>, vector<4x128xf32>,
    %c56_601 = arith.constant 56 : index
    %c0_602 = arith.constant 0 : index
    %484 = vector.load %arg26[%c56_601, %c0_602] : memref<200x128xf32, #tpu.memory_space<vmem>>, vector<4x128xf32>
    %c24_603 = arith.constant 24 : index
    %c640_604 = arith.constant 640 : index
    %485 = vector.load %arg27[%c24_603, %c640_604] : memref<32x1152xf32, #tpu.memory_space<vmem>>, vector<4x128xf32>
    tpu.vector_store %arg27[%c24_603, %c640_604], %484 {strides = array<i32>} : memref<32x1152xf32, #tpu.memory_space<vmem>>, vector<4x128xf32>,
    %c60_605 = arith.constant 60 : index
    %c0_606 = arith.constant 0 : index
    %486 = vector.load %arg26[%c60_605, %c0_606] : memref<200x128xf32, #tpu.memory_space<vmem>>, vector<4x128xf32>
    %c24_607 = arith.constant 24 : index
    %c768_608 = arith.constant 768 : index
    %487 = vector.load %arg27[%c24_607, %c768_608] : memref<32x1152xf32, #tpu.memory_space<vmem>>, vector<4x128xf32>
    tpu.vector_store %arg27[%c24_607, %c768_608], %486 {strides = array<i32>} : memref<32x1152xf32, #tpu.memory_space<vmem>>, vector<4x128xf32>,
    %c61_609 = arith.constant 61 : index
    %c0_610 = arith.constant 0 : index
    %488 = vector.load %arg26[%c61_609, %c0_610] : memref<200x128xf32, #tpu.memory_space<vmem>>, vector<4x128xf32>
    %c24_611 = arith.constant 24 : index
    %c896_612 = arith.constant 896 : index
    %489 = vector.load %arg27[%c24_611, %c896_612] : memref<32x1152xf32, #tpu.memory_space<vmem>>, vector<4x128xf32>
    tpu.vector_store %arg27[%c24_611, %c896_612], %488 {strides = array<i32>} : memref<32x1152xf32, #tpu.memory_space<vmem>>, vector<4x128xf32>,
    %c62_613 = arith.constant 62 : index
    %c0_614 = arith.constant 0 : index
    %490 = vector.load %arg26[%c62_613, %c0_614] : memref<200x128xf32, #tpu.memory_space<vmem>>, vector<4x128xf32>
    %c24_615 = arith.constant 24 : index
    %c1024_616 = arith.constant 1024 : index
    %491 = vector.load %arg27[%c24_615, %c1024_616] : memref<32x1152xf32, #tpu.memory_space<vmem>>, vector<4x128xf32>
    tpu.vector_store %arg27[%c24_615, %c1024_616], %490 {strides = array<i32>} : memref<32x1152xf32, #tpu.memory_space<vmem>>, vector<4x128xf32>,
    %c54_617 = arith.constant 54 : index
    %c0_618 = arith.constant 0 : index
    %492 = vector.load %arg26[%c54_617, %c0_618] : memref<200x128xf32, #tpu.memory_space<vmem>>, vector<4x128xf32>
    %c28_619 = arith.constant 28 : index
    %c0_620 = arith.constant 0 : index
    %493 = vector.load %arg27[%c28_619, %c0_620] : memref<32x1152xf32, #tpu.memory_space<vmem>>, vector<4x128xf32>
    tpu.vector_store %arg27[%c28_619, %c0_620], %492 {strides = array<i32>} : memref<32x1152xf32, #tpu.memory_space<vmem>>, vector<4x128xf32>,
    %c55_621 = arith.constant 55 : index
    %c0_622 = arith.constant 0 : index
    %494 = vector.load %arg26[%c55_621, %c0_622] : memref<200x128xf32, #tpu.memory_space<vmem>>, vector<4x128xf32>
    %c28_623 = arith.constant 28 : index
    %c128_624 = arith.constant 128 : index
    %495 = vector.load %arg27[%c28_623, %c128_624] : memref<32x1152xf32, #tpu.memory_space<vmem>>, vector<4x128xf32>
    tpu.vector_store %arg27[%c28_623, %c128_624], %494 {strides = array<i32>} : memref<32x1152xf32, #tpu.memory_space<vmem>>, vector<4x128xf32>,
    %c56_625 = arith.constant 56 : index
    %c0_626 = arith.constant 0 : index
    %496 = vector.load %arg26[%c56_625, %c0_626] : memref<200x128xf32, #tpu.memory_space<vmem>>, vector<4x128xf32>
    %c28_627 = arith.constant 28 : index
    %c256_628 = arith.constant 256 : index
    %497 = vector.load %arg27[%c28_627, %c256_628] : memref<32x1152xf32, #tpu.memory_space<vmem>>, vector<4x128xf32>
    tpu.vector_store %arg27[%c28_627, %c256_628], %496 {strides = array<i32>} : memref<32x1152xf32, #tpu.memory_space<vmem>>, vector<4x128xf32>,
    %c60_629 = arith.constant 60 : index
    %c0_630 = arith.constant 0 : index
    %498 = vector.load %arg26[%c60_629, %c0_630] : memref<200x128xf32, #tpu.memory_space<vmem>>, vector<4x128xf32>
    %c28_631 = arith.constant 28 : index
    %c384_632 = arith.constant 384 : index
    %499 = vector.load %arg27[%c28_631, %c384_632] : memref<32x1152xf32, #tpu.memory_space<vmem>>, vector<4x128xf32>
    tpu.vector_store %arg27[%c28_631, %c384_632], %498 {strides = array<i32>} : memref<32x1152xf32, #tpu.memory_space<vmem>>, vector<4x128xf32>,
    %c61_633 = arith.constant 61 : index
    %c0_634 = arith.constant 0 : index
    %500 = vector.load %arg26[%c61_633, %c0_634] : memref<200x128xf32, #tpu.memory_space<vmem>>, vector<4x128xf32>
    %c28_635 = arith.constant 28 : index
    %c512_636 = arith.constant 512 : index
    %501 = vector.load %arg27[%c28_635, %c512_636] : memref<32x1152xf32, #tpu.memory_space<vmem>>, vector<4x128xf32>
    tpu.vector_store %arg27[%c28_635, %c512_636], %500 {strides = array<i32>} : memref<32x1152xf32, #tpu.memory_space<vmem>>, vector<4x128xf32>,
    %c62_637 = arith.constant 62 : index
    %c0_638 = arith.constant 0 : index
    %502 = vector.load %arg26[%c62_637, %c0_638] : memref<200x128xf32, #tpu.memory_space<vmem>>, vector<4x128xf32>
    %c28_639 = arith.constant 28 : index
    %c640_640 = arith.constant 640 : index
    %503 = vector.load %arg27[%c28_639, %c640_640] : memref<32x1152xf32, #tpu.memory_space<vmem>>, vector<4x128xf32>
    tpu.vector_store %arg27[%c28_639, %c640_640], %502 {strides = array<i32>} : memref<32x1152xf32, #tpu.memory_space<vmem>>, vector<4x128xf32>,
    %c66 = arith.constant 66 : index
    %c0_641 = arith.constant 0 : index
    %504 = vector.load %arg26[%c66, %c0_641] : memref<200x128xf32, #tpu.memory_space<vmem>>, vector<4x128xf32>
    %c28_642 = arith.constant 28 : index
    %c768_643 = arith.constant 768 : index
    %505 = vector.load %arg27[%c28_642, %c768_643] : memref<32x1152xf32, #tpu.memory_space<vmem>>, vector<4x128xf32>
    tpu.vector_store %arg27[%c28_642, %c768_643], %504 {strides = array<i32>} : memref<32x1152xf32, #tpu.memory_space<vmem>>, vector<4x128xf32>,
    %c67 = arith.constant 67 : index
    %c0_644 = arith.constant 0 : index
    %506 = vector.load %arg26[%c67, %c0_644] : memref<200x128xf32, #tpu.memory_space<vmem>>, vector<4x128xf32>
    %c28_645 = arith.constant 28 : index
    %c896_646 = arith.constant 896 : index
    %507 = vector.load %arg27[%c28_645, %c896_646] : memref<32x1152xf32, #tpu.memory_space<vmem>>, vector<4x128xf32>
    tpu.vector_store %arg27[%c28_645, %c896_646], %506 {strides = array<i32>} : memref<32x1152xf32, #tpu.memory_space<vmem>>, vector<4x128xf32>,
    %c68 = arith.constant 68 : index
    %c0_647 = arith.constant 0 : index
    %508 = vector.load %arg26[%c68, %c0_647] : memref<200x128xf32, #tpu.memory_space<vmem>>, vector<4x128xf32>
    %c28_648 = arith.constant 28 : index
    %c1024_649 = arith.constant 1024 : index
    %509 = vector.load %arg27[%c28_648, %c1024_649] : memref<32x1152xf32, #tpu.memory_space<vmem>>, vector<4x128xf32>
    tpu.vector_store %arg27[%c28_648, %c1024_649], %508 {strides = array<i32>} : memref<32x1152xf32, #tpu.memory_space<vmem>>, vector<4x128xf32>,
    %c0_650 = arith.constant 0 : index
    %c0_651 = arith.constant 0 : index
    %510 = vector.load %arg27[%c0_650, %c0_651] : memref<32x1152xf32, #tpu.memory_space<vmem>>, vector<32x1152xf32>
    %511 = arith.truncf %510 : vector<32x1152xf32> to vector<32x1152xbf16>
    %c0_652 = arith.constant 0 : index
    %c0_653 = arith.constant 0 : index
    %512 = vector.load %arg16[%c0_652, %c0_653] : memref<1152x128xbf16, #tpu.memory_space<vmem>>, vector<1152x128xbf16>
    %cst_654 = arith.constant dense<0.000000e+00> : vector<32x128xf32>
    %513 = tpu.matmul %511, %512, %cst_654 {dimension_numbers = #tpu.dot_dimension_numbers<[1], [0], [0], [1], [0, 0, 1, 1], [], []>} : vector<32x1152xbf16>, vector<1152x128xbf16>, vector<32x128xf32> -> vector<32x128xf32>
    %c0_655 = arith.constant 0 : index
    %c0_656 = arith.constant 0 : index
    %514 = vector.load %arg17[%c0_655, %c0_656] : memref<1x128xf32, #tpu.memory_space<vmem>>, vector<1x128xf32>
    %c0_657 = arith.constant 0 : index
    %c0_658 = arith.constant 0 : index
    %515 = vector.load %arg18[%c0_657, %c0_658] : memref<1x128xf32, #tpu.memory_space<vmem>>, vector<1x128xf32>
    %cst_659 = arith.constant dense<0.000000e+00> : vector<128xf32>
    %516 = vector.multi_reduction <add>, %513, %cst_659 [0] : vector<32x128xf32> to vector<128xf32>
    %517 = vector.shape_cast %516 : vector<128xf32> to vector<1x128xf32>
    %cst_660 = arith.constant 3.125000e-02 : f32
    %518 = vector.broadcast %cst_660 : f32 to vector<1x128xf32>
    %519 = arith.mulf %517, %518 : vector<1x128xf32>
    %520 = arith.mulf %513, %513 : vector<32x128xf32>
    %cst_661 = arith.constant dense<0.000000e+00> : vector<128xf32>
    %521 = vector.multi_reduction <add>, %520, %cst_661 [0] : vector<32x128xf32> to vector<128xf32>
    %522 = vector.shape_cast %521 : vector<128xf32> to vector<1x128xf32>
    %cst_662 = arith.constant 3.125000e-02 : f32
    %523 = vector.broadcast %cst_662 : f32 to vector<1x128xf32>
    %524 = arith.mulf %522, %523 : vector<1x128xf32>
    %525 = arith.mulf %519, %519 : vector<1x128xf32>
    %526 = arith.subf %524, %525 : vector<1x128xf32>
    %cst_663 = arith.constant 0.000000e+00 : f32
    %527 = vector.broadcast %cst_663 : f32 to vector<1x128xf32>
    %528 = arith.maximumf %526, %527 : vector<1x128xf32>
    %cst_664 = arith.constant 9.99999974E-6 : f32
    %529 = vector.broadcast %cst_664 : f32 to vector<1x128xf32>
    %530 = arith.addf %528, %529 : vector<1x128xf32>
    %531 = math.rsqrt %530 : vector<1x128xf32>
    %532 = arith.mulf %514, %531 : vector<1x128xf32>
    %533 = arith.mulf %519, %532 : vector<1x128xf32>
    %534 = arith.subf %515, %533 : vector<1x128xf32>
    %535 = vector.broadcast %532 : vector<1x128xf32> to vector<32x128xf32>
    %536 = arith.mulf %513, %535 : vector<32x128xf32>
    %537 = vector.broadcast %534 : vector<1x128xf32> to vector<32x128xf32>
    %538 = arith.addf %536, %537 : vector<32x128xf32>
    %cst_665 = arith.constant 0.000000e+00 : f32
    %539 = vector.broadcast %cst_665 : f32 to vector<32x128xf32>
    %540 = arith.maximumf %538, %539 : vector<32x128xf32>
    %541 = arith.truncf %540 : vector<32x128xf32> to vector<32x128xbf16>
    %c0_666 = arith.constant 0 : index
    %c0_667 = arith.constant 0 : index
    %542 = vector.load %arg22[%c0_666, %c0_667] : memref<128x128xbf16, #tpu.memory_space<vmem>>, vector<128x128xbf16>
    %cst_668 = arith.constant dense<0.000000e+00> : vector<32x128xf32>
    %543 = tpu.matmul %318, %542, %cst_668 {dimension_numbers = #tpu.dot_dimension_numbers<[1], [0], [0], [1], [0, 0, 1, 1], [], []>} : vector<32x128xbf16>, vector<128x128xbf16>, vector<32x128xf32> -> vector<32x128xf32>
    %c0_669 = arith.constant 0 : index
    %c0_670 = arith.constant 0 : index
    %544 = vector.load %arg23[%c0_669, %c0_670] : memref<1x128xf32, #tpu.memory_space<vmem>>, vector<1x128xf32>
    %c0_671 = arith.constant 0 : index
    %c0_672 = arith.constant 0 : index
    %545 = vector.load %arg24[%c0_671, %c0_672] : memref<1x128xf32, #tpu.memory_space<vmem>>, vector<1x128xf32>
    %cst_673 = arith.constant dense<0.000000e+00> : vector<128xf32>
    %546 = vector.multi_reduction <add>, %543, %cst_673 [0] : vector<32x128xf32> to vector<128xf32>
    %547 = vector.shape_cast %546 : vector<128xf32> to vector<1x128xf32>
    %cst_674 = arith.constant 3.125000e-02 : f32
    %548 = vector.broadcast %cst_674 : f32 to vector<1x128xf32>
    %549 = arith.mulf %547, %548 : vector<1x128xf32>
    %550 = arith.mulf %543, %543 : vector<32x128xf32>
    %cst_675 = arith.constant dense<0.000000e+00> : vector<128xf32>
    %551 = vector.multi_reduction <add>, %550, %cst_675 [0] : vector<32x128xf32> to vector<128xf32>
    %552 = vector.shape_cast %551 : vector<128xf32> to vector<1x128xf32>
    %cst_676 = arith.constant 3.125000e-02 : f32
    %553 = vector.broadcast %cst_676 : f32 to vector<1x128xf32>
    %554 = arith.mulf %552, %553 : vector<1x128xf32>
    %555 = arith.mulf %549, %549 : vector<1x128xf32>
    %556 = arith.subf %554, %555 : vector<1x128xf32>
    %cst_677 = arith.constant 0.000000e+00 : f32
    %557 = vector.broadcast %cst_677 : f32 to vector<1x128xf32>
    %558 = arith.maximumf %556, %557 : vector<1x128xf32>
    %cst_678 = arith.constant 9.99999974E-6 : f32
    %559 = vector.broadcast %cst_678 : f32 to vector<1x128xf32>
    %560 = arith.addf %558, %559 : vector<1x128xf32>
    %561 = math.rsqrt %560 : vector<1x128xf32>
    %562 = arith.mulf %544, %561 : vector<1x128xf32>
    %563 = arith.mulf %549, %562 : vector<1x128xf32>
    %564 = arith.subf %545, %563 : vector<1x128xf32>
    %565 = vector.broadcast %562 : vector<1x128xf32> to vector<32x128xf32>
    %566 = arith.mulf %543, %565 : vector<32x128xf32>
    %567 = vector.broadcast %564 : vector<1x128xf32> to vector<32x128xf32>
    %568 = arith.addf %566, %567 : vector<32x128xf32>
    %c0_679 = arith.constant 0 : index
    %c0_680 = arith.constant 0 : index
    %569 = vector.load %arg19[%c0_679, %c0_680] : memref<128x128xbf16, #tpu.memory_space<vmem>>, vector<128x128xbf16>
    %cst_681 = arith.constant dense<0.000000e+00> : vector<32x128xf32>
    %570 = tpu.matmul %541, %569, %cst_681 {dimension_numbers = #tpu.dot_dimension_numbers<[1], [0], [0], [1], [0, 0, 1, 1], [], []>} : vector<32x128xbf16>, vector<128x128xbf16>, vector<32x128xf32> -> vector<32x128xf32>
    %c0_682 = arith.constant 0 : index
    %c0_683 = arith.constant 0 : index
    %571 = vector.load %arg20[%c0_682, %c0_683] : memref<1x128xf32, #tpu.memory_space<vmem>>, vector<1x128xf32>
    %c0_684 = arith.constant 0 : index
    %c0_685 = arith.constant 0 : index
    %572 = vector.load %arg21[%c0_684, %c0_685] : memref<1x128xf32, #tpu.memory_space<vmem>>, vector<1x128xf32>
    %cst_686 = arith.constant dense<0.000000e+00> : vector<128xf32>
    %573 = vector.multi_reduction <add>, %570, %cst_686 [0] : vector<32x128xf32> to vector<128xf32>
    %574 = vector.shape_cast %573 : vector<128xf32> to vector<1x128xf32>
    %cst_687 = arith.constant 3.125000e-02 : f32
    %575 = vector.broadcast %cst_687 : f32 to vector<1x128xf32>
    %576 = arith.mulf %574, %575 : vector<1x128xf32>
    %577 = arith.mulf %570, %570 : vector<32x128xf32>
    %cst_688 = arith.constant dense<0.000000e+00> : vector<128xf32>
    %578 = vector.multi_reduction <add>, %577, %cst_688 [0] : vector<32x128xf32> to vector<128xf32>
    %579 = vector.shape_cast %578 : vector<128xf32> to vector<1x128xf32>
    %cst_689 = arith.constant 3.125000e-02 : f32
    %580 = vector.broadcast %cst_689 : f32 to vector<1x128xf32>
    %581 = arith.mulf %579, %580 : vector<1x128xf32>
    %582 = arith.mulf %576, %576 : vector<1x128xf32>
    %583 = arith.subf %581, %582 : vector<1x128xf32>
    %cst_690 = arith.constant 0.000000e+00 : f32
    %584 = vector.broadcast %cst_690 : f32 to vector<1x128xf32>
    %585 = arith.maximumf %583, %584 : vector<1x128xf32>
    %cst_691 = arith.constant 9.99999974E-6 : f32
    %586 = vector.broadcast %cst_691 : f32 to vector<1x128xf32>
    %587 = arith.addf %585, %586 : vector<1x128xf32>
    %588 = math.rsqrt %587 : vector<1x128xf32>
    %589 = arith.mulf %571, %588 : vector<1x128xf32>
    %590 = arith.mulf %576, %589 : vector<1x128xf32>
    %591 = arith.subf %572, %590 : vector<1x128xf32>
    %592 = vector.broadcast %589 : vector<1x128xf32> to vector<32x128xf32>
    %593 = arith.mulf %570, %592 : vector<32x128xf32>
    %594 = vector.broadcast %591 : vector<1x128xf32> to vector<32x128xf32>
    %595 = arith.addf %593, %594 : vector<32x128xf32>
    %596 = arith.addf %595, %568 : vector<32x128xf32>
    %cst_692 = arith.constant 0.000000e+00 : f32
    %597 = vector.broadcast %cst_692 : f32 to vector<32x128xf32>
    %598 = arith.maximumf %596, %597 : vector<32x128xf32>
    %c0_693 = arith.constant 0 : index
    %c0_694 = arith.constant 0 : index
    %599 = vector.load %arg25[%c0_693, %c0_694] : memref<32x128xf32, #tpu.memory_space<vmem>>, vector<32x128xf32>
    tpu.vector_store %arg25[%c0_693, %c0_694], %598 {strides = array<i32>} : memref<32x128xf32, #tpu.memory_space<vmem>>, vector<32x128xf32>,
    return
  }
}

</mosaic_0001>

<llo_original>
// kernel: tpu_custom_call.1
$region0: #{tpu_custom_call.1}
  #allocation0 [shape = 'u32[]', space=smem, size = 0x4, offset = 0x4, fixed_abs, tag = 'smem constant byte address 0x4 - core index']
  #allocation1 [shape = 'u32[72,128]{1,0:T(1,128)}', space=vmem, size = 0x9000, scoped, tag = 'internal scratch']
  #allocation2 [shape = 'f32[200,128]{1,0:T(8,128)}', space=vmem, size = 0x19000, scoped, tag = 'scratch operand']
  #allocation3 [shape = 'f32[32,1152]{1,0:T(8,128)}', space=vmem, size = 0x24000, scoped, tag = 'scratch operand']
  #allocation4 [shape = 'f32[32,128]{1,0:T(8,128)}', space=vmem, size = 0x4000, scoped, tag = 'scratch operand']
  #allocation5 [shape = 'f32[32,128]{1,0:T(8,128)}', space=vmem, size = 0x4000, scoped, tag = 'scratch operand']
  #allocation6 [shape = 'f32[32,128]{1,0:T(8,128)}', space=vmem, size = 0x4000, scoped, tag = 'scratch operand']
  %s0 = inlined_call_operand.hbm [shape: f32[128,128], index: 0, kind: input, shape index: {}]
  %s1 = inlined_call_operand.hbm [shape: bf16[128,128], index: 1, kind: input, shape index: {}]
  %s2 = inlined_call_operand.vmem [shape: f32[1,128], index: 2, kind: input, shape index: {}]
  %s3 = inlined_call_operand.vmem [shape: f32[1,128], index: 3, kind: input, shape index: {}]
  %s4 = inlined_call_operand.hbm [shape: bf16[1152,128], index: 4, kind: input, shape index: {}]
  %s5 = inlined_call_operand.vmem [shape: f32[1,128], index: 5, kind: input, shape index: {}]
  %s6 = inlined_call_operand.vmem [shape: f32[1,128], index: 6, kind: input, shape index: {}]
  %s7 = inlined_call_operand.hbm [shape: bf16[128,128], index: 7, kind: input, shape index: {}]
  %s8 = inlined_call_operand.vmem [shape: f32[1,128], index: 8, kind: input, shape index: {}]
  %s9 = inlined_call_operand.vmem [shape: f32[1,128], index: 9, kind: input, shape index: {}]
  %s10 = inlined_call_operand.hbm [shape: bf16[128,128], index: 10, kind: input, shape index: {}]
  %s11 = inlined_call_operand.vmem [shape: f32[1,128], index: 11, kind: input, shape index: {}]
  %s12 = inlined_call_operand.vmem [shape: f32[1,128], index: 12, kind: input, shape index: {}]
  %s13 = inlined_call_operand.hbm [shape: bf16[128,128], index: 13, kind: input, shape index: {}]
  %s14 = inlined_call_operand.vmem [shape: f32[1,128], index: 14, kind: input, shape index: {}]
  %s15 = inlined_call_operand.vmem [shape: f32[1,128], index: 15, kind: input, shape index: {}]
  %s16 = inlined_call_operand.hbm [shape: bf16[1152,128], index: 16, kind: input, shape index: {}]
  %s17 = inlined_call_operand.vmem [shape: f32[1,128], index: 17, kind: input, shape index: {}]
  %s18 = inlined_call_operand.vmem [shape: f32[1,128], index: 18, kind: input, shape index: {}]
  %s19 = inlined_call_operand.hbm [shape: bf16[128,128], index: 19, kind: input, shape index: {}]
  %s20 = inlined_call_operand.vmem [shape: f32[1,128], index: 20, kind: input, shape index: {}]
  %s21 = inlined_call_operand.vmem [shape: f32[1,128], index: 21, kind: input, shape index: {}]
  %s22 = inlined_call_operand.hbm [shape: bf16[128,128], index: 22, kind: input, shape index: {}]
  %s23 = inlined_call_operand.vmem [shape: f32[1,128], index: 23, kind: input, shape index: {}]
  %s24 = inlined_call_operand.vmem [shape: f32[1,128], index: 24, kind: input, shape index: {}]
  %s25 = inlined_call_operand.hbm [shape: f32[32,128], index: 25, kind: output, shape index: {}]
  %s26 = sld [smem:[#allocation0]]
  $region146: #{tpu_custom_call.1} parent=0
    _
  %s28 = ssub.s32 1, %s26
  %s29 = scalar_select 0, %s28, %s26
  $region1: #{tpu_custom_call.1} parent=0
    #allocation7 [shape = 'u8[65536]{0}', space=vmem, size = 0x10000, scoped, tag = 'input window, operand 0, single buffered']
    #allocation8 [shape = 's32[1]{0}', space=sflag, size = 0x4, scoped, tag = 'scoped memory for tpu_custom_call.1']
    #allocation9 [shape = 's32[1]{0}', space=sflag, size = 0x4, scoped, tag = 'scoped memory for tpu_custom_call.1']
    #allocation10 [shape = 'u8[32768]{0}', space=vmem, size = 0x8000, scoped, tag = 'input window, operand 1, single buffered']
    #allocation11 [shape = 's32[1]{0}', space=sflag, size = 0x4, scoped, tag = 'scoped memory for tpu_custom_call.1']
    #allocation12 [shape = 'u8[294912]{0}', space=vmem, size = 0x48000, scoped, tag = 'input window, operand 4, single buffered']
    #allocation13 [shape = 'u8[32768]{0}', space=vmem, size = 0x8000, scoped, tag = 'input window, operand 7, single buffered']
    #allocation14 [shape = 's32[1]{0}', space=sflag, size = 0x4, scoped, tag = 'scoped memory for tpu_custom_call.1']
    #allocation15 [shape = 'u8[32768]{0}', space=vmem, size = 0x8000, scoped, tag = 'input window, operand 10, single buffered']
    #allocation16 [shape = 'u8[32768]{0}', space=vmem, size = 0x8000, scoped, tag = 'input window, operand 13, single buffered']
    #allocation17 [shape = 's32[1]{0}', space=sflag, size = 0x4, scoped, tag = 'scoped memory for tpu_custom_call.1']
    #allocation18 [shape = 'u8[294912]{0}', space=vmem, size = 0x48000, scoped, tag = 'input window, operand 16, single buffered']
    #allocation19 [shape = 'u8[32768]{0}', space=vmem, size = 0x8000, scoped, tag = 'input window, operand 19, single buffered']
    #allocation20 [shape = 's32[1]{0}', space=sflag, size = 0x4, scoped, tag = 'scoped memory for tpu_custom_call.1']
    #allocation21 [shape = 'u8[32768]{0}', space=vmem, size = 0x8000, scoped, tag = 'input window, operand 22, single buffered']
    #allocation22 [shape = 'u8[16384]{0}', space=vmem, size = 0x4000, scoped, tag = 'output window, operand 0, single buffered']
    %30 = vsyncpa [#allocation8], 0
    %31 = vsyncpa [#allocation11], 0
    %32 = vsyncpa [#allocation14], 0
    %33 = vsyncpa [#allocation17], 0
    %34 = vsyncpa [#allocation20], 0
    %35 = vsyncpa [#allocation9], 0
    // Predicated region
    $region2: #{tpu_custom_call.1} parent=1 // pred_check
      _
    $region3: #{tpu_custom_call.1} parent=1 // pred_check_branch
      %37 = sbr.rel (0) target = $region5
    $region4: #{tpu_custom_call.1} parent=1 // pred_region
      %39 = vsyncadd [#allocation8], 0
      %s40 = sshll.u32 %s0, 4
      %s41 = int_to_ptr.hbm [resolvable:$true] %s40
      %s42 = sshll.u32 [#allocation7], 4
      %s43 = int_to_ptr.vmem [resolvable:$true] %s42
      %48 = dma.hbm_to_vmem [thread:$0]  %s41, 2048, %s43, [#allocation8], 128, 128, 8
    $region5: #{tpu_custom_call.1} parent=1 // pred_fallthru
      _
    // Predicated region
    $region6: #{tpu_custom_call.1} parent=1 // pred_check
      _
    $region7: #{tpu_custom_call.1} parent=1 // pred_check_branch
      %50 = sbr.rel (0) target = $region9
    $region8: #{tpu_custom_call.1} parent=1 // pred_region
      %52 = vsyncadd [#allocation11], 0
      %s53 = sshll.u32 %s1, 4
      %s54 = int_to_ptr.hbm [resolvable:$true] %s53
      %s55 = sshll.u32 [#allocation10], 4
      %s56 = int_to_ptr.vmem [resolvable:$true] %s55
      %61 = dma.hbm_to_vmem [thread:$0]  %s54, 1024, %s56, [#allocation11], 64, 64, 4
    $region9: #{tpu_custom_call.1} parent=1 // pred_fallthru
      _
    // Predicated region
    $region10: #{tpu_custom_call.1} parent=1 // pred_check
      _
    $region11: #{tpu_custom_call.1} parent=1 // pred_check_branch
      %63 = sbr.rel (0) target = $region13
    $region12: #{tpu_custom_call.1} parent=1 // pred_region
      _
    $region13: #{tpu_custom_call.1} parent=1 // pred_fallthru
      _
    // Predicated region
    $region14: #{tpu_custom_call.1} parent=1 // pred_check
      _
    $region15: #{tpu_custom_call.1} parent=1 // pred_check_branch
      %65 = sbr.rel (0) target = $region17
    $region16: #{tpu_custom_call.1} parent=1 // pred_region
      _
    $region17: #{tpu_custom_call.1} parent=1 // pred_fallthru
      _
    // Predicated region
    $region18: #{tpu_custom_call.1} parent=1 // pred_check
      _
    $region19: #{tpu_custom_call.1} parent=1 // pred_check_branch
      %67 = sbr.rel (0) target = $region21
    $region20: #{tpu_custom_call.1} parent=1 // pred_region
      %69 = vsyncadd [#allocation11], 0
      %s70 = sshll.u32 %s4, 4
      %s71 = int_to_ptr.hbm [resolvable:$true] %s70
      %s72 = sshll.u32 [#allocation12], 4
      %s73 = int_to_ptr.vmem [resolvable:$true] %s72
      %78 = dma.hbm_to_vmem [thread:$0]  %s71, 9216, %s73, [#allocation11], 64, 64, 4
    $region21: #{tpu_custom_call.1} parent=1 // pred_fallthru
      _
    // Predicated region
    $region22: #{tpu_custom_call.1} parent=1 // pred_check
      _
    $region23: #{tpu_custom_call.1} parent=1 // pred_check_branch
      %80 = sbr.rel (0) target = $region25
    $region24: #{tpu_custom_call.1} parent=1 // pred_region
      _
    $region25: #{tpu_custom_call.1} parent=1 // pred_fallthru
      _
    // Predicated region
    $region26: #{tpu_custom_call.1} parent=1 // pred_check
      _
    $region27: #{tpu_custom_call.1} parent=1 // pred_check_branch
      %82 = sbr.rel (0) target = $region29
    $region28: #{tpu_custom_call.1} parent=1 // pred_region
      _
    $region29: #{tpu_custom_call.1} parent=1 // pred_fallthru
      _
    // Predicated region
    $region30: #{tpu_custom_call.1} parent=1 // pred_check
      _
    $region31: #{tpu_custom_call.1} parent=1 // pred_check_branch
      %84 = sbr.rel (0) target = $region33
    $region32: #{tpu_custom_call.1} parent=1 // pred_region
      %86 = vsyncadd [#allocation14], 0
      %s87 = sshll.u32 %s7, 4
      %s88 = int_to_ptr.hbm [resolvable:$true] %s87
      %s89 = sshll.u32 [#allocation13], 4
      %s90 = int_to_ptr.vmem [resolvable:$true] %s89
      %95 = dma.hbm_to_vmem [thread:$0]  %s88, 1024, %s90, [#allocation14], 64, 64, 4
    $region33: #{tpu_custom_call.1} parent=1 // pred_fallthru
      _
    // Predicated region
    $region34: #{tpu_custom_call.1} parent=1 // pred_check
      _
    $region35: #{tpu_custom_call.1} parent=1 // pred_check_branch
      %97 = sbr.rel (0) target = $region37
    $region36: #{tpu_custom_call.1} parent=1 // pred_region
      _
    $region37: #{tpu_custom_call.1} parent=1 // pred_fallthru
      _
    // Predicated region
    $region38: #{tpu_custom_call.1} parent=1 // pred_check
      _
    $region39: #{tpu_custom_call.1} parent=1 // pred_check_branch
      %99 = sbr.rel (0) target = $region41
    $region40: #{tpu_custom_call.1} parent=1 // pred_region
      _
    $region41: #{tpu_custom_call.1} parent=1 // pred_fallthru
      _
    // Predicated region
    $region42: #{tpu_custom_call.1} parent=1 // pred_check
      _
    $region43: #{tpu_custom_call.1} parent=1 // pred_check_branch
      %101 = sbr.rel (0) target = $region45
    $region44: #{tpu_custom_call.1} parent=1 // pred_region
      %103 = vsyncadd [#allocation14], 0
      %s104 = sshll.u32 %s10, 4
      %s105 = int_to_ptr.hbm [resolvable:$true] %s104
      %s106 = sshll.u32 [#allocation15], 4
      %s107 = int_to_ptr.vmem [resolvable:$true] %s106
      %112 = dma.hbm_to_vmem [thread:$0]  %s105, 1024, %s107, [#allocation14], 64, 64, 4
    $region45: #{tpu_custom_call.1} parent=1 // pred_fallthru
      _
    // Predicated region
    $region46: #{tpu_custom_call.1} parent=1 // pred_check
      _
    $region47: #{tpu_custom_call.1} parent=1 // pred_check_branch
      %114 = sbr.rel (0) target = $region49
    $region48: #{tpu_custom_call.1} parent=1 // pred_region
      _
    $region49: #{tpu_custom_call.1} parent=1 // pred_fallthru
      _
    // Predicated region
    $region50: #{tpu_custom_call.1} parent=1 // pred_check
      _
    $region51: #{tpu_custom_call.1} parent=1 // pred_check_branch
      %116 = sbr.rel (0) target = $region53
    $region52: #{tpu_custom_call.1} parent=1 // pred_region
      _
    $region53: #{tpu_custom_call.1} parent=1 // pred_fallthru
      _
    // Predicated region
    $region54: #{tpu_custom_call.1} parent=1 // pred_check
      _
    $region55: #{tpu_custom_call.1} parent=1 // pred_check_branch
      %118 = sbr.rel (0) target = $region57
    $region56: #{tpu_custom_call.1} parent=1 // pred_region
      %120 = vsyncadd [#allocation17], 0
      %s121 = sshll.u32 %s13, 4
      %s122 = int_to_ptr.hbm [resolvable:$true] %s121
      %s123 = sshll.u32 [#allocation16], 4
      %s124 = int_to_ptr.vmem [resolvable:$true] %s123
      %129 = dma.hbm_to_vmem [thread:$0]  %s122, 1024, %s124, [#allocation17], 64, 64, 4
    $region57: #{tpu_custom_call.1} parent=1 // pred_fallthru
      _
    // Predicated region
    $region58: #{tpu_custom_call.1} parent=1 // pred_check
      _
    $region59: #{tpu_custom_call.1} parent=1 // pred_check_branch
      %131 = sbr.rel (0) target = $region61
    $region60: #{tpu_custom_call.1} parent=1 // pred_region
      _
    $region61: #{tpu_custom_call.1} parent=1 // pred_fallthru
      _
    // Predicated region
    $region62: #{tpu_custom_call.1} parent=1 // pred_check
      _
    $region63: #{tpu_custom_call.1} parent=1 // pred_check_branch
      %133 = sbr.rel (0) target = $region65
    $region64: #{tpu_custom_call.1} parent=1 // pred_region
      _
    $region65: #{tpu_custom_call.1} parent=1 // pred_fallthru
      _
    // Predicated region
    $region66: #{tpu_custom_call.1} parent=1 // pred_check
      _
    $region67: #{tpu_custom_call.1} parent=1 // pred_check_branch
      %135 = sbr.rel (0) target = $region69
    $region68: #{tpu_custom_call.1} parent=1 // pred_region
      %137 = vsyncadd [#allocation17], 0
      %s138 = sshll.u32 %s16, 4
      %s139 = int_to_ptr.hbm [resolvable:$true] %s138
      %s140 = sshll.u32 [#allocation18], 4
      %s141 = int_to_ptr.vmem [resolvable:$true] %s140
      %146 = dma.hbm_to_vmem [thread:$0]  %s139, 9216, %s141, [#allocation17], 64, 64, 4
    $region69: #{tpu_custom_call.1} parent=1 // pred_fallthru
      _
    // Predicated region
    $region70: #{tpu_custom_call.1} parent=1 // pred_check
      _
    $region71: #{tpu_custom_call.1} parent=1 // pred_check_branch
      %148 = sbr.rel (0) target = $region73
    $region72: #{tpu_custom_call.1} parent=1 // pred_region
      _
    $region73: #{tpu_custom_call.1} parent=1 // pred_fallthru
      _
    // Predicated region
    $region74: #{tpu_custom_call.1} parent=1 // pred_check
      _
    $region75: #{tpu_custom_call.1} parent=1 // pred_check_branch
      %150 = sbr.rel (0) target = $region77
    $region76: #{tpu_custom_call.1} parent=1 // pred_region
      _
    $region77: #{tpu_custom_call.1} parent=1 // pred_fallthru
      _
    // Predicated region
    $region78: #{tpu_custom_call.1} parent=1 // pred_check
      _
    $region79: #{tpu_custom_call.1} parent=1 // pred_check_branch
      %152 = sbr.rel (0) target = $region81
    $region80: #{tpu_custom_call.1} parent=1 // pred_region
      %154 = vsyncadd [#allocation20], 0
      %s155 = sshll.u32 %s19, 4
      %s156 = int_to_ptr.hbm [resolvable:$true] %s155
      %s157 = sshll.u32 [#allocation19], 4
      %s158 = int_to_ptr.vmem [resolvable:$true] %s157
      %163 = dma.hbm_to_vmem [thread:$0]  %s156, 1024, %s158, [#allocation20], 64, 64, 4
    $region81: #{tpu_custom_call.1} parent=1 // pred_fallthru
      _
    // Predicated region
    $region82: #{tpu_custom_call.1} parent=1 // pred_check
      _
    $region83: #{tpu_custom_call.1} parent=1 // pred_check_branch
      %165 = sbr.rel (0) target = $region85
    $region84: #{tpu_custom_call.1} parent=1 // pred_region
      _
    $region85: #{tpu_custom_call.1} parent=1 // pred_fallthru
      _
    // Predicated region
    $region86: #{tpu_custom_call.1} parent=1 // pred_check
      _
    $region87: #{tpu_custom_call.1} parent=1 // pred_check_branch
      %167 = sbr.rel (0) target = $region89
    $region88: #{tpu_custom_call.1} parent=1 // pred_region
      _
    $region89: #{tpu_custom_call.1} parent=1 // pred_fallthru
      _
    // Predicated region
    $region90: #{tpu_custom_call.1} parent=1 // pred_check
      _
    $region91: #{tpu_custom_call.1} parent=1 // pred_check_branch
      %169 = sbr.rel (0) target = $region93
    $region92: #{tpu_custom_call.1} parent=1 // pred_region
      %171 = vsyncadd [#allocation20], 0
      %s172 = sshll.u32 %s22, 4
      %s173 = int_to_ptr.hbm [resolvable:$true] %s172
      %s174 = sshll.u32 [#allocation21], 4
      %s175 = int_to_ptr.vmem [resolvable:$true] %s174
      %180 = dma.hbm_to_vmem [thread:$0]  %s173, 1024, %s175, [#allocation20], 64, 64, 4
    $region93: #{tpu_custom_call.1} parent=1 // pred_fallthru
      _
    // Predicated region
    $region94: #{tpu_custom_call.1} parent=1 // pred_check
      _
    $region95: #{tpu_custom_call.1} parent=1 // pred_check_branch
      %182 = sbr.rel (0) target = $region97
    $region96: #{tpu_custom_call.1} parent=1 // pred_region
      _
    $region97: #{tpu_custom_call.1} parent=1 // pred_fallthru
      _
    // Predicated region
    $region98: #{tpu_custom_call.1} parent=1 // pred_check
      _
    $region99: #{tpu_custom_call.1} parent=1 // pred_check_branch
      %184 = sbr.rel (0) target = $region101
    $region100: #{tpu_custom_call.1} parent=1 // pred_region
      _
    $region101: #{tpu_custom_call.1} parent=1 // pred_fallthru
      _
    // Predicated region
    $region102: #{tpu_custom_call.1} parent=1 // pred_check
      _
    $region103: #{tpu_custom_call.1} parent=1 // pred_check_branch
      %186 = sbr.rel (0) target = $region105
    $region104: #{tpu_custom_call.1} parent=1 // pred_region
      %188 = dma.done [#allocation8], 2048
    $region105: #{tpu_custom_call.1} parent=1 // pred_fallthru
      _
    // Predicated region
    $region106: #{tpu_custom_call.1} parent=1 // pred_check
      _
    $region107: #{tpu_custom_call.1} parent=1 // pred_check_branch
      %190 = sbr.rel (0) target = $region109
    $region108: #{tpu_custom_call.1} parent=1 // pred_region
      %192 = dma.done [#allocation11], 1024
    $region109: #{tpu_custom_call.1} parent=1 // pred_fallthru
      _
    // Predicated region
    $region110: #{tpu_custom_call.1} parent=1 // pred_check
      _
    $region111: #{tpu_custom_call.1} parent=1 // pred_check_branch
      %194 = sbr.rel (0) target = $region113
    $region112: #{tpu_custom_call.1} parent=1 // pred_region
      %196 = dma.done [#allocation11], 9216
    $region113: #{tpu_custom_call.1} parent=1 // pred_fallthru
      _
    // Predicated region
    $region114: #{tpu_custom_call.1} parent=1 // pred_check
      _
    $region115: #{tpu_custom_call.1} parent=1 // pred_check_branch
      %198 = sbr.rel (0) target = $region117
    $region116: #{tpu_custom_call.1} parent=1 // pred_region
      %200 = dma.done [#allocation14], 1024
    $region117: #{tpu_custom_call.1} parent=1 // pred_fallthru
      _
    // Predicated region
    $region118: #{tpu_custom_call.1} parent=1 // pred_check
      _
    $region119: #{tpu_custom_call.1} parent=1 // pred_check_branch
      %202 = sbr.rel (0) target = $region121
    $region120: #{tpu_custom_call.1} parent=1 // pred_region
      %204 = dma.done [#allocation14], 1024
    $region121: #{tpu_custom_call.1} parent=1 // pred_fallthru
      _
    // Predicated region
    $region122: #{tpu_custom_call.1} parent=1 // pred_check
      _
    $region123: #{tpu_custom_call.1} parent=1 // pred_check_branch
      %206 = sbr.rel (0) target = $region125
    $region124: #{tpu_custom_call.1} parent=1 // pred_region
      %208 = dma.done [#allocation17], 1024
    $region125: #{tpu_custom_call.1} parent=1 // pred_fallthru
      _
    // Predicated region
    $region126: #{tpu_custom_call.1} parent=1 // pred_check
      _
    $region127: #{tpu_custom_call.1} parent=1 // pred_check_branch
      %210 = sbr.rel (0) target = $region129
    $region128: #{tpu_custom_call.1} parent=1 // pred_region
      %212 = dma.done [#allocation17], 9216
    $region129: #{tpu_custom_call.1} parent=1 // pred_fallthru
      _
    // Predicated region
    $region130: #{tpu_custom_call.1} parent=1 // pred_check
      _
    $region131: #{tpu_custom_call.1} parent=1 // pred_check_branch
      %214 = sbr.rel (0) target = $region133
    $region132: #{tpu_custom_call.1} parent=1 // pred_region
      %216 = dma.done [#allocation20], 1024
    $region133: #{tpu_custom_call.1} parent=1 // pred_fallthru
      _
    // Predicated region
    $region134: #{tpu_custom_call.1} parent=1 // pred_check
      _
    $region135: #{tpu_custom_call.1} parent=1 // pred_check_branch
      %218 = sbr.rel (0) target = $region137
    $region136: #{tpu_custom_call.1} parent=1 // pred_region
      %220 = dma.done [#allocation20], 1024
    $region137: #{tpu_custom_call.1} parent=1 // pred_fallthru
      _
    %v221 = vld [vmem:[#allocation7] sm:$0xff]
    %v222 = vld [vmem:[#allocation7 + $0x8] sm:$0xff]
    %v223 = vld [vmem:[#allocation7 + $0x10] sm:$0xff]
    %v224 = vld [vmem:[#allocation7 + $0x18] sm:$0xff]
    %v225 = vld [vmem:[#allocation7 + $0x20] sm:$0xff]
    %v226 = vld [vmem:[#allocation7 + $0x28] sm:$0xff]
    %v227 = vld [vmem:[#allocation7 + $0x30] sm:$0xff]
    %v228 = vld [vmem:[#allocation7 + $0x38] sm:$0xff]
    %v229 = vld [vmem:[#allocation7 + $0x40] sm:$0xff]
    %v230 = vld [vmem:[#allocation7 + $0x48] sm:$0xff]
    %v231 = vld [vmem:[#allocation7 + $0x50] sm:$0xff]
    %v232 = vld [vmem:[#allocation7 + $0x58] sm:$0xff]
    %v233 = vld [vmem:[#allocation7 + $0x60] sm:$0xff]
    %v234 = vld [vmem:[#allocation7 + $0x68] sm:$0xff]
    %v235 = vld [vmem:[#allocation7 + $0x70] sm:$0xff]
    %v236 = vld [vmem:[#allocation7 + $0x78] sm:$0xff]
    %v237 = vpack.c.bf16 %v222, %v221
    %v238 = vpack.c.bf16 %v224, %v223
    %v239 = vpack.c.bf16 %v226, %v225
    %v240 = vpack.c.bf16 %v228, %v227
    %v241 = vpack.c.bf16 %v230, %v229
    %v242 = vpack.c.bf16 %v232, %v231
    %v243 = vpack.c.bf16 %v234, %v233
    %v244 = vpack.c.bf16 %v236, %v235
    %v245 = vld [vmem:[#allocation10] sm:$0xf]
    %v246 = vld [vmem:[#allocation10 + $0x4] sm:$0xf]
    %v247 = vld [vmem:[#allocation10 + $0x8] sm:$0xf]
    %v248 = vld [vmem:[#allocation10 + $0xc] sm:$0xf]
    %v249 = vld [vmem:[#allocation10 + $0x10] sm:$0xf]
    %v250 = vld [vmem:[#allocation10 + $0x14] sm:$0xf]
    %v251 = vld [vmem:[#allocation10 + $0x18] sm:$0xf]
    %v252 = vld [vmem:[#allocation10 + $0x1c] sm:$0xf]
    %v253 = vld [vmem:[#allocation10 + $0x20] sm:$0xf]
    %v254 = vld [vmem:[#allocation10 + $0x24] sm:$0xf]
    %v255 = vld [vmem:[#allocation10 + $0x28] sm:$0xf]
    %v256 = vld [vmem:[#allocation10 + $0x2c] sm:$0xf]
    %v257 = vld [vmem:[#allocation10 + $0x30] sm:$0xf]
    %v258 = vld [vmem:[#allocation10 + $0x34] sm:$0xf]
    %v259 = vld [vmem:[#allocation10 + $0x38] sm:$0xf]
    %v260 = vld [vmem:[#allocation10 + $0x3c] sm:$0xf]
    %v277 = vunpack.c.l.b16 %v245
    %v278 = vunpack.c.l.b16 %v246
    %v279 = vunpack.c.l.b16 %v247
    %v280 = vunpack.c.l.b16 %v248
    %v281 = vunpack.c.l.b16 %v249
    %v282 = vunpack.c.l.b16 %v250
    %v283 = vunpack.c.l.b16 %v251
    %v284 = vunpack.c.l.b16 %v252
    %v285 = vunpack.c.l.b16 %v253
    %v286 = vunpack.c.l.b16 %v254
    %v287 = vunpack.c.l.b16 %v255
    %v288 = vunpack.c.l.b16 %v256
    %v289 = vunpack.c.l.b16 %v257
    %v290 = vunpack.c.l.b16 %v258
    %v291 = vunpack.c.l.b16 %v259
    %v292 = vunpack.c.l.b16 %v260
    %v293 = vpack.c.b16 %v278, %v277
    %v294 = vpack.c.b16 %v280, %v279
    %v295 = vpack.c.b16 %v282, %v281
    %v296 = vpack.c.b16 %v284, %v283
    %v297 = vpack.c.b16 %v286, %v285
    %v298 = vpack.c.b16 %v288, %v287
    %v299 = vpack.c.b16 %v290, %v289
    %v300 = vpack.c.b16 %v292, %v291
    %309 = vmatpush.bf16.msra.mxu0 %v300
    %310 = vmatpush.bf16.msra.mxu0 %v299
    %311 = vmatpush.bf16.msra.mxu0 %v298
    %312 = vmatpush.bf16.msra.mxu0 %v297
    %313 = vmatpush.bf16.msra.mxu0 %v296
    %314 = vmatpush.bf16.msra.mxu0 %v295
    %315 = vmatpush.bf16.msra.mxu0 %v294
    %316 = vmatpush.bf16.msra.mxu0 %v293
    %317 = vmatmul.bf16.gmra.mxu0 %v237
    %v318 = vpop.f32.mrf.mxu0
    %v319 = vadd.f32 0.0, %v318
    %v320 = vpop.f32.mrf.mxu0
    %v321 = vadd.f32 0.0, %v320
    %322 = vmatmul.bf16.gmra.mxu0 %v238
    %v323 = vpop.f32.mrf.mxu0
    %v324 = vadd.f32 0.0, %v323
    %v325 = vpop.f32.mrf.mxu0
    %v326 = vadd.f32 0.0, %v325
    %327 = vmatmul.bf16.gmra.mxu0 %v239
    %v328 = vpop.f32.mrf.mxu0
    %v329 = vadd.f32 0.0, %v328
    %v330 = vpop.f32.mrf.mxu0
    %v331 = vadd.f32 0.0, %v330
    %332 = vmatmul.bf16.gmra.mxu0 %v240
    %v333 = vpop.f32.mrf.mxu0
    %v334 = vadd.f32 0.0, %v333
    %v335 = vpop.f32.mrf.mxu0
    %v336 = vadd.f32 0.0, %v335
    %337 = vmatmul.bf16.gmra.mxu0 %v241
    %v338 = vpop.f32.mrf.mxu0
    %v339 = vadd.f32 0.0, %v338
    %v340 = vpop.f32.mrf.mxu0
    %v341 = vadd.f32 0.0, %v340
    %342 = vmatmul.bf16.gmra.mxu0 %v242
    %v343 = vpop.f32.mrf.mxu0
    %v344 = vadd.f32 0.0, %v343
    %v345 = vpop.f32.mrf.mxu0
    %v346 = vadd.f32 0.0, %v345
    %347 = vmatmul.bf16.gmra.mxu0 %v243
    %v348 = vpop.f32.mrf.mxu0
    %v349 = vadd.f32 0.0, %v348
    %v350 = vpop.f32.mrf.mxu0
    %v351 = vadd.f32 0.0, %v350
    %352 = vmatmul.bf16.gmra.mxu0 %v244
    %v353 = vpop.f32.mrf.mxu0
    %v354 = vadd.f32 0.0, %v353
    %v355 = vpop.f32.mrf.mxu0
    %v356 = vadd.f32 0.0, %v355
    %357 = vdwg.mxu0
    %v358 = vld [vmem:[%s2] sm:$0x1]
    %v359 = vld [vmem:[%s3] sm:$0x1]
    %v360 = vadd.f32 %v319, %v321
    %v361 = vadd.f32 %v360, %v324
    %v362 = vadd.f32 %v361, %v326
    %v363 = vadd.f32 %v362, %v329
    %v364 = vadd.f32 %v363, %v331
    %v365 = vadd.f32 %v364, %v334
    %v366 = vadd.f32 %v365, %v336
    %v367 = vadd.f32 %v366, %v339
    %v368 = vadd.f32 %v367, %v341
    %v369 = vadd.f32 %v368, %v344
    %v370 = vadd.f32 %v369, %v346
    %v371 = vadd.f32 %v370, %v349
    %v372 = vadd.f32 %v371, %v351
    %v373 = vadd.f32 %v372, %v354
    %v374 = vadd.f32 %v373, %v356
    %v375 = vrot.slane %v374, 4
    %v376 = vadd.f32 %v374, %v375
    %v377 = vrot.slane %v376, 2
    %v378 = vadd.f32 %v376, %v377
    %v379 = vrot.slane %v378, 1
    %v380 = vadd.f32 %v378, %v379
    %v381 = vmul.f32 %v380, 0.0078125
    %v382 = vmul.f32 %v319, %v319
    %v383 = vmul.f32 %v321, %v321
    %v384 = vmul.f32 %v324, %v324
    %v385 = vmul.f32 %v326, %v326
    %v386 = vmul.f32 %v329, %v329
    %v387 = vmul.f32 %v331, %v331
    %v388 = vmul.f32 %v334, %v334
    %v389 = vmul.f32 %v336, %v336
    %v390 = vmul.f32 %v339, %v339
    %v391 = vmul.f32 %v341, %v341
    %v392 = vmul.f32 %v344, %v344
    %v393 = vmul.f32 %v346, %v346
    %v394 = vmul.f32 %v349, %v349
    %v395 = vmul.f32 %v351, %v351
    %v396 = vmul.f32 %v354, %v354
    %v397 = vmul.f32 %v356, %v356
    %v398 = vadd.f32 %v382, %v383
    %v399 = vadd.f32 %v398, %v384
    %v400 = vadd.f32 %v399, %v385
    %v401 = vadd.f32 %v400, %v386
    %v402 = vadd.f32 %v401, %v387
    %v403 = vadd.f32 %v402, %v388
    %v404 = vadd.f32 %v403, %v389
    %v405 = vadd.f32 %v404, %v390
    %v406 = vadd.f32 %v405, %v391
    %v407 = vadd.f32 %v406, %v392
    %v408 = vadd.f32 %v407, %v393
    %v409 = vadd.f32 %v408, %v394
    %v410 = vadd.f32 %v409, %v395
    %v411 = vadd.f32 %v410, %v396
    %v412 = vadd.f32 %v411, %v397
    %v413 = vrot.slane %v412, 4
    %v414 = vadd.f32 %v412, %v413
    %v415 = vrot.slane %v414, 2
    %v416 = vadd.f32 %v414, %v415
    %v417 = vrot.slane %v416, 1
    %v418 = vadd.f32 %v416, %v417
    %v419 = vmul.f32 %v418, 0.0078125
    %v420 = vmul.f32 %v381, %v381
    %v421 = vsub.f32 %v419, %v420
    %v422 = vmax.f32 %v421, 0.0
    %v423 = vadd.f32 %v422, 1e-05
    %v424 = vrsqrt.pop %v423
    %v425 = vmul.f32 %v424, %v423
    %v426 = vmul.f32 %v425, %v424
    %v427 = vmul.f32 0.5, %v426
    %v428 = vsub.f32 1.5, %v427
    %v429 = vmul.f32 %v424, %v428
    %vm430 = vweird.f32 %v423
    %vm431 = vweird.f32 %v424
    %vm432 = vmor %vm430, %vm431
    %v433 = vsel %vm432, %v424, %v429
    %v434 = vmul.f32 %v358, %v433
    %v435 = vmul.f32 %v381, %v434
    %v436 = vsub.f32 %v359, %v435
    %v438 = vperm.slane %v434, 0
    %v440 = vmul.f32 %v319, %v438
    %v441 = vmul.f32 %v321, %v438
    %v442 = vmul.f32 %v324, %v438
    %v443 = vmul.f32 %v326, %v438
    %v444 = vmul.f32 %v329, %v438
    %v445 = vmul.f32 %v331, %v438
    %v446 = vmul.f32 %v334, %v438
    %v447 = vmul.f32 %v336, %v438
    %v448 = vmul.f32 %v339, %v438
    %v449 = vmul.f32 %v341, %v438
    %v450 = vmul.f32 %v344, %v438
    %v451 = vmul.f32 %v346, %v438
    %v452 = vmul.f32 %v349, %v438
    %v453 = vmul.f32 %v351, %v438
    %v454 = vmul.f32 %v354, %v438
    %v455 = vmul.f32 %v356, %v438
    %v457 = vperm.slane %v436, 0
    %v459 = vadd.f32 %v440, %v457
    %v460 = vadd.f32 %v441, %v457
    %v461 = vadd.f32 %v442, %v457
    %v462 = vadd.f32 %v443, %v457
    %v463 = vadd.f32 %v444, %v457
    %v464 = vadd.f32 %v445, %v457
    %v465 = vadd.f32 %v446, %v457
    %v466 = vadd.f32 %v447, %v457
    %v467 = vadd.f32 %v448, %v457
    %v468 = vadd.f32 %v449, %v457
    %v469 = vadd.f32 %v450, %v457
    %v470 = vadd.f32 %v451, %v457
    %v471 = vadd.f32 %v452, %v457
    %v472 = vadd.f32 %v453, %v457
    %v473 = vadd.f32 %v454, %v457
    %v474 = vadd.f32 %v455, %v457
    %v475 = vmax.f32 %v459, 0.0
    %v476 = vmax.f32 %v460, 0.0
    %v477 = vmax.f32 %v461, 0.0
    %v478 = vmax.f32 %v462, 0.0
    %v479 = vmax.f32 %v463, 0.0
    %v480 = vmax.f32 %v464, 0.0
    %v481 = vmax.f32 %v465, 0.0
    %v482 = vmax.f32 %v466, 0.0
    %v483 = vmax.f32 %v467, 0.0
    %v484 = vmax.f32 %v468, 0.0
    %v485 = vmax.f32 %v469, 0.0
    %v486 = vmax.f32 %v470, 0.0
    %v487 = vmax.f32 %v471, 0.0
    %v488 = vmax.f32 %v472, 0.0
    %v489 = vmax.f32 %v473, 0.0
    %v490 = vmax.f32 %v474, 0.0
    %491 = vst [vmem:[#allocation2] sm:$0xff] 0.0
    %492 = vst [vmem:[#allocation2 + $0x8] sm:$0xff] 0.0
    %493 = vst [vmem:[#allocation2 + $0x10] sm:$0xff] 0.0
    %494 = vst [vmem:[#allocation2 + $0x18] sm:$0xff] 0.0
    %495 = vst [vmem:[#allocation2 + $0x20] sm:$0xff] 0.0
    %496 = vst [vmem:[#allocation2 + $0x28] sm:$0xff] 0.0
    %497 = vst [vmem:[#allocation2 + $0x30] sm:$0xff] 0.0
    %498 = vst [vmem:[#allocation2 + $0x38] sm:$0xff] 0.0
    %499 = vst [vmem:[#allocation2 + $0x40] sm:$0xff] 0.0
    %500 = vst [vmem:[#allocation2 + $0x48] sm:$0xff] 0.0
    %501 = vst [vmem:[#allocation2 + $0x50] sm:$0xff] 0.0
    %502 = vst [vmem:[#allocation2 + $0x58] sm:$0xff] 0.0
    %503 = vst [vmem:[#allocation2 + $0x60] sm:$0xff] 0.0
    %504 = vst [vmem:[#allocation2 + $0x68] sm:$0xff] 0.0
    %505 = vst [vmem:[#allocation2 + $0x70] sm:$0xff] 0.0
    %506 = vst [vmem:[#allocation2 + $0x78] sm:$0xff] 0.0
    %507 = vst [vmem:[#allocation2 + $0x80] sm:$0xff] 0.0
    %508 = vst [vmem:[#allocation2 + $0x88] sm:$0xff] 0.0
    %509 = vst [vmem:[#allocation2 + $0x90] sm:$0xff] 0.0
    %510 = vst [vmem:[#allocation2 + $0x98] sm:$0xff] 0.0
    %511 = vst [vmem:[#allocation2 + $0xa0] sm:$0xff] 0.0
    %512 = vst [vmem:[#allocation2 + $0xa8] sm:$0xff] 0.0
    %513 = vst [vmem:[#allocation2 + $0xb0] sm:$0xff] 0.0
    %514 = vst [vmem:[#allocation2 + $0xb8] sm:$0xff] 0.0
    %515 = vst [vmem:[#allocation2 + $0xc0] sm:$0xff] 0.0
    %516 = vst [vmem:[#allocation2 + $0xb] sm:$0xff] %v475
    %517 = vst [vmem:[#allocation2 + $0x15] sm:$0xff] %v476
    %518 = vst [vmem:[#allocation2 + $0x1f] sm:$0xff] %v477
    %519 = vst [vmem:[#allocation2 + $0x29] sm:$0xff] %v478
    %520 = vst [vmem:[#allocation2 + $0x33] sm:$0xff] %v479
    %521 = vst [vmem:[#allocation2 + $0x3d] sm:$0xff] %v480
    %522 = vst [vmem:[#allocation2 + $0x47] sm:$0xff] %v481
    %523 = vst [vmem:[#allocation2 + $0x51] sm:$0xff] %v482
    %524 = vst [vmem:[#allocation2 + $0x6f] sm:$0xff] %v483
    %525 = vst [vmem:[#allocation2 + $0x79] sm:$0xff] %v484
    %526 = vst [vmem:[#allocation2 + $0x83] sm:$0xff] %v485
    %527 = vst [vmem:[#allocation2 + $0x8d] sm:$0xff] %v486
    %528 = vst [vmem:[#allocation2 + $0x97] sm:$0xff] %v487
    %529 = vst [vmem:[#allocation2 + $0xa1] sm:$0xff] %v488
    %530 = vst [vmem:[#allocation2 + $0xab] sm:$0xff] %v489
    %531 = vst [vmem:[#allocation2 + $0xb5] sm:$0xff] %v490
    %v532 = vld [vmem:[#allocation2] ss:$2 sm:$0xf]
    %533 = vst [vmem:[#allocation3] sm:$0xf] %v532
    %s534 = scalar_lea.vmem [#allocation2], 1
    %v535 = vld [vmem:[%s534] ss:$2 sm:$0xf]
    %536 = vst [vmem:[#allocation3 + $0x8] sm:$0xf] %v535
    %s537 = scalar_lea.vmem [#allocation2], 2
    %v538 = vld [vmem:[%s537] ss:$2 sm:$0xf]
    %539 = vst [vmem:[#allocation3 + $0x10] sm:$0xf] %v538
    %s540 = scalar_lea.vmem [#allocation2], 10
    %v541 = vld [vmem:[%s540] ss:$2 sm:$0xf]
    %542 = vst [vmem:[#allocation3 + $0x18] sm:$0xf] %v541
    %s543 = scalar_lea.vmem [#allocation2], 11
    %v544 = vld [vmem:[%s543] ss:$2 sm:$0xf]
    %545 = vst [vmem:[#allocation3 + $0x20] sm:$0xf] %v544
    %s546 = scalar_lea.vmem [#allocation2], 12
    %v547 = vld [vmem:[%s546] ss:$2 sm:$0xf]
    %548 = vst [vmem:[#allocation3 + $0x28] sm:$0xf] %v547
    %s549 = scalar_lea.vmem [#allocation2], 20
    %v550 = vld [vmem:[%s549] ss:$2 sm:$0xf]
    %551 = vst [vmem:[#allocation3 + $0x30] sm:$0xf] %v550
    %s552 = scalar_lea.vmem [#allocation2], 21
    %v553 = vld [vmem:[%s552] ss:$2 sm:$0xf]
    %554 = vst [vmem:[#allocation3 + $0x38] sm:$0xf] %v553
    %s555 = scalar_lea.vmem [#allocation2], 22
    %v556 = vld [vmem:[%s555] ss:$2 sm:$0xf]
    %557 = vst [vmem:[#allocation3 + $0x40] sm:$0xf] %v556
    %v558 = vld [vmem:[%s549] ss:$2 sm:$0xf]
    %v560 = vrot.slane %v558, 4
    %562 = vst [vmem:[#allocation3] sm:$0xf0] %v560
    %v563 = vld [vmem:[%s552] ss:$2 sm:$0xf]
    %v565 = vrot.slane %v563, 4
    %567 = vst [vmem:[#allocation3 + $0x8] sm:$0xf0] %v565
    %v568 = vld [vmem:[%s555] ss:$2 sm:$0xf]
    %v570 = vrot.slane %v568, 4
    %572 = vst [vmem:[#allocation3 + $0x10] sm:$0xf0] %v570
    %s573 = scalar_lea.vmem [#allocation2], 30
    %v574 = vld [vmem:[%s573] ss:$2 sm:$0xf]
    %v576 = vrot.slane %v574, 4
    %578 = vst [vmem:[#allocation3 + $0x18] sm:$0xf0] %v576
    %s579 = scalar_lea.vmem [#allocation2], 31
    %v580 = vld [vmem:[%s579] ss:$2 sm:$0xf]
    %v582 = vrot.slane %v580, 4
    %584 = vst [vmem:[#allocation3 + $0x20] sm:$0xf0] %v582
    %s585 = scalar_lea.vmem [#allocation2], 32
    %v586 = vld [vmem:[%s585] ss:$2 sm:$0xf]
    %v588 = vrot.slane %v586, 4
    %590 = vst [vmem:[#allocation3 + $0x28] sm:$0xf0] %v588
    %s591 = scalar_lea.vmem [#allocation2], 40
    %v592 = vld [vmem:[%s591] ss:$2 sm:$0xf]
    %v594 = vrot.slane %v592, 4
    %596 = vst [vmem:[#allocation3 + $0x30] sm:$0xf0] %v594
    %s597 = scalar_lea.vmem [#allocation2], 41
    %v598 = vld [vmem:[%s597] ss:$2 sm:$0xf]
    %v600 = vrot.slane %v598, 4
    %602 = vst [vmem:[#allocation3 + $0x38] sm:$0xf0] %v600
    %s603 = scalar_lea.vmem [#allocation2], 42
    %v604 = vld [vmem:[%s603] ss:$2 sm:$0xf]
    %v606 = vrot.slane %v604, 4
    %608 = vst [vmem:[#allocation3 + $0x40] sm:$0xf0] %v606
    %v609 = vld [vmem:[%s591] ss:$2 sm:$0xf]
    %610 = vst [vmem:[#allocation3 + $0x48] sm:$0xf] %v609
    %v611 = vld [vmem:[%s597] ss:$2 sm:$0xf]
    %612 = vst [vmem:[#allocation3 + $0x50] sm:$0xf] %v611
    %v613 = vld [vmem:[%s603] ss:$2 sm:$0xf]
    %614 = vst [vmem:[#allocation3 + $0x58] sm:$0xf] %v613
    %s615 = scalar_lea.vmem [#allocation2], 50
    %v616 = vld [vmem:[%s615] ss:$2 sm:$0xf]
    %617 = vst [vmem:[#allocation3 + $0x60] sm:$0xf] %v616
    %s618 = scalar_lea.vmem [#allocation2], 51
    %v619 = vld [vmem:[%s618] ss:$2 sm:$0xf]
    %620 = vst [vmem:[#allocation3 + $0x68] sm:$0xf] %v619
    %s621 = scalar_lea.vmem [#allocation2], 52
    %v622 = vld [vmem:[%s621] ss:$2 sm:$0xf]
    %623 = vst [vmem:[#allocation3 + $0x70] sm:$0xf] %v622
    %s624 = scalar_lea.vmem [#allocation2], 60
    %v625 = vld [vmem:[%s624] ss:$2 sm:$0xf]
    %626 = vst [vmem:[#allocation3 + $0x78] sm:$0xf] %v625
    %s627 = scalar_lea.vmem [#allocation2], 61
    %v628 = vld [vmem:[%s627] ss:$2 sm:$0xf]
    %629 = vst [vmem:[#allocation3 + $0x80] sm:$0xf] %v628
    %s630 = scalar_lea.vmem [#allocation2], 62
    %v631 = vld [vmem:[%s630] ss:$2 sm:$0xf]
    %632 = vst [vmem:[#allocation3 + $0x88] sm:$0xf] %v631
    %v633 = vld [vmem:[%s624] ss:$2 sm:$0xf]
    %v635 = vrot.slane %v633, 4
    %637 = vst [vmem:[#allocation3 + $0x48] sm:$0xf0] %v635
    %v638 = vld [vmem:[%s627] ss:$2 sm:$0xf]
    %v640 = vrot.slane %v638, 4
    %642 = vst [vmem:[#allocation3 + $0x50] sm:$0xf0] %v640
    %v643 = vld [vmem:[%s630] ss:$2 sm:$0xf]
    %v645 = vrot.slane %v643, 4
    %647 = vst [vmem:[#allocation3 + $0x58] sm:$0xf0] %v645
    %s648 = scalar_lea.vmem [#allocation2], 70
    %v649 = vld [vmem:[%s648] ss:$2 sm:$0xf]
    %v651 = vrot.slane %v649, 4
    %653 = vst [vmem:[#allocation3 + $0x60] sm:$0xf0] %v651
    %s654 = scalar_lea.vmem [#allocation2], 71
    %v655 = vld [vmem:[%s654] ss:$2 sm:$0xf]
    %v657 = vrot.slane %v655, 4
    %659 = vst [vmem:[#allocation3 + $0x68] sm:$0xf0] %v657
    %s660 = scalar_lea.vmem [#allocation2], 72
    %v661 = vld [vmem:[%s660] ss:$2 sm:$0xf]
    %v663 = vrot.slane %v661, 4
    %665 = vst [vmem:[#allocation3 + $0x70] sm:$0xf0] %v663
    %s666 = scalar_lea.vmem [#allocation2], 80
    %v667 = vld [vmem:[%s666] ss:$2 sm:$0xf]
    %v669 = vrot.slane %v667, 4
    %671 = vst [vmem:[#allocation3 + $0x78] sm:$0xf0] %v669
    %s672 = scalar_lea.vmem [#allocation2], 81
    %v673 = vld [vmem:[%s672] ss:$2 sm:$0xf]
    %v675 = vrot.slane %v673, 4
    %677 = vst [vmem:[#allocation3 + $0x80] sm:$0xf0] %v675
    %s678 = scalar_lea.vmem [#allocation2], 82
    %v679 = vld [vmem:[%s678] ss:$2 sm:$0xf]
    %v681 = vrot.slane %v679, 4
    %683 = vst [vmem:[#allocation3 + $0x88] sm:$0xf0] %v681
    %s684 = scalar_lea.vmem [#allocation2], 100
    %v685 = vld [vmem:[%s684] ss:$2 sm:$0xf]
    %686 = vst [vmem:[#allocation3 + $0x90] sm:$0xf] %v685
    %s687 = scalar_lea.vmem [#allocation2], 101
    %v688 = vld [vmem:[%s687] ss:$2 sm:$0xf]
    %689 = vst [vmem:[#allocation3 + $0x98] sm:$0xf] %v688
    %s690 = scalar_lea.vmem [#allocation2], 102
    %v691 = vld [vmem:[%s690] ss:$2 sm:$0xf]
    %692 = vst [vmem:[#allocation3 + $0xa0] sm:$0xf] %v691
    %s693 = scalar_lea.vmem [#allocation2], 110
    %v694 = vld [vmem:[%s693] ss:$2 sm:$0xf]
    %695 = vst [vmem:[#allocation3 + $0xa8] sm:$0xf] %v694
    %s696 = scalar_lea.vmem [#allocation2], 111
    %v697 = vld [vmem:[%s696] ss:$2 sm:$0xf]
    %698 = vst [vmem:[#allocation3 + $0xb0] sm:$0xf] %v697
    %s699 = scalar_lea.vmem [#allocation2], 112
    %v700 = vld [vmem:[%s699] ss:$2 sm:$0xf]
    %701 = vst [vmem:[#allocation3 + $0xb8] sm:$0xf] %v700
    %s702 = scalar_lea.vmem [#allocation2], 120
    %v703 = vld [vmem:[%s702] ss:$2 sm:$0xf]
    %704 = vst [vmem:[#allocation3 + $0xc0] sm:$0xf] %v703
    %s705 = scalar_lea.vmem [#allocation2], 121
    %v706 = vld [vmem:[%s705] ss:$2 sm:$0xf]
    %707 = vst [vmem:[#allocation3 + $0xc8] sm:$0xf] %v706
    %s708 = scalar_lea.vmem [#allocation2], 122
    %v709 = vld [vmem:[%s708] ss:$2 sm:$0xf]
    %710 = vst [vmem:[#allocation3 + $0xd0] sm:$0xf] %v709
    %v711 = vld [vmem:[%s702] ss:$2 sm:$0xf]
    %v713 = vrot.slane %v711, 4
    %715 = vst [vmem:[#allocation3 + $0x90] sm:$0xf0] %v713
    %v716 = vld [vmem:[%s705] ss:$2 sm:$0xf]
    %v718 = vrot.slane %v716, 4
    %720 = vst [vmem:[#allocation3 + $0x98] sm:$0xf0] %v718
    %v721 = vld [vmem:[%s708] ss:$2 sm:$0xf]
    %v723 = vrot.slane %v721, 4
    %725 = vst [vmem:[#allocation3 + $0xa0] sm:$0xf0] %v723
    %s726 = scalar_lea.vmem [#allocation2], 130
    %v727 = vld [vmem:[%s726] ss:$2 sm:$0xf]
    %v729 = vrot.slane %v727, 4
    %731 = vst [vmem:[#allocation3 + $0xa8] sm:$0xf0] %v729
    %s732 = scalar_lea.vmem [#allocation2], 131
    %v733 = vld [vmem:[%s732] ss:$2 sm:$0xf]
    %v735 = vrot.slane %v733, 4
    %737 = vst [vmem:[#allocation3 + $0xb0] sm:$0xf0] %v735
    %s738 = scalar_lea.vmem [#allocation2], 132
    %v739 = vld [vmem:[%s738] ss:$2 sm:$0xf]
    %v741 = vrot.slane %v739, 4
    %743 = vst [vmem:[#allocation3 + $0xb8] sm:$0xf0] %v741
    %s744 = scalar_lea.vmem [#allocation2], 140
    %v745 = vld [vmem:[%s744] ss:$2 sm:$0xf]
    %v747 = vrot.slane %v745, 4
    %749 = vst [vmem:[#allocation3 + $0xc0] sm:$0xf0] %v747
    %s750 = scalar_lea.vmem [#allocation2], 141
    %v751 = vld [vmem:[%s750] ss:$2 sm:$0xf]
    %v753 = vrot.slane %v751, 4
    %755 = vst [vmem:[#allocation3 + $0xc8] sm:$0xf0] %v753
    %s756 = scalar_lea.vmem [#allocation2], 142
    %v757 = vld [vmem:[%s756] ss:$2 sm:$0xf]
    %v759 = vrot.slane %v757, 4
    %761 = vst [vmem:[#allocation3 + $0xd0] sm:$0xf0] %v759
    %v762 = vld [vmem:[%s744] ss:$2 sm:$0xf]
    %763 = vst [vmem:[#allocation3 + $0xd8] sm:$0xf] %v762
    %v764 = vld [vmem:[%s750] ss:$2 sm:$0xf]
    %765 = vst [vmem:[#allocation3 + $0xe0] sm:$0xf] %v764
    %v766 = vld [vmem:[%s756] ss:$2 sm:$0xf]
    %767 = vst [vmem:[#allocation3 + $0xe8] sm:$0xf] %v766
    %s768 = scalar_lea.vmem [#allocation2], 150
    %v769 = vld [vmem:[%s768] ss:$2 sm:$0xf]
    %770 = vst [vmem:[#allocation3 + $0xf0] sm:$0xf] %v769
    %s771 = scalar_lea.vmem [#allocation2], 151
    %v772 = vld [vmem:[%s771] ss:$2 sm:$0xf]
    %773 = vst [vmem:[#allocation3 + $0xf8] sm:$0xf] %v772
    %s774 = scalar_lea.vmem [#allocation2], 152
    %v775 = vld [vmem:[%s774] ss:$2 sm:$0xf]
    %776 = vst [vmem:[#allocation3 + $0x100] sm:$0xf] %v775
    %s777 = scalar_lea.vmem [#allocation2], 160
    %v778 = vld [vmem:[%s777] ss:$2 sm:$0xf]
    %779 = vst [vmem:[#allocation3 + $0x108] sm:$0xf] %v778
    %s780 = scalar_lea.vmem [#allocation2], 161
    %v781 = vld [vmem:[%s780] ss:$2 sm:$0xf]
    %782 = vst [vmem:[#allocation3 + $0x110] sm:$0xf] %v781
    %s783 = scalar_lea.vmem [#allocation2], 162
    %v784 = vld [vmem:[%s783] ss:$2 sm:$0xf]
    %785 = vst [vmem:[#allocation3 + $0x118] sm:$0xf] %v784
    %v786 = vld [vmem:[%s777] ss:$2 sm:$0xf]
    %v788 = vrot.slane %v786, 4
    %790 = vst [vmem:[#allocation3 + $0xd8] sm:$0xf0] %v788
    %v791 = vld [vmem:[%s780] ss:$2 sm:$0xf]
    %v793 = vrot.slane %v791, 4
    %795 = vst [vmem:[#allocation3 + $0xe0] sm:$0xf0] %v793
    %v796 = vld [vmem:[%s783] ss:$2 sm:$0xf]
    %v798 = vrot.slane %v796, 4
    %800 = vst [vmem:[#allocation3 + $0xe8] sm:$0xf0] %v798
    %s801 = scalar_lea.vmem [#allocation2], 170
    %v802 = vld [vmem:[%s801] ss:$2 sm:$0xf]
    %v804 = vrot.slane %v802, 4
    %806 = vst [vmem:[#allocation3 + $0xf0] sm:$0xf0] %v804
    %s807 = scalar_lea.vmem [#allocation2], 171
    %v808 = vld [vmem:[%s807] ss:$2 sm:$0xf]
    %v810 = vrot.slane %v808, 4
    %812 = vst [vmem:[#allocation3 + $0xf8] sm:$0xf0] %v810
    %s813 = scalar_lea.vmem [#allocation2], 172
    %v814 = vld [vmem:[%s813] ss:$2 sm:$0xf]
    %v816 = vrot.slane %v814, 4
    %818 = vst [vmem:[#allocation3 + $0x100] sm:$0xf0] %v816
    %s819 = scalar_lea.vmem [#allocation2], 180
    %v820 = vld [vmem:[%s819] ss:$2 sm:$0xf]
    %v822 = vrot.slane %v820, 4
    %824 = vst [vmem:[#allocation3 + $0x108] sm:$0xf0] %v822
    %s825 = scalar_lea.vmem [#allocation2], 181
    %v826 = vld [vmem:[%s825] ss:$2 sm:$0xf]
    %v828 = vrot.slane %v826, 4
    %830 = vst [vmem:[#allocation3 + $0x110] sm:$0xf0] %v828
    %s831 = scalar_lea.vmem [#allocation2], 182
    %v832 = vld [vmem:[%s831] ss:$2 sm:$0xf]
    %v834 = vrot.slane %v832, 4
    %836 = vst [vmem:[#allocation3 + $0x118] sm:$0xf0] %v834
    %v837 = vld [vmem:[#allocation3] sm:$0xff]
    %v838 = vld [vmem:[#allocation3 + $0x8] sm:$0xff]
    %v839 = vld [vmem:[#allocation3 + $0x10] sm:$0xff]
    %v840 = vld [vmem:[#allocation3 + $0x18] sm:$0xff]
    %v841 = vld [vmem:[#allocation3 + $0x20] sm:$0xff]
    %v842 = vld [vmem:[#allocation3 + $0x28] sm:$0xff]
    %v843 = vld [vmem:[#allocation3 + $0x30] sm:$0xff]
    %v844 = vld [vmem:[#allocation3 + $0x38] sm:$0xff]
    %v845 = vld [vmem:[#allocation3 + $0x40] sm:$0xff]
    %v846 = vld [vmem:[#allocation3 + $0x48] sm:$0xff]
    %v847 = vld [vmem:[#allocation3 + $0x50] sm:$0xff]
    %v848 = vld [vmem:[#allocation3 + $0x58] sm:$0xff]
    %v849 = vld [vmem:[#allocation3 + $0x60] sm:$0xff]
    %v850 = vld [vmem:[#allocation3 + $0x68] sm:$0xff]
    %v851 = vld [vmem:[#allocation3 + $0x70] sm:$0xff]
    %v852 = vld [vmem:[#allocation3 + $0x78] sm:$0xff]
    %v853 = vld [vmem:[#allocation3 + $0x80] sm:$0xff]
    %v854 = vld [vmem:[#allocation3 + $0x88] sm:$0xff]
    %v855 = vld [vmem:[#allocation3 + $0x90] sm:$0xff]
    %v856 = vld [vmem:[#allocation3 + $0x98] sm:$0xff]
    %v857 = vld [vmem:[#allocation3 + $0xa0] sm:$0xff]
    %v858 = vld [vmem:[#allocation3 + $0xa8] sm:$0xff]
    %v859 = vld [vmem:[#allocation3 + $0xb0] sm:$0xff]
    %v860 = vld [vmem:[#allocation3 + $0xb8] sm:$0xff]
    %v861 = vld [vmem:[#allocation3 + $0xc0] sm:$0xff]
    %v862 = vld [vmem:[#allocation3 + $0xc8] sm:$0xff]
    %v863 = vld [vmem:[#allocation3 + $0xd0] sm:$0xff]
    %v864 = vld [vmem:[#allocation3 + $0xd8] sm:$0xff]
    %v865 = vld [vmem:[#allocation3 + $0xe0] sm:$0xff]
    %v866 = vld [vmem:[#allocation3 + $0xe8] sm:$0xff]
    %v867 = vld [vmem:[#allocation3 + $0xf0] sm:$0xff]
    %v868 = vld [vmem:[#allocation3 + $0xf8] sm:$0xff]
    %v869 = vld [vmem:[#allocation3 + $0x100] sm:$0xff]
    %v870 = vld [vmem:[#allocation3 + $0x108] sm:$0xff]
    %v871 = vld [vmem:[#allocation3 + $0x110] sm:$0xff]
    %v872 = vld [vmem:[#allocation3 + $0x118] sm:$0xff]
    %v873 = vpack.c.bf16 %v846, %v837
    %v874 = vpack.c.bf16 %v847, %v838
    %v875 = vpack.c.bf16 %v848, %v839
    %v876 = vpack.c.bf16 %v849, %v840
    %v877 = vpack.c.bf16 %v850, %v841
    %v878 = vpack.c.bf16 %v851, %v842
    %v879 = vpack.c.bf16 %v852, %v843
    %v880 = vpack.c.bf16 %v853, %v844
    %v881 = vpack.c.bf16 %v854, %v845
    %v882 = vpack.c.bf16 %v864, %v855
    %v883 = vpack.c.bf16 %v865, %v856
    %v884 = vpack.c.bf16 %v866, %v857
    %v885 = vpack.c.bf16 %v867, %v858
    %v886 = vpack.c.bf16 %v868, %v859
    %v887 = vpack.c.bf16 %v869, %v860
    %v888 = vpack.c.bf16 %v870, %v861
    %v889 = vpack.c.bf16 %v871, %v862
    %v890 = vpack.c.bf16 %v872, %v863
    %v891 = vld [vmem:[#allocation12] sm:$0xf]
    %v892 = vld [vmem:[#allocation12 + $0x4] sm:$0xf]
    %v893 = vld [vmem:[#allocation12 + $0x8] sm:$0xf]
    %v894 = vld [vmem:[#allocation12 + $0xc] sm:$0xf]
    %v895 = vld [vmem:[#allocation12 + $0x10] sm:$0xf]
    %v896 = vld [vmem:[#allocation12 + $0x14] sm:$0xf]
    %v897 = vld [vmem:[#allocation12 + $0x18] sm:$0xf]
    %v898 = vld [vmem:[#allocation12 + $0x1c] sm:$0xf]
    %v899 = vld [vmem:[#allocation12 + $0x20] sm:$0xf]
    %v900 = vld [vmem:[#allocation12 + $0x24] sm:$0xf]
    %v901 = vld [vmem:[#allocation12 + $0x28] sm:$0xf]
    %v902 = vld [vmem:[#allocation12 + $0x2c] sm:$0xf]
    %v903 = vld [vmem:[#allocation12 + $0x30] sm:$0xf]
    %v904 = vld [vmem:[#allocation12 + $0x34] sm:$0xf]
    %v905 = vld [vmem:[#allocation12 + $0x38] sm:$0xf]
    %v906 = vld [vmem:[#allocation12 + $0x3c] sm:$0xf]
    %v907 = vld [vmem:[#allocation12 + $0x40] sm:$0xf]
    %v908 = vld [vmem:[#allocation12 + $0x44] sm:$0xf]
    %v909 = vld [vmem:[#allocation12 + $0x48] sm:$0xf]
    %v910 = vld [vmem:[#allocation12 + $0x4c] sm:$0xf]
    %v911 = vld [vmem:[#allocation12 + $0x50] sm:$0xf]
    %v912 = vld [vmem:[#allocation12 + $0x54] sm:$0xf]
    %v913 = vld [vmem:[#allocation12 + $0x58] sm:$0xf]
    %v914 = vld [vmem:[#allocation12 + $0x5c] sm:$0xf]
    %v915 = vld [vmem:[#allocation12 + $0x60] sm:$0xf]
    %v916 = vld [vmem:[#allocation12 + $0x64] sm:$0xf]
    %v917 = vld [vmem:[#allocation12 + $0x68] sm:$0xf]
    %v918 = vld [vmem:[#allocation12 + $0x6c] sm:$0xf]
    %v919 = vld [vmem:[#allocation12 + $0x70] sm:$0xf]
    %v920 = vld [vmem:[#allocation12 + $0x74] sm:$0xf]
    %v921 = vld [vmem:[#allocation12 + $0x78] sm:$0xf]
    %v922 = vld [vmem:[#allocation12 + $0x7c] sm:$0xf]
    %v923 = vld [vmem:[#allocation12 + $0x80] sm:$0xf]
    %v924 = vld [vmem:[#allocation12 + $0x84] sm:$0xf]
    %v925 = vld [vmem:[#allocation12 + $0x88] sm:$0xf]
    %v926 = vld [vmem:[#allocation12 + $0x8c] sm:$0xf]
    %v927 = vld [vmem:[#allocation12 + $0x90] sm:$0xf]
    %v928 = vld [vmem:[#allocation12 + $0x94] sm:$0xf]
    %v929 = vld [vmem:[#allocation12 + $0x98] sm:$0xf]
    %v930 = vld [vmem:[#allocation12 + $0x9c] sm:$0xf]
    %v931 = vld [vmem:[#allocation12 + $0xa0] sm:$0xf]
    %v932 = vld [vmem:[#allocation12 + $0xa4] sm:$0xf]
    %v933 = vld [vmem:[#allocation12 + $0xa8] sm:$0xf]
    %v934 = vld [vmem:[#allocation12 + $0xac] sm:$0xf]
    %v935 = vld [vmem:[#allocation12 + $0xb0] sm:$0xf]
    %v936 = vld [vmem:[#allocation12 + $0xb4] sm:$0xf]
    %v937 = vld [vmem:[#allocation12 + $0xb8] sm:$0xf]
    %v938 = vld [vmem:[#allocation12 + $0xbc] sm:$0xf]
    %v939 = vld [vmem:[#allocation12 + $0xc0] sm:$0xf]
    %v940 = vld [vmem:[#allocation12 + $0xc4] sm:$0xf]
    %v941 = vld [vmem:[#allocation12 + $0xc8] sm:$0xf]
    %v942 = vld [vmem:[#allocation12 + $0xcc] sm:$0xf]
    %v943 = vld [vmem:[#allocation12 + $0xd0] sm:$0xf]
    %v944 = vld [vmem:[#allocation12 + $0xd4] sm:$0xf]
    %v945 = vld [vmem:[#allocation12 + $0xd8] sm:$0xf]
    %v946 = vld [vmem:[#allocation12 + $0xdc] sm:$0xf]
    %v947 = vld [vmem:[#allocation12 + $0xe0] sm:$0xf]
    %v948 = vld [vmem:[#allocation12 + $0xe4] sm:$0xf]
    %v949 = vld [vmem:[#allocation12 + $0xe8] sm:$0xf]
    %v950 = vld [vmem:[#allocation12 + $0xec] sm:$0xf]
    %v951 = vld [vmem:[#allocation12 + $0xf0] sm:$0xf]
    %v952 = vld [vmem:[#allocation12 + $0xf4] sm:$0xf]
    %v953 = vld [vmem:[#allocation12 + $0xf8] sm:$0xf]
    %v954 = vld [vmem:[#allocation12 + $0xfc] sm:$0xf]
    %v955 = vld [vmem:[#allocation12 + $0x100] sm:$0xf]
    %v956 = vld [vmem:[#allocation12 + $0x104] sm:$0xf]
    %v957 = vld [vmem:[#allocation12 + $0x108] sm:$0xf]
    %v958 = vld [vmem:[#allocation12 + $0x10c] sm:$0xf]
    %v959 = vld [vmem:[#allocation12 + $0x110] sm:$0xf]
    %v960 = vld [vmem:[#allocation12 + $0x114] sm:$0xf]
    %v961 = vld [vmem:[#allocation12 + $0x118] sm:$0xf]
    %v962 = vld [vmem:[#allocation12 + $0x11c] sm:$0xf]
    %v963 = vld [vmem:[#allocation12 + $0x120] sm:$0xf]
    %v964 = vld [vmem:[#allocation12 + $0x124] sm:$0xf]
    %v965 = vld [vmem:[#allocation12 + $0x128] sm:$0xf]
    %v966 = vld [vmem:[#allocation12 + $0x12c] sm:$0xf]
    %v967 = vld [vmem:[#allocation12 + $0x130] sm:$0xf]
    %v968 = vld [vmem:[#allocation12 + $0x134] sm:$0xf]
    %v969 = vld [vmem:[#allocation12 + $0x138] sm:$0xf]
    %v970 = vld [vmem:[#allocation12 + $0x13c] sm:$0xf]
    %v971 = vld [vmem:[#allocation12 + $0x140] sm:$0xf]
    %v972 = vld [vmem:[#allocation12 + $0x144] sm:$0xf]
    %v973 = vld [vmem:[#allocation12 + $0x148] sm:$0xf]
    %v974 = vld [vmem:[#allocation12 + $0x14c] sm:$0xf]
    %v975 = vld [vmem:[#allocation12 + $0x150] sm:$0xf]
    %v976 = vld [vmem:[#allocation12 + $0x154] sm:$0xf]
    %v977 = vld [vmem:[#allocation12 + $0x158] sm:$0xf]
    %v978 = vld [vmem:[#allocation12 + $0x15c] sm:$0xf]
    %v979 = vld [vmem:[#allocation12 + $0x160] sm:$0xf]
    %v980 = vld [vmem:[#allocation12 + $0x164] sm:$0xf]
    %v981 = vld [vmem:[#allocation12 + $0x168] sm:$0xf]
    %v982 = vld [vmem:[#allocation12 + $0x16c] sm:$0xf]
    %v983 = vld [vmem:[#allocation12 + $0x170] sm:$0xf]
    %v984 = vld [vmem:[#allocation12 + $0x174] sm:$0xf]
    %v985 = vld [vmem:[#allocation12 + $0x178] sm:$0xf]
    %v986 = vld [vmem:[#allocation12 + $0x17c] sm:$0xf]
    %v987 = vld [vmem:[#allocation12 + $0x180] sm:$0xf]
    %v988 = vld [vmem:[#allocation12 + $0x184] sm:$0xf]
    %v989 = vld [vmem:[#allocation12 + $0x188] sm:$0xf]
    %v990 = vld [vmem:[#allocation12 + $0x18c] sm:$0xf]
    %v991 = vld [vmem:[#allocation12 + $0x190] sm:$0xf]
    %v992 = vld [vmem:[#allocation12 + $0x194] sm:$0xf]
    %v993 = vld [vmem:[#allocation12 + $0x198] sm:$0xf]
    %v994 = vld [vmem:[#allocation12 + $0x19c] sm:$0xf]
    %v995 = vld [vmem:[#allocation12 + $0x1a0] sm:$0xf]
    %v996 = vld [vmem:[#allocation12 + $0x1a4] sm:$0xf]
    %v997 = vld [vmem:[#allocation12 + $0x1a8] sm:$0xf]
    %v998 = vld [vmem:[#allocation12 + $0x1ac] sm:$0xf]
    %v999 = vld [vmem:[#allocation12 + $0x1b0] sm:$0xf]
    %v1000 = vld [vmem:[#allocation12 + $0x1b4] sm:$0xf]
    %v1001 = vld [vmem:[#allocation12 + $0x1b8] sm:$0xf]
    %v1002 = vld [vmem:[#allocation12 + $0x1bc] sm:$0xf]
    %v1003 = vld [vmem:[#allocation12 + $0x1c0] sm:$0xf]
    %v1004 = vld [vmem:[#allocation12 + $0x1c4] sm:$0xf]
    %v1005 = vld [vmem:[#allocation12 + $0x1c8] sm:$0xf]
    %v1006 = vld [vmem:[#allocation12 + $0x1cc] sm:$0xf]
    %v1007 = vld [vmem:[#allocation12 + $0x1d0] sm:$0xf]
    %v1008 = vld [vmem:[#allocation12 + $0x1d4] sm:$0xf]
    %v1009 = vld [vmem:[#allocation12 + $0x1d8] sm:$0xf]
    %v1010 = vld [vmem:[#allocation12 + $0x1dc] sm:$0xf]
    %v1011 = vld [vmem:[#allocation12 + $0x1e0] sm:$0xf]
    %v1012 = vld [vmem:[#allocation12 + $0x1e4] sm:$0xf]
    %v1013 = vld [vmem:[#allocation12 + $0x1e8] sm:$0xf]
    %v1014 = vld [vmem:[#allocation12 + $0x1ec] sm:$0xf]
    %v1015 = vld [vmem:[#allocation12 + $0x1f0] sm:$0xf]
    %v1016 = vld [vmem:[#allocation12 + $0x1f4] sm:$0xf]
    %v1017 = vld [vmem:[#allocation12 + $0x1f8] sm:$0xf]
    %v1018 = vld [vmem:[#allocation12 + $0x1fc] sm:$0xf]
    %v1019 = vld [vmem:[#allocation12 + $0x200] sm:$0xf]
    %v1020 = vld [vmem:[#allocation12 + $0x204] sm:$0xf]
    %v1021 = vld [vmem:[#allocation12 + $0x208] sm:$0xf]
    %v1022 = vld [vmem:[#allocation12 + $0x20c] sm:$0xf]
    %v1023 = vld [vmem:[#allocation12 + $0x210] sm:$0xf]
    %v1024 = vld [vmem:[#allocation12 + $0x214] sm:$0xf]
    %v1025 = vld [vmem:[#allocation12 + $0x218] sm:$0xf]
    %v1026 = vld [vmem:[#allocation12 + $0x21c] sm:$0xf]
    %v1027 = vld [vmem:[#allocation12 + $0x220] sm:$0xf]
    %v1028 = vld [vmem:[#allocation12 + $0x224] sm:$0xf]
    %v1029 = vld [vmem:[#allocation12 + $0x228] sm:$0xf]
    %v1030 = vld [vmem:[#allocation12 + $0x22c] sm:$0xf]
    %v1031 = vld [vmem:[#allocation12 + $0x230] sm:$0xf]
    %v1032 = vld [vmem:[#allocation12 + $0x234] sm:$0xf]
    %v1033 = vld [vmem:[#allocation12 + $0x238] sm:$0xf]
    %v1034 = vld [vmem:[#allocation12 + $0x23c] sm:$0xf]
    %v1179 = vunpack.c.l.b16 %v891
    %v1180 = vunpack.c.l.b16 %v892
    %v1181 = vunpack.c.l.b16 %v893
    %v1182 = vunpack.c.l.b16 %v894
    %v1183 = vunpack.c.l.b16 %v895
    %v1184 = vunpack.c.l.b16 %v896
    %v1185 = vunpack.c.l.b16 %v897
    %v1186 = vunpack.c.l.b16 %v898
    %v1187 = vunpack.c.l.b16 %v899
    %v1188 = vunpack.c.l.b16 %v900
    %v1189 = vunpack.c.l.b16 %v901
    %v1190 = vunpack.c.l.b16 %v902
    %v1191 = vunpack.c.l.b16 %v903
    %v1192 = vunpack.c.l.b16 %v904
    %v1193 = vunpack.c.l.b16 %v905
    %v1194 = vunpack.c.l.b16 %v906
    %v1195 = vunpack.c.l.b16 %v907
    %v1196 = vunpack.c.l.b16 %v908
    %v1197 = vunpack.c.l.b16 %v909
    %v1198 = vunpack.c.l.b16 %v910
    %v1199 = vunpack.c.l.b16 %v911
    %v1200 = vunpack.c.l.b16 %v912
    %v1201 = vunpack.c.l.b16 %v913
    %v1202 = vunpack.c.l.b16 %v914
    %v1203 = vunpack.c.l.b16 %v915
    %v1204 = vunpack.c.l.b16 %v916
    %v1205 = vunpack.c.l.b16 %v917
    %v1206 = vunpack.c.l.b16 %v918
    %v1207 = vunpack.c.l.b16 %v919
    %v1208 = vunpack.c.l.b16 %v920
    %v1209 = vunpack.c.l.b16 %v921
    %v1210 = vunpack.c.l.b16 %v922
    %v1211 = vunpack.c.l.b16 %v923
    %v1212 = vunpack.c.l.b16 %v924
    %v1213 = vunpack.c.l.b16 %v925
    %v1214 = vunpack.c.l.b16 %v926
    %v1215 = vunpack.c.l.b16 %v927
    %v1216 = vunpack.c.l.b16 %v928
    %v1217 = vunpack.c.l.b16 %v929
    %v1218 = vunpack.c.l.b16 %v930
    %v1219 = vunpack.c.l.b16 %v931
    %v1220 = vunpack.c.l.b16 %v932
    %v1221 = vunpack.c.l.b16 %v933
    %v1222 = vunpack.c.l.b16 %v934
    %v1223 = vunpack.c.l.b16 %v935
    %v1224 = vunpack.c.l.b16 %v936
    %v1225 = vunpack.c.l.b16 %v937
    %v1226 = vunpack.c.l.b16 %v938
    %v1227 = vunpack.c.l.b16 %v939
    %v1228 = vunpack.c.l.b16 %v940
    %v1229 = vunpack.c.l.b16 %v941
    %v1230 = vunpack.c.l.b16 %v942
    %v1231 = vunpack.c.l.b16 %v943
    %v1232 = vunpack.c.l.b16 %v944
    %v1233 = vunpack.c.l.b16 %v945
    %v1234 = vunpack.c.l.b16 %v946
    %v1235 = vunpack.c.l.b16 %v947
    %v1236 = vunpack.c.l.b16 %v948
    %v1237 = vunpack.c.l.b16 %v949
    %v1238 = vunpack.c.l.b16 %v950
    %v1239 = vunpack.c.l.b16 %v951
    %v1240 = vunpack.c.l.b16 %v952
    %v1241 = vunpack.c.l.b16 %v953
    %v1242 = vunpack.c.l.b16 %v954
    %v1243 = vunpack.c.l.b16 %v955
    %v1244 = vunpack.c.l.b16 %v956
    %v1245 = vunpack.c.l.b16 %v957
    %v1246 = vunpack.c.l.b16 %v958
    %v1247 = vunpack.c.l.b16 %v959
    %v1248 = vunpack.c.l.b16 %v960
    %v1249 = vunpack.c.l.b16 %v961
    %v1250 = vunpack.c.l.b16 %v962
    %v1251 = vunpack.c.l.b16 %v963
    %v1252 = vunpack.c.l.b16 %v964
    %v1253 = vunpack.c.l.b16 %v965
    %v1254 = vunpack.c.l.b16 %v966
    %v1255 = vunpack.c.l.b16 %v967
    %v1256 = vunpack.c.l.b16 %v968
    %v1257 = vunpack.c.l.b16 %v969
    %v1258 = vunpack.c.l.b16 %v970
    %v1259 = vunpack.c.l.b16 %v971
    %v1260 = vunpack.c.l.b16 %v972
    %v1261 = vunpack.c.l.b16 %v973
    %v1262 = vunpack.c.l.b16 %v974
    %v1263 = vunpack.c.l.b16 %v975
    %v1264 = vunpack.c.l.b16 %v976
    %v1265 = vunpack.c.l.b16 %v977
    %v1266 = vunpack.c.l.b16 %v978
    %v1267 = vunpack.c.l.b16 %v979
    %v1268 = vunpack.c.l.b16 %v980
    %v1269 = vunpack.c.l.b16 %v981
    %v1270 = vunpack.c.l.b16 %v982
    %v1271 = vunpack.c.l.b16 %v983
    %v1272 = vunpack.c.l.b16 %v984
    %v1273 = vunpack.c.l.b16 %v985
    %v1274 = vunpack.c.l.b16 %v986
    %v1275 = vunpack.c.l.b16 %v987
    %v1276 = vunpack.c.l.b16 %v988
    %v1277 = vunpack.c.l.b16 %v989
    %v1278 = vunpack.c.l.b16 %v990
    %v1279 = vunpack.c.l.b16 %v991
    %v1280 = vunpack.c.l.b16 %v992
    %v1281 = vunpack.c.l.b16 %v993
    %v1282 = vunpack.c.l.b16 %v994
    %v1283 = vunpack.c.l.b16 %v995
    %v1284 = vunpack.c.l.b16 %v996
    %v1285 = vunpack.c.l.b16 %v997
    %v1286 = vunpack.c.l.b16 %v998
    %v1287 = vunpack.c.l.b16 %v999
    %v1288 = vunpack.c.l.b16 %v1000
    %v1289 = vunpack.c.l.b16 %v1001
    %v1290 = vunpack.c.l.b16 %v1002
    %v1291 = vunpack.c.l.b16 %v1003
    %v1292 = vunpack.c.l.b16 %v1004
    %v1293 = vunpack.c.l.b16 %v1005
    %v1294 = vunpack.c.l.b16 %v1006
    %v1295 = vunpack.c.l.b16 %v1007
    %v1296 = vunpack.c.l.b16 %v1008
    %v1297 = vunpack.c.l.b16 %v1009
    %v1298 = vunpack.c.l.b16 %v1010
    %v1299 = vunpack.c.l.b16 %v1011
    %v1300 = vunpack.c.l.b16 %v1012
    %v1301 = vunpack.c.l.b16 %v1013
    %v1302 = vunpack.c.l.b16 %v1014
    %v1303 = vunpack.c.l.b16 %v1015
    %v1304 = vunpack.c.l.b16 %v1016
    %v1305 = vunpack.c.l.b16 %v1017
    %v1306 = vunpack.c.l.b16 %v1018
    %v1307 = vunpack.c.l.b16 %v1019
    %v1308 = vunpack.c.l.b16 %v1020
    %v1309 = vunpack.c.l.b16 %v1021
    %v1310 = vunpack.c.l.b16 %v1022
    %v1311 = vunpack.c.l.b16 %v1023
    %v1312 = vunpack.c.l.b16 %v1024
    %v1313 = vunpack.c.l.b16 %v1025
    %v1314 = vunpack.c.l.b16 %v1026
    %v1315 = vunpack.c.l.b16 %v1027
    %v1316 = vunpack.c.l.b16 %v1028
    %v1317 = vunpack.c.l.b16 %v1029
    %v1318 = vunpack.c.l.b16 %v1030
    %v1319 = vunpack.c.l.b16 %v1031
    %v1320 = vunpack.c.l.b16 %v1032
    %v1321 = vunpack.c.l.b16 %v1033
    %v1322 = vunpack.c.l.b16 %v1034
    %v1323 = vpack.c.b16 %v1180, %v1179
    %v1324 = vpack.c.b16 %v1182, %v1181
    %v1325 = vpack.c.b16 %v1184, %v1183
    %v1326 = vpack.c.b16 %v1186, %v1185
    %v1327 = vpack.c.b16 %v1188, %v1187
    %v1328 = vpack.c.b16 %v1190, %v1189
    %v1329 = vpack.c.b16 %v1192, %v1191
    %v1330 = vpack.c.b16 %v1194, %v1193
    %v1331 = vpack.c.b16 %v1196, %v1195
    %v1332 = vpack.c.b16 %v1198, %v1197
    %v1333 = vpack.c.b16 %v1200, %v1199
    %v1334 = vpack.c.b16 %v1202, %v1201
    %v1335 = vpack.c.b16 %v1204, %v1203
    %v1336 = vpack.c.b16 %v1206, %v1205
    %v1337 = vpack.c.b16 %v1208, %v1207
    %v1338 = vpack.c.b16 %v1210, %v1209
    %v1339 = vpack.c.b16 %v1212, %v1211
    %v1340 = vpack.c.b16 %v1214, %v1213
    %v1341 = vpack.c.b16 %v1216, %v1215
    %v1342 = vpack.c.b16 %v1218, %v1217
    %v1343 = vpack.c.b16 %v1220, %v1219
    %v1344 = vpack.c.b16 %v1222, %v1221
    %v1345 = vpack.c.b16 %v1224, %v1223
    %v1346 = vpack.c.b16 %v1226, %v1225
    %v1347 = vpack.c.b16 %v1228, %v1227
    %v1348 = vpack.c.b16 %v1230, %v1229
    %v1349 = vpack.c.b16 %v1232, %v1231
    %v1350 = vpack.c.b16 %v1234, %v1233
    %v1351 = vpack.c.b16 %v1236, %v1235
    %v1352 = vpack.c.b16 %v1238, %v1237
    %v1353 = vpack.c.b16 %v1240, %v1239
    %v1354 = vpack.c.b16 %v1242, %v1241
    %v1355 = vpack.c.b16 %v1244, %v1243
    %v1356 = vpack.c.b16 %v1246, %v1245
    %v1357 = vpack.c.b16 %v1248, %v1247
    %v1358 = vpack.c.b16 %v1250, %v1249
    %v1359 = vpack.c.b16 %v1252, %v1251
    %v1360 = vpack.c.b16 %v1254, %v1253
    %v1361 = vpack.c.b16 %v1256, %v1255
    %v1362 = vpack.c.b16 %v1258, %v1257
    %v1363 = vpack.c.b16 %v1260, %v1259
    %v1364 = vpack.c.b16 %v1262, %v1261
    %v1365 = vpack.c.b16 %v1264, %v1263
    %v1366 = vpack.c.b16 %v1266, %v1265
    %v1367 = vpack.c.b16 %v1268, %v1267
    %v1368 = vpack.c.b16 %v1270, %v1269
    %v1369 = vpack.c.b16 %v1272, %v1271
    %v1370 = vpack.c.b16 %v1274, %v1273
    %v1371 = vpack.c.b16 %v1276, %v1275
    %v1372 = vpack.c.b16 %v1278, %v1277
    %v1373 = vpack.c.b16 %v1280, %v1279
    %v1374 = vpack.c.b16 %v1282, %v1281
    %v1375 = vpack.c.b16 %v1284, %v1283
    %v1376 = vpack.c.b16 %v1286, %v1285
    %v1377 = vpack.c.b16 %v1288, %v1287
    %v1378 = vpack.c.b16 %v1290, %v1289
    %v1379 = vpack.c.b16 %v1292, %v1291
    %v1380 = vpack.c.b16 %v1294, %v1293
    %v1381 = vpack.c.b16 %v1296, %v1295
    %v1382 = vpack.c.b16 %v1298, %v1297
    %v1383 = vpack.c.b16 %v1300, %v1299
    %v1384 = vpack.c.b16 %v1302, %v1301
    %v1385 = vpack.c.b16 %v1304, %v1303
    %v1386 = vpack.c.b16 %v1306, %v1305
    %v1387 = vpack.c.b16 %v1308, %v1307
    %v1388 = vpack.c.b16 %v1310, %v1309
    %v1389 = vpack.c.b16 %v1312, %v1311
    %v1390 = vpack.c.b16 %v1314, %v1313
    %v1391 = vpack.c.b16 %v1316, %v1315
    %v1392 = vpack.c.b16 %v1318, %v1317
    %v1393 = vpack.c.b16 %v1320, %v1319
    %v1394 = vpack.c.b16 %v1322, %v1321
    %1467 = vmatpush.bf16.msra.mxu0 %v1330
    %1468 = vmatpush.bf16.msra.mxu0 %v1329
    %1469 = vmatpush.bf16.msra.mxu0 %v1328
    %1470 = vmatpush.bf16.msra.mxu0 %v1327
    %1471 = vmatpush.bf16.msra.mxu0 %v1326
    %1472 = vmatpush.bf16.msra.mxu0 %v1325
    %1473 = vmatpush.bf16.msra.mxu0 %v1324
    %1474 = vmatpush.bf16.msra.mxu0 %v1323
    %1475 = vmatmul.bf16.gmra.mxu0 %v873
    %v1476 = vpop.f32.mrf.mxu0
    %v1477 = vadd.f32 0.0, %v1476
    %v1478 = vpop.f32.mrf.mxu0
    %v1479 = vadd.f32 0.0, %v1478
    %1480 = vmatmul.bf16.gmra.mxu0 %v882
    %v1481 = vpop.f32.mrf.mxu0
    %v1482 = vadd.f32 0.0, %v1481
    %v1483 = vpop.f32.mrf.mxu0
    %v1484 = vadd.f32 0.0, %v1483
    %1485 = vdwg.mxu0
    %1486 = vmatpush.bf16.msra.mxu0 %v1338
    %1487 = vmatpush.bf16.msra.mxu0 %v1337
    %1488 = vmatpush.bf16.msra.mxu0 %v1336
    %1489 = vmatpush.bf16.msra.mxu0 %v1335
    %1490 = vmatpush.bf16.msra.mxu0 %v1334
    %1491 = vmatpush.bf16.msra.mxu0 %v1333
    %1492 = vmatpush.bf16.msra.mxu0 %v1332
    %1493 = vmatpush.bf16.msra.mxu0 %v1331
    %1494 = vmatmul.bf16.gmra.mxu0 %v874
    %v1495 = vpop.f32.mrf.mxu0
    %v1496 = vadd.f32 %v1477, %v1495
    %v1497 = vpop.f32.mrf.mxu0
    %v1498 = vadd.f32 %v1479, %v1497
    %1499 = vmatmul.bf16.gmra.mxu0 %v883
    %v1500 = vpop.f32.mrf.mxu0
    %v1501 = vadd.f32 %v1482, %v1500
    %v1502 = vpop.f32.mrf.mxu0
    %v1503 = vadd.f32 %v1484, %v1502
    %1504 = vdwg.mxu0
    %1505 = vmatpush.bf16.msra.mxu0 %v1346
    %1506 = vmatpush.bf16.msra.mxu0 %v1345
    %1507 = vmatpush.bf16.msra.mxu0 %v1344
    %1508 = vmatpush.bf16.msra.mxu0 %v1343
    %1509 = vmatpush.bf16.msra.mxu0 %v1342
    %1510 = vmatpush.bf16.msra.mxu0 %v1341
    %1511 = vmatpush.bf16.msra.mxu0 %v1340
    %1512 = vmatpush.bf16.msra.mxu0 %v1339
    %1513 = vmatmul.bf16.gmra.mxu0 %v875
    %v1514 = vpop.f32.mrf.mxu0
    %v1515 = vadd.f32 %v1496, %v1514
    %v1516 = vpop.f32.mrf.mxu0
    %v1517 = vadd.f32 %v1498, %v1516
    %1518 = vmatmul.bf16.gmra.mxu0 %v884
    %v1519 = vpop.f32.mrf.mxu0
    %v1520 = vadd.f32 %v1501, %v1519
    %v1521 = vpop.f32.mrf.mxu0
    %v1522 = vadd.f32 %v1503, %v1521
    %1523 = vdwg.mxu0
    %1524 = vmatpush.bf16.msra.mxu0 %v1354
    %1525 = vmatpush.bf16.msra.mxu0 %v1353
    %1526 = vmatpush.bf16.msra.mxu0 %v1352
    %1527 = vmatpush.bf16.msra.mxu0 %v1351
    %1528 = vmatpush.bf16.msra.mxu0 %v1350
    %1529 = vmatpush.bf16.msra.mxu0 %v1349
    %1530 = vmatpush.bf16.msra.mxu0 %v1348
    %1531 = vmatpush.bf16.msra.mxu0 %v1347
    %1532 = vmatmul.bf16.gmra.mxu0 %v876
    %v1533 = vpop.f32.mrf.mxu0
    %v1534 = vadd.f32 %v1515, %v1533
    %v1535 = vpop.f32.mrf.mxu0
    %v1536 = vadd.f32 %v1517, %v1535
    %1537 = vmatmul.bf16.gmra.mxu0 %v885
    %v1538 = vpop.f32.mrf.mxu0
    %v1539 = vadd.f32 %v1520, %v1538
    %v1540 = vpop.f32.mrf.mxu0
    %v1541 = vadd.f32 %v1522, %v1540
    %1542 = vdwg.mxu0
    %1543 = vmatpush.bf16.msra.mxu0 %v1362
    %1544 = vmatpush.bf16.msra.mxu0 %v1361
    %1545 = vmatpush.bf16.msra.mxu0 %v1360
    %1546 = vmatpush.bf16.msra.mxu0 %v1359
    %1547 = vmatpush.bf16.msra.mxu0 %v1358
    %1548 = vmatpush.bf16.msra.mxu0 %v1357
    %1549 = vmatpush.bf16.msra.mxu0 %v1356
    %1550 = vmatpush.bf16.msra.mxu0 %v1355
    %1551 = vmatmul.bf16.gmra.mxu0 %v877
    %v1552 = vpop.f32.mrf.mxu0
    %v1553 = vadd.f32 %v1534, %v1552
    %v1554 = vpop.f32.mrf.mxu0
    %v1555 = vadd.f32 %v1536, %v1554
    %1556 = vmatmul.bf16.gmra.mxu0 %v886
    %v1557 = vpop.f32.mrf.mxu0
    %v1558 = vadd.f32 %v1539, %v1557
    %v1559 = vpop.f32.mrf.mxu0
    %v1560 = vadd.f32 %v1541, %v1559
    %1561 = vdwg.mxu0
    %1562 = vmatpush.bf16.msra.mxu0 %v1370
    %1563 = vmatpush.bf16.msra.mxu0 %v1369
    %1564 = vmatpush.bf16.msra.mxu0 %v1368
    %1565 = vmatpush.bf16.msra.mxu0 %v1367
    %1566 = vmatpush.bf16.msra.mxu0 %v1366
    %1567 = vmatpush.bf16.msra.mxu0 %v1365
    %1568 = vmatpush.bf16.msra.mxu0 %v1364
    %1569 = vmatpush.bf16.msra.mxu0 %v1363
    %1570 = vmatmul.bf16.gmra.mxu0 %v878
    %v1571 = vpop.f32.mrf.mxu0
    %v1572 = vadd.f32 %v1553, %v1571
    %v1573 = vpop.f32.mrf.mxu0
    %v1574 = vadd.f32 %v1555, %v1573
    %1575 = vmatmul.bf16.gmra.mxu0 %v887
    %v1576 = vpop.f32.mrf.mxu0
    %v1577 = vadd.f32 %v1558, %v1576
    %v1578 = vpop.f32.mrf.mxu0
    %v1579 = vadd.f32 %v1560, %v1578
    %1580 = vdwg.mxu0
    %1581 = vmatpush.bf16.msra.mxu0 %v1378
    %1582 = vmatpush.bf16.msra.mxu0 %v1377
    %1583 = vmatpush.bf16.msra.mxu0 %v1376
    %1584 = vmatpush.bf16.msra.mxu0 %v1375
    %1585 = vmatpush.bf16.msra.mxu0 %v1374
    %1586 = vmatpush.bf16.msra.mxu0 %v1373
    %1587 = vmatpush.bf16.msra.mxu0 %v1372
    %1588 = vmatpush.bf16.msra.mxu0 %v1371
    %1589 = vmatmul.bf16.gmra.mxu0 %v879
    %v1590 = vpop.f32.mrf.mxu0
    %v1591 = vadd.f32 %v1572, %v1590
    %v1592 = vpop.f32.mrf.mxu0
    %v1593 = vadd.f32 %v1574, %v1592
    %1594 = vmatmul.bf16.gmra.mxu0 %v888
    %v1595 = vpop.f32.mrf.mxu0
    %v1596 = vadd.f32 %v1577, %v1595
    %v1597 = vpop.f32.mrf.mxu0
    %v1598 = vadd.f32 %v1579, %v1597
    %1599 = vdwg.mxu0
    %1600 = vmatpush.bf16.msra.mxu0 %v1386
    %1601 = vmatpush.bf16.msra.mxu0 %v1385
    %1602 = vmatpush.bf16.msra.mxu0 %v1384
    %1603 = vmatpush.bf16.msra.mxu0 %v1383
    %1604 = vmatpush.bf16.msra.mxu0 %v1382
    %1605 = vmatpush.bf16.msra.mxu0 %v1381
    %1606 = vmatpush.bf16.msra.mxu0 %v1380
    %1607 = vmatpush.bf16.msra.mxu0 %v1379
    %1608 = vmatmul.bf16.gmra.mxu0 %v880
    %v1609 = vpop.f32.mrf.mxu0
    %v1610 = vadd.f32 %v1591, %v1609
    %v1611 = vpop.f32.mrf.mxu0
    %v1612 = vadd.f32 %v1593, %v1611
    %1613 = vmatmul.bf16.gmra.mxu0 %v889
    %v1614 = vpop.f32.mrf.mxu0
    %v1615 = vadd.f32 %v1596, %v1614
    %v1616 = vpop.f32.mrf.mxu0
    %v1617 = vadd.f32 %v1598, %v1616
    %1618 = vdwg.mxu0
    %1619 = vmatpush.bf16.msra.mxu0 %v1394
    %1620 = vmatpush.bf16.msra.mxu0 %v1393
    %1621 = vmatpush.bf16.msra.mxu0 %v1392
    %1622 = vmatpush.bf16.msra.mxu0 %v1391
    %1623 = vmatpush.bf16.msra.mxu0 %v1390
    %1624 = vmatpush.bf16.msra.mxu0 %v1389
    %1625 = vmatpush.bf16.msra.mxu0 %v1388
    %1626 = vmatpush.bf16.msra.mxu0 %v1387
    %1627 = vmatmul.bf16.gmra.mxu0 %v881
    %v1628 = vpop.f32.mrf.mxu0
    %v1629 = vadd.f32 %v1610, %v1628
    %v1630 = vpop.f32.mrf.mxu0
    %v1631 = vadd.f32 %v1612, %v1630
    %1632 = vmatmul.bf16.gmra.mxu0 %v890
    %v1633 = vpop.f32.mrf.mxu0
    %v1634 = vadd.f32 %v1615, %v1633
    %v1635 = vpop.f32.mrf.mxu0
    %v1636 = vadd.f32 %v1617, %v1635
    %1637 = vdwg.mxu0
    %v1638 = vld [vmem:[%s5] sm:$0x1]
    %v1639 = vld [vmem:[%s6] sm:$0x1]
    %v1640 = vadd.f32 %v1629, %v1631
    %v1641 = vadd.f32 %v1640, %v1634
    %v1642 = vadd.f32 %v1641, %v1636
    %v1643 = vrot.slane %v1642, 4
    %v1644 = vadd.f32 %v1642, %v1643
    %v1645 = vrot.slane %v1644, 2
    %v1646 = vadd.f32 %v1644, %v1645
    %v1647 = vrot.slane %v1646, 1
    %v1648 = vadd.f32 %v1646, %v1647
    %v1649 = vmul.f32 %v1648, 0.03125
    %v1650 = vmul.f32 %v1629, %v1629
    %v1651 = vmul.f32 %v1631, %v1631
    %v1652 = vmul.f32 %v1634, %v1634
    %v1653 = vmul.f32 %v1636, %v1636
    %v1654 = vadd.f32 %v1650, %v1651
    %v1655 = vadd.f32 %v1654, %v1652
    %v1656 = vadd.f32 %v1655, %v1653
    %v1657 = vrot.slane %v1656, 4
    %v1658 = vadd.f32 %v1656, %v1657
    %v1659 = vrot.slane %v1658, 2
    %v1660 = vadd.f32 %v1658, %v1659
    %v1661 = vrot.slane %v1660, 1
    %v1662 = vadd.f32 %v1660, %v1661
    %v1663 = vmul.f32 %v1662, 0.03125
    %v1664 = vmul.f32 %v1649, %v1649
    %v1665 = vsub.f32 %v1663, %v1664
    %v1666 = vmax.f32 %v1665, 0.0
    %v1667 = vadd.f32 %v1666, 1e-05
    %v1668 = vrsqrt.pop %v1667
    %v1669 = vmul.f32 %v1668, %v1667
    %v1670 = vmul.f32 %v1669, %v1668
    %v1671 = vmul.f32 0.5, %v1670
    %v1672 = vsub.f32 1.5, %v1671
    %v1673 = vmul.f32 %v1668, %v1672
    %vm1674 = vweird.f32 %v1667
    %vm1675 = vweird.f32 %v1668
    %vm1676 = vmor %vm1674, %vm1675
    %v1677 = vsel %vm1676, %v1668, %v1673
    %v1678 = vmul.f32 %v1638, %v1677
    %v1679 = vmul.f32 %v1649, %v1678
    %v1680 = vsub.f32 %v1639, %v1679
    %v1682 = vperm.slane %v1678, 0
    %v1684 = vmul.f32 %v1629, %v1682
    %v1685 = vmul.f32 %v1631, %v1682
    %v1686 = vmul.f32 %v1634, %v1682
    %v1687 = vmul.f32 %v1636, %v1682
    %v1689 = vperm.slane %v1680, 0
    %v1691 = vadd.f32 %v1684, %v1689
    %v1692 = vadd.f32 %v1685, %v1689
    %v1693 = vadd.f32 %v1686, %v1689
    %v1694 = vadd.f32 %v1687, %v1689
    %v1695 = vmax.f32 %v1691, 0.0
    %v1696 = vmax.f32 %v1692, 0.0
    %v1697 = vmax.f32 %v1693, 0.0
    %v1698 = vmax.f32 %v1694, 0.0
    %v1699 = vpack.c.bf16 %v1696, %v1695
    %v1700 = vpack.c.bf16 %v1698, %v1697
    %v1701 = vld [vmem:[#allocation7] ss:$2 sm:$0xf]
    %1702 = vst [vmem:[#allocation4] sm:$0xf] %v1701
    %s1703 = scalar_lea.vmem [#allocation7], 16
    %v1704 = vld [vmem:[%s1703] ss:$2 sm:$0xf]
    %1705 = vst [vmem:[#allocation4 + $0x4] sm:$0xf] %v1704
    %s1706 = scalar_lea.vmem [#allocation7], 32
    %v1707 = vld [vmem:[%s1706] ss:$2 sm:$0xf]
    %1708 = vst [vmem:[#allocation4 + $0x8] sm:$0xf] %v1707
    %s1709 = scalar_lea.vmem [#allocation7], 48
    %v1710 = vld [vmem:[%s1709] ss:$2 sm:$0xf]
    %1711 = vst [vmem:[#allocation4 + $0xc] sm:$0xf] %v1710
    %s1712 = scalar_lea.vmem [#allocation7], 64
    %v1713 = vld [vmem:[%s1712] ss:$2 sm:$0xf]
    %1714 = vst [vmem:[#allocation4 + $0x10] sm:$0xf] %v1713
    %s1715 = scalar_lea.vmem [#allocation7], 80
    %v1716 = vld [vmem:[%s1715] ss:$2 sm:$0xf]
    %1717 = vst [vmem:[#allocation4 + $0x14] sm:$0xf] %v1716
    %s1718 = scalar_lea.vmem [#allocation7], 96
    %v1719 = vld [vmem:[%s1718] ss:$2 sm:$0xf]
    %1720 = vst [vmem:[#allocation4 + $0x18] sm:$0xf] %v1719
    %s1721 = scalar_lea.vmem [#allocation7], 112
    %v1722 = vld [vmem:[%s1721] ss:$2 sm:$0xf]
    %1723 = vst [vmem:[#allocation4 + $0x1c] sm:$0xf] %v1722
    %v1724 = vld [vmem:[#allocation4] sm:$0xff]
    %v1725 = vld [vmem:[#allocation4 + $0x8] sm:$0xff]
    %v1726 = vld [vmem:[#allocation4 + $0x10] sm:$0xff]
    %v1727 = vld [vmem:[#allocation4 + $0x18] sm:$0xff]
    %v1728 = vpack.c.bf16 %v1725, %v1724
    %v1729 = vpack.c.bf16 %v1727, %v1726
    %v1730 = vld [vmem:[#allocation15] sm:$0xf]
    %v1731 = vld [vmem:[#allocation15 + $0x4] sm:$0xf]
    %v1732 = vld [vmem:[#allocation15 + $0x8] sm:$0xf]
    %v1733 = vld [vmem:[#allocation15 + $0xc] sm:$0xf]
    %v1734 = vld [vmem:[#allocation15 + $0x10] sm:$0xf]
    %v1735 = vld [vmem:[#allocation15 + $0x14] sm:$0xf]
    %v1736 = vld [vmem:[#allocation15 + $0x18] sm:$0xf]
    %v1737 = vld [vmem:[#allocation15 + $0x1c] sm:$0xf]
    %v1738 = vld [vmem:[#allocation15 + $0x20] sm:$0xf]
    %v1739 = vld [vmem:[#allocation15 + $0x24] sm:$0xf]
    %v1740 = vld [vmem:[#allocation15 + $0x28] sm:$0xf]
    %v1741 = vld [vmem:[#allocation15 + $0x2c] sm:$0xf]
    %v1742 = vld [vmem:[#allocation15 + $0x30] sm:$0xf]
    %v1743 = vld [vmem:[#allocation15 + $0x34] sm:$0xf]
    %v1744 = vld [vmem:[#allocation15 + $0x38] sm:$0xf]
    %v1745 = vld [vmem:[#allocation15 + $0x3c] sm:$0xf]
    %v1762 = vunpack.c.l.b16 %v1730
    %v1763 = vunpack.c.l.b16 %v1731
    %v1764 = vunpack.c.l.b16 %v1732
    %v1765 = vunpack.c.l.b16 %v1733
    %v1766 = vunpack.c.l.b16 %v1734
    %v1767 = vunpack.c.l.b16 %v1735
    %v1768 = vunpack.c.l.b16 %v1736
    %v1769 = vunpack.c.l.b16 %v1737
    %v1770 = vunpack.c.l.b16 %v1738
    %v1771 = vunpack.c.l.b16 %v1739
    %v1772 = vunpack.c.l.b16 %v1740
    %v1773 = vunpack.c.l.b16 %v1741
    %v1774 = vunpack.c.l.b16 %v1742
    %v1775 = vunpack.c.l.b16 %v1743
    %v1776 = vunpack.c.l.b16 %v1744
    %v1777 = vunpack.c.l.b16 %v1745
    %v1778 = vpack.c.b16 %v1763, %v1762
    %v1779 = vpack.c.b16 %v1765, %v1764
    %v1780 = vpack.c.b16 %v1767, %v1766
    %v1781 = vpack.c.b16 %v1769, %v1768
    %v1782 = vpack.c.b16 %v1771, %v1770
    %v1783 = vpack.c.b16 %v1773, %v1772
    %v1784 = vpack.c.b16 %v1775, %v1774
    %v1785 = vpack.c.b16 %v1777, %v1776
    %1794 = vmatpush.bf16.msra.mxu0 %v1785
    %1795 = vmatpush.bf16.msra.mxu0 %v1784
    %1796 = vmatpush.bf16.msra.mxu0 %v1783
    %1797 = vmatpush.bf16.msra.mxu0 %v1782
    %1798 = vmatpush.bf16.msra.mxu0 %v1781
    %1799 = vmatpush.bf16.msra.mxu0 %v1780
    %1800 = vmatpush.bf16.msra.mxu0 %v1779
    %1801 = vmatpush.bf16.msra.mxu0 %v1778
    %1802 = vmatmul.bf16.gmra.mxu0 %v1728
    %v1803 = vpop.f32.mrf.mxu0
    %v1804 = vadd.f32 0.0, %v1803
    %v1805 = vpop.f32.mrf.mxu0
    %v1806 = vadd.f32 0.0, %v1805
    %1807 = vmatmul.bf16.gmra.mxu0 %v1729
    %v1808 = vpop.f32.mrf.mxu0
    %v1809 = vadd.f32 0.0, %v1808
    %v1810 = vpop.f32.mrf.mxu0
    %v1811 = vadd.f32 0.0, %v1810
    %1812 = vdwg.mxu0
    %v1813 = vld [vmem:[%s11] sm:$0x1]
    %v1814 = vld [vmem:[%s12] sm:$0x1]
    %v1815 = vadd.f32 %v1804, %v1806
    %v1816 = vadd.f32 %v1815, %v1809
    %v1817 = vadd.f32 %v1816, %v1811
    %v1818 = vrot.slane %v1817, 4
    %v1819 = vadd.f32 %v1817, %v1818
    %v1820 = vrot.slane %v1819, 2
    %v1821 = vadd.f32 %v1819, %v1820
    %v1822 = vrot.slane %v1821, 1
    %v1823 = vadd.f32 %v1821, %v1822
    %v1824 = vmul.f32 %v1823, 0.03125
    %v1825 = vmul.f32 %v1804, %v1804
    %v1826 = vmul.f32 %v1806, %v1806
    %v1827 = vmul.f32 %v1809, %v1809
    %v1828 = vmul.f32 %v1811, %v1811
    %v1829 = vadd.f32 %v1825, %v1826
    %v1830 = vadd.f32 %v1829, %v1827
    %v1831 = vadd.f32 %v1830, %v1828
    %v1832 = vrot.slane %v1831, 4
    %v1833 = vadd.f32 %v1831, %v1832
    %v1834 = vrot.slane %v1833, 2
    %v1835 = vadd.f32 %v1833, %v1834
    %v1836 = vrot.slane %v1835, 1
    %v1837 = vadd.f32 %v1835, %v1836
    %v1838 = vmul.f32 %v1837, 0.03125
    %v1839 = vmul.f32 %v1824, %v1824
    %v1840 = vsub.f32 %v1838, %v1839
    %v1841 = vmax.f32 %v1840, 0.0
    %v1842 = vadd.f32 %v1841, 1e-05
    %v1843 = vrsqrt.pop %v1842
    %v1844 = vmul.f32 %v1843, %v1842
    %v1845 = vmul.f32 %v1844, %v1843
    %v1846 = vmul.f32 0.5, %v1845
    %v1847 = vsub.f32 1.5, %v1846
    %v1848 = vmul.f32 %v1843, %v1847
    %vm1849 = vweird.f32 %v1842
    %vm1850 = vweird.f32 %v1843
    %vm1851 = vmor %vm1849, %vm1850
    %v1852 = vsel %vm1851, %v1843, %v1848
    %v1853 = vmul.f32 %v1813, %v1852
    %v1854 = vmul.f32 %v1824, %v1853
    %v1855 = vsub.f32 %v1814, %v1854
    %v1857 = vperm.slane %v1853, 0
    %v1859 = vmul.f32 %v1804, %v1857
    %v1860 = vmul.f32 %v1806, %v1857
    %v1861 = vmul.f32 %v1809, %v1857
    %v1862 = vmul.f32 %v1811, %v1857
    %v1864 = vperm.slane %v1855, 0
    %v1866 = vadd.f32 %v1859, %v1864
    %v1867 = vadd.f32 %v1860, %v1864
    %v1868 = vadd.f32 %v1861, %v1864
    %v1869 = vadd.f32 %v1862, %v1864
    %v1870 = vld [vmem:[#allocation13] sm:$0xf]
    %v1871 = vld [vmem:[#allocation13 + $0x4] sm:$0xf]
    %v1872 = vld [vmem:[#allocation13 + $0x8] sm:$0xf]
    %v1873 = vld [vmem:[#allocation13 + $0xc] sm:$0xf]
    %v1874 = vld [vmem:[#allocation13 + $0x10] sm:$0xf]
    %v1875 = vld [vmem:[#allocation13 + $0x14] sm:$0xf]
    %v1876 = vld [vmem:[#allocation13 + $0x18] sm:$0xf]
    %v1877 = vld [vmem:[#allocation13 + $0x1c] sm:$0xf]
    %v1878 = vld [vmem:[#allocation13 + $0x20] sm:$0xf]
    %v1879 = vld [vmem:[#allocation13 + $0x24] sm:$0xf]
    %v1880 = vld [vmem:[#allocation13 + $0x28] sm:$0xf]
    %v1881 = vld [vmem:[#allocation13 + $0x2c] sm:$0xf]
    %v1882 = vld [vmem:[#allocation13 + $0x30] sm:$0xf]
    %v1883 = vld [vmem:[#allocation13 + $0x34] sm:$0xf]
    %v1884 = vld [vmem:[#allocation13 + $0x38] sm:$0xf]
    %v1885 = vld [vmem:[#allocation13 + $0x3c] sm:$0xf]
    %v1902 = vunpack.c.l.b16 %v1870
    %v1903 = vunpack.c.l.b16 %v1871
    %v1904 = vunpack.c.l.b16 %v1872
    %v1905 = vunpack.c.l.b16 %v1873
    %v1906 = vunpack.c.l.b16 %v1874
    %v1907 = vunpack.c.l.b16 %v1875
    %v1908 = vunpack.c.l.b16 %v1876
    %v1909 = vunpack.c.l.b16 %v1877
    %v1910 = vunpack.c.l.b16 %v1878
    %v1911 = vunpack.c.l.b16 %v1879
    %v1912 = vunpack.c.l.b16 %v1880
    %v1913 = vunpack.c.l.b16 %v1881
    %v1914 = vunpack.c.l.b16 %v1882
    %v1915 = vunpack.c.l.b16 %v1883
    %v1916 = vunpack.c.l.b16 %v1884
    %v1917 = vunpack.c.l.b16 %v1885
    %v1918 = vpack.c.b16 %v1903, %v1902
    %v1919 = vpack.c.b16 %v1905, %v1904
    %v1920 = vpack.c.b16 %v1907, %v1906
    %v1921 = vpack.c.b16 %v1909, %v1908
    %v1922 = vpack.c.b16 %v1911, %v1910
    %v1923 = vpack.c.b16 %v1913, %v1912
    %v1924 = vpack.c.b16 %v1915, %v1914
    %v1925 = vpack.c.b16 %v1917, %v1916
    %1934 = vmatpush.bf16.msra.mxu0 %v1925
    %1935 = vmatpush.bf16.msra.mxu0 %v1924
    %1936 = vmatpush.bf16.msra.mxu0 %v1923
    %1937 = vmatpush.bf16.msra.mxu0 %v1922
    %1938 = vmatpush.bf16.msra.mxu0 %v1921
    %1939 = vmatpush.bf16.msra.mxu0 %v1920
    %1940 = vmatpush.bf16.msra.mxu0 %v1919
    %1941 = vmatpush.bf16.msra.mxu0 %v1918
    %1942 = vmatmul.bf16.gmra.mxu0 %v1699
    %v1943 = vpop.f32.mrf.mxu0
    %v1944 = vadd.f32 0.0, %v1943
    %v1945 = vpop.f32.mrf.mxu0
    %v1946 = vadd.f32 0.0, %v1945
    %1947 = vmatmul.bf16.gmra.mxu0 %v1700
    %v1948 = vpop.f32.mrf.mxu0
    %v1949 = vadd.f32 0.0, %v1948
    %v1950 = vpop.f32.mrf.mxu0
    %v1951 = vadd.f32 0.0, %v1950
    %1952 = vdwg.mxu0
    %v1953 = vld [vmem:[%s8] sm:$0x1]
    %v1954 = vld [vmem:[%s9] sm:$0x1]
    %v1955 = vadd.f32 %v1944, %v1946
    %v1956 = vadd.f32 %v1955, %v1949
    %v1957 = vadd.f32 %v1956, %v1951
    %v1958 = vrot.slane %v1957, 4
    %v1959 = vadd.f32 %v1957, %v1958
    %v1960 = vrot.slane %v1959, 2
    %v1961 = vadd.f32 %v1959, %v1960
    %v1962 = vrot.slane %v1961, 1
    %v1963 = vadd.f32 %v1961, %v1962
    %v1964 = vmul.f32 %v1963, 0.03125
    %v1965 = vmul.f32 %v1944, %v1944
    %v1966 = vmul.f32 %v1946, %v1946
    %v1967 = vmul.f32 %v1949, %v1949
    %v1968 = vmul.f32 %v1951, %v1951
    %v1969 = vadd.f32 %v1965, %v1966
    %v1970 = vadd.f32 %v1969, %v1967
    %v1971 = vadd.f32 %v1970, %v1968
    %v1972 = vrot.slane %v1971, 4
    %v1973 = vadd.f32 %v1971, %v1972
    %v1974 = vrot.slane %v1973, 2
    %v1975 = vadd.f32 %v1973, %v1974
    %v1976 = vrot.slane %v1975, 1
    %v1977 = vadd.f32 %v1975, %v1976
    %v1978 = vmul.f32 %v1977, 0.03125
    %v1979 = vmul.f32 %v1964, %v1964
    %v1980 = vsub.f32 %v1978, %v1979
    %v1981 = vmax.f32 %v1980, 0.0
    %v1982 = vadd.f32 %v1981, 1e-05
    %v1983 = vrsqrt.pop %v1982
    %v1984 = vmul.f32 %v1983, %v1982
    %v1985 = vmul.f32 %v1984, %v1983
    %v1986 = vmul.f32 0.5, %v1985
    %v1987 = vsub.f32 1.5, %v1986
    %v1988 = vmul.f32 %v1983, %v1987
    %vm1989 = vweird.f32 %v1982
    %vm1990 = vweird.f32 %v1983
    %vm1991 = vmor %vm1989, %vm1990
    %v1992 = vsel %vm1991, %v1983, %v1988
    %v1993 = vmul.f32 %v1953, %v1992
    %v1994 = vmul.f32 %v1964, %v1993
    %v1995 = vsub.f32 %v1954, %v1994
    %v1997 = vperm.slane %v1993, 0
    %v1999 = vmul.f32 %v1944, %v1997
    %v2000 = vmul.f32 %v1946, %v1997
    %v2001 = vmul.f32 %v1949, %v1997
    %v2002 = vmul.f32 %v1951, %v1997
    %v2004 = vperm.slane %v1995, 0
    %v2006 = vadd.f32 %v1999, %v2004
    %v2007 = vadd.f32 %v2000, %v2004
    %v2008 = vadd.f32 %v2001, %v2004
    %v2009 = vadd.f32 %v2002, %v2004
    %v2010 = vadd.f32 %v2006, %v1866
    %v2011 = vadd.f32 %v2007, %v1867
    %v2012 = vadd.f32 %v2008, %v1868
    %v2013 = vadd.f32 %v2009, %v1869
    %v2014 = vmax.f32 %v2010, 0.0
    %v2015 = vmax.f32 %v2011, 0.0
    %v2016 = vmax.f32 %v2012, 0.0
    %v2017 = vmax.f32 %v2013, 0.0
    %2018 = vst [vmem:[#allocation5] sm:$0xff] %v2014
    %2019 = vst [vmem:[#allocation5 + $0x8] sm:$0xff] %v2015
    %2020 = vst [vmem:[#allocation5 + $0x10] sm:$0xff] %v2016
    %2021 = vst [vmem:[#allocation5 + $0x18] sm:$0xff] %v2017
    %v2022 = vld [vmem:[#allocation5] sm:$0xff]
    %v2023 = vld [vmem:[#allocation5 + $0x8] sm:$0xff]
    %v2024 = vld [vmem:[#allocation5 + $0x10] sm:$0xff]
    %v2025 = vld [vmem:[#allocation5 + $0x18] sm:$0xff]
    %v2026 = vpack.c.bf16 %v2023, %v2022
    %v2027 = vpack.c.bf16 %v2025, %v2024
    %v2028 = vld [vmem:[#allocation16] sm:$0xf]
    %v2029 = vld [vmem:[#allocation16 + $0x4] sm:$0xf]
    %v2030 = vld [vmem:[#allocation16 + $0x8] sm:$0xf]
    %v2031 = vld [vmem:[#allocation16 + $0xc] sm:$0xf]
    %v2032 = vld [vmem:[#allocation16 + $0x10] sm:$0xf]
    %v2033 = vld [vmem:[#allocation16 + $0x14] sm:$0xf]
    %v2034 = vld [vmem:[#allocation16 + $0x18] sm:$0xf]
    %v2035 = vld [vmem:[#allocation16 + $0x1c] sm:$0xf]
    %v2036 = vld [vmem:[#allocation16 + $0x20] sm:$0xf]
    %v2037 = vld [vmem:[#allocation16 + $0x24] sm:$0xf]
    %v2038 = vld [vmem:[#allocation16 + $0x28] sm:$0xf]
    %v2039 = vld [vmem:[#allocation16 + $0x2c] sm:$0xf]
    %v2040 = vld [vmem:[#allocation16 + $0x30] sm:$0xf]
    %v2041 = vld [vmem:[#allocation16 + $0x34] sm:$0xf]
    %v2042 = vld [vmem:[#allocation16 + $0x38] sm:$0xf]
    %v2043 = vld [vmem:[#allocation16 + $0x3c] sm:$0xf]
    %v2060 = vunpack.c.l.b16 %v2028
    %v2061 = vunpack.c.l.b16 %v2029
    %v2062 = vunpack.c.l.b16 %v2030
    %v2063 = vunpack.c.l.b16 %v2031
    %v2064 = vunpack.c.l.b16 %v2032
    %v2065 = vunpack.c.l.b16 %v2033
    %v2066 = vunpack.c.l.b16 %v2034
    %v2067 = vunpack.c.l.b16 %v2035
    %v2068 = vunpack.c.l.b16 %v2036
    %v2069 = vunpack.c.l.b16 %v2037
    %v2070 = vunpack.c.l.b16 %v2038
    %v2071 = vunpack.c.l.b16 %v2039
    %v2072 = vunpack.c.l.b16 %v2040
    %v2073 = vunpack.c.l.b16 %v2041
    %v2074 = vunpack.c.l.b16 %v2042
    %v2075 = vunpack.c.l.b16 %v2043
    %v2076 = vpack.c.b16 %v2061, %v2060
    %v2077 = vpack.c.b16 %v2063, %v2062
    %v2078 = vpack.c.b16 %v2065, %v2064
    %v2079 = vpack.c.b16 %v2067, %v2066
    %v2080 = vpack.c.b16 %v2069, %v2068
    %v2081 = vpack.c.b16 %v2071, %v2070
    %v2082 = vpack.c.b16 %v2073, %v2072
    %v2083 = vpack.c.b16 %v2075, %v2074
    %2092 = vmatpush.bf16.msra.mxu0 %v2083
    %2093 = vmatpush.bf16.msra.mxu0 %v2082
    %2094 = vmatpush.bf16.msra.mxu0 %v2081
    %2095 = vmatpush.bf16.msra.mxu0 %v2080
    %2096 = vmatpush.bf16.msra.mxu0 %v2079
    %2097 = vmatpush.bf16.msra.mxu0 %v2078
    %2098 = vmatpush.bf16.msra.mxu0 %v2077
    %2099 = vmatpush.bf16.msra.mxu0 %v2076
    %2100 = vmatmul.bf16.gmra.mxu0 %v2026
    %v2101 = vpop.f32.mrf.mxu0
    %v2102 = vadd.f32 0.0, %v2101
    %v2103 = vpop.f32.mrf.mxu0
    %v2104 = vadd.f32 0.0, %v2103
    %2105 = vmatmul.bf16.gmra.mxu0 %v2027
    %v2106 = vpop.f32.mrf.mxu0
    %v2107 = vadd.f32 0.0, %v2106
    %v2108 = vpop.f32.mrf.mxu0
    %v2109 = vadd.f32 0.0, %v2108
    %2110 = vdwg.mxu0
    %v2111 = vld [vmem:[%s14] sm:$0x1]
    %v2112 = vld [vmem:[%s15] sm:$0x1]
    %v2113 = vadd.f32 %v2102, %v2104
    %v2114 = vadd.f32 %v2113, %v2107
    %v2115 = vadd.f32 %v2114, %v2109
    %v2116 = vrot.slane %v2115, 4
    %v2117 = vadd.f32 %v2115, %v2116
    %v2118 = vrot.slane %v2117, 2
    %v2119 = vadd.f32 %v2117, %v2118
    %v2120 = vrot.slane %v2119, 1
    %v2121 = vadd.f32 %v2119, %v2120
    %v2122 = vmul.f32 %v2121, 0.03125
    %v2123 = vmul.f32 %v2102, %v2102
    %v2124 = vmul.f32 %v2104, %v2104
    %v2125 = vmul.f32 %v2107, %v2107
    %v2126 = vmul.f32 %v2109, %v2109
    %v2127 = vadd.f32 %v2123, %v2124
    %v2128 = vadd.f32 %v2127, %v2125
    %v2129 = vadd.f32 %v2128, %v2126
    %v2130 = vrot.slane %v2129, 4
    %v2131 = vadd.f32 %v2129, %v2130
    %v2132 = vrot.slane %v2131, 2
    %v2133 = vadd.f32 %v2131, %v2132
    %v2134 = vrot.slane %v2133, 1
    %v2135 = vadd.f32 %v2133, %v2134
    %v2136 = vmul.f32 %v2135, 0.03125
    %v2137 = vmul.f32 %v2122, %v2122
    %v2138 = vsub.f32 %v2136, %v2137
    %v2139 = vmax.f32 %v2138, 0.0
    %v2140 = vadd.f32 %v2139, 1e-05
    %v2141 = vrsqrt.pop %v2140
    %v2142 = vmul.f32 %v2141, %v2140
    %v2143 = vmul.f32 %v2142, %v2141
    %v2144 = vmul.f32 0.5, %v2143
    %v2145 = vsub.f32 1.5, %v2144
    %v2146 = vmul.f32 %v2141, %v2145
    %vm2147 = vweird.f32 %v2140
    %vm2148 = vweird.f32 %v2141
    %vm2149 = vmor %vm2147, %vm2148
    %v2150 = vsel %vm2149, %v2141, %v2146
    %v2151 = vmul.f32 %v2111, %v2150
    %v2152 = vmul.f32 %v2122, %v2151
    %v2153 = vsub.f32 %v2112, %v2152
    %v2155 = vperm.slane %v2151, 0
    %v2157 = vmul.f32 %v2102, %v2155
    %v2158 = vmul.f32 %v2104, %v2155
    %v2159 = vmul.f32 %v2107, %v2155
    %v2160 = vmul.f32 %v2109, %v2155
    %v2162 = vperm.slane %v2153, 0
    %v2164 = vadd.f32 %v2157, %v2162
    %v2165 = vadd.f32 %v2158, %v2162
    %v2166 = vadd.f32 %v2159, %v2162
    %v2167 = vadd.f32 %v2160, %v2162
    %v2168 = vmax.f32 %v2164, 0.0
    %v2169 = vmax.f32 %v2165, 0.0
    %v2170 = vmax.f32 %v2166, 0.0
    %v2171 = vmax.f32 %v2167, 0.0
    %2172 = vst [vmem:[#allocation2] sm:$0xff] 0.0
    %2173 = vst [vmem:[#allocation2 + $0x8] sm:$0xff] 0.0
    %2174 = vst [vmem:[#allocation2 + $0x10] sm:$0xff] 0.0
    %2175 = vst [vmem:[#allocation2 + $0x18] sm:$0xff] 0.0
    %2176 = vst [vmem:[#allocation2 + $0x20] sm:$0xff] 0.0
    %2177 = vst [vmem:[#allocation2 + $0x28] sm:$0xff] 0.0
    %2178 = vst [vmem:[#allocation2 + $0x30] sm:$0xff] 0.0
    %2179 = vst [vmem:[#allocation2 + $0x38] sm:$0xff] 0.0
    %2180 = vst [vmem:[#allocation2 + $0x40] sm:$0xff] 0.0
    %2181 = vst [vmem:[#allocation2 + $0x7] sm:$0xf] %v2168
    %2182 = vst [vmem:[#allocation2 + $0x9] sm:$0xf0] %v2168
    %2183 = vst [vmem:[#allocation2 + $0x13] sm:$0xf] %v2169
    %2184 = vst [vmem:[#allocation2 + $0x15] sm:$0xf0] %v2169
    %2185 = vst [vmem:[#allocation2 + $0x2b] sm:$0xf] %v2170
    %2186 = vst [vmem:[#allocation2 + $0x2d] sm:$0xf0] %v2170
    %2187 = vst [vmem:[#allocation2 + $0x37] sm:$0xf] %v2171
    %2188 = vst [vmem:[#allocation2 + $0x39] sm:$0xf0] %v2171
    %v2189 = vld [vmem:[#allocation2] sm:$0xf]
    %2190 = vst [vmem:[#allocation3] sm:$0xf] %v2189
    %v2191 = vld [vmem:[#allocation2 + $0x1] sm:$0xf]
    %2192 = vst [vmem:[#allocation3 + $0x8] sm:$0xf] %v2191
    %v2193 = vld [vmem:[#allocation2 + $0x2] sm:$0xf]
    %2194 = vst [vmem:[#allocation3 + $0x10] sm:$0xf] %v2193
    %v2195 = vld [vmem:[#allocation2 + $0x6] sm:$0xf]
    %2196 = vst [vmem:[#allocation3 + $0x18] sm:$0xf] %v2195
    %v2197 = vld [vmem:[#allocation2 + $0x7] sm:$0xf]
    %2198 = vst [vmem:[#allocation3 + $0x20] sm:$0xf] %v2197
    %v2199 = vld [vmem:[#allocation2 + $0x8] sm:$0xf]
    %2200 = vst [vmem:[#allocation3 + $0x28] sm:$0xf] %v2199
    %v2201 = vld [vmem:[#allocation2 + $0xc] sm:$0xf]
    %2202 = vst [vmem:[#allocation3 + $0x30] sm:$0xf] %v2201
    %v2203 = vld [vmem:[#allocation2 + $0xd] sm:$0xf]
    %2204 = vst [vmem:[#allocation3 + $0x38] sm:$0xf] %v2203
    %v2205 = vld [vmem:[#allocation2 + $0xe] sm:$0xf]
    %2206 = vst [vmem:[#allocation3 + $0x40] sm:$0xf] %v2205
    %v2207 = vld [vmem:[#allocation2 + $0x6] sm:$0xf]
    %v2209 = vrot.slane %v2207, 4
    %2211 = vst [vmem:[#allocation3] sm:$0xf0] %v2209
    %v2212 = vld [vmem:[#allocation2 + $0x7] sm:$0xf]
    %v2214 = vrot.slane %v2212, 4
    %2216 = vst [vmem:[#allocation3 + $0x8] sm:$0xf0] %v2214
    %v2217 = vld [vmem:[#allocation2 + $0x8] sm:$0xf]
    %v2219 = vrot.slane %v2217, 4
    %2221 = vst [vmem:[#allocation3 + $0x10] sm:$0xf0] %v2219
    %v2222 = vld [vmem:[#allocation2 + $0xc] sm:$0xf]
    %v2224 = vrot.slane %v2222, 4
    %2226 = vst [vmem:[#allocation3 + $0x18] sm:$0xf0] %v2224
    %v2227 = vld [vmem:[#allocation2 + $0xd] sm:$0xf]
    %v2229 = vrot.slane %v2227, 4
    %2231 = vst [vmem:[#allocation3 + $0x20] sm:$0xf0] %v2229
    %v2232 = vld [vmem:[#allocation2 + $0xe] sm:$0xf]
    %v2234 = vrot.slane %v2232, 4
    %2236 = vst [vmem:[#allocation3 + $0x28] sm:$0xf0] %v2234
    %v2237 = vld [vmem:[#allocation2 + $0x12] sm:$0xf]
    %v2239 = vrot.slane %v2237, 4
    %2241 = vst [vmem:[#allocation3 + $0x30] sm:$0xf0] %v2239
    %v2242 = vld [vmem:[#allocation2 + $0x13] sm:$0xf]
    %v2244 = vrot.slane %v2242, 4
    %2246 = vst [vmem:[#allocation3 + $0x38] sm:$0xf0] %v2244
    %v2247 = vld [vmem:[#allocation2 + $0x14] sm:$0xf]
    %v2249 = vrot.slane %v2247, 4
    %2251 = vst [vmem:[#allocation3 + $0x40] sm:$0xf0] %v2249
    %v2252 = vld [vmem:[#allocation2 + $0xc] sm:$0xf]
    %2253 = vst [vmem:[#allocation3 + $0x48] sm:$0xf] %v2252
    %v2254 = vld [vmem:[#allocation2 + $0xd] sm:$0xf]
    %2255 = vst [vmem:[#allocation3 + $0x50] sm:$0xf] %v2254
    %v2256 = vld [vmem:[#allocation2 + $0xe] sm:$0xf]
    %2257 = vst [vmem:[#allocation3 + $0x58] sm:$0xf] %v2256
    %v2258 = vld [vmem:[#allocation2 + $0x12] sm:$0xf]
    %2259 = vst [vmem:[#allocation3 + $0x60] sm:$0xf] %v2258
    %v2260 = vld [vmem:[#allocation2 + $0x13] sm:$0xf]
    %2261 = vst [vmem:[#allocation3 + $0x68] sm:$0xf] %v2260
    %v2262 = vld [vmem:[#allocation2 + $0x14] sm:$0xf]
    %2263 = vst [vmem:[#allocation3 + $0x70] sm:$0xf] %v2262
    %v2264 = vld [vmem:[#allocation2 + $0x18] sm:$0xf]
    %2265 = vst [vmem:[#allocation3 + $0x78] sm:$0xf] %v2264
    %v2266 = vld [vmem:[#allocation2 + $0x19] sm:$0xf]
    %2267 = vst [vmem:[#allocation3 + $0x80] sm:$0xf] %v2266
    %v2268 = vld [vmem:[#allocation2 + $0x1a] sm:$0xf]
    %2269 = vst [vmem:[#allocation3 + $0x88] sm:$0xf] %v2268
    %v2270 = vld [vmem:[#allocation2 + $0x12] sm:$0xf]
    %v2272 = vrot.slane %v2270, 4
    %2274 = vst [vmem:[#allocation3 + $0x48] sm:$0xf0] %v2272
    %v2275 = vld [vmem:[#allocation2 + $0x13] sm:$0xf]
    %v2277 = vrot.slane %v2275, 4
    %2279 = vst [vmem:[#allocation3 + $0x50] sm:$0xf0] %v2277
    %v2280 = vld [vmem:[#allocation2 + $0x14] sm:$0xf]
    %v2282 = vrot.slane %v2280, 4
    %2284 = vst [vmem:[#allocation3 + $0x58] sm:$0xf0] %v2282
    %v2285 = vld [vmem:[#allocation2 + $0x18] sm:$0xf]
    %v2287 = vrot.slane %v2285, 4
    %2289 = vst [vmem:[#allocation3 + $0x60] sm:$0xf0] %v2287
    %v2290 = vld [vmem:[#allocation2 + $0x19] sm:$0xf]
    %v2292 = vrot.slane %v2290, 4
    %2294 = vst [vmem:[#allocation3 + $0x68] sm:$0xf0] %v2292
    %v2295 = vld [vmem:[#allocation2 + $0x1a] sm:$0xf]
    %v2297 = vrot.slane %v2295, 4
    %2299 = vst [vmem:[#allocation3 + $0x70] sm:$0xf0] %v2297
    %v2300 = vld [vmem:[#allocation2 + $0x1e] sm:$0xf]
    %v2302 = vrot.slane %v2300, 4
    %2304 = vst [vmem:[#allocation3 + $0x78] sm:$0xf0] %v2302
    %v2305 = vld [vmem:[#allocation2 + $0x1f] sm:$0xf]
    %v2307 = vrot.slane %v2305, 4
    %2309 = vst [vmem:[#allocation3 + $0x80] sm:$0xf0] %v2307
    %v2310 = vld [vmem:[#allocation2 + $0x20] sm:$0xf]
    %v2312 = vrot.slane %v2310, 4
    %2314 = vst [vmem:[#allocation3 + $0x88] sm:$0xf0] %v2312
    %v2315 = vld [vmem:[#allocation2 + $0x24] sm:$0xf]
    %2316 = vst [vmem:[#allocation3 + $0x90] sm:$0xf] %v2315
    %v2317 = vld [vmem:[#allocation2 + $0x25] sm:$0xf]
    %2318 = vst [vmem:[#allocation3 + $0x98] sm:$0xf] %v2317
    %v2319 = vld [vmem:[#allocation2 + $0x26] sm:$0xf]
    %2320 = vst [vmem:[#allocation3 + $0xa0] sm:$0xf] %v2319
    %v2321 = vld [vmem:[#allocation2 + $0x2a] sm:$0xf]
    %2322 = vst [vmem:[#allocation3 + $0xa8] sm:$0xf] %v2321
    %v2323 = vld [vmem:[#allocation2 + $0x2b] sm:$0xf]
    %2324 = vst [vmem:[#allocation3 + $0xb0] sm:$0xf] %v2323
    %v2325 = vld [vmem:[#allocation2 + $0x2c] sm:$0xf]
    %2326 = vst [vmem:[#allocation3 + $0xb8] sm:$0xf] %v2325
    %v2327 = vld [vmem:[#allocation2 + $0x30] sm:$0xf]
    %2328 = vst [vmem:[#allocation3 + $0xc0] sm:$0xf] %v2327
    %v2329 = vld [vmem:[#allocation2 + $0x31] sm:$0xf]
    %2330 = vst [vmem:[#allocation3 + $0xc8] sm:$0xf] %v2329
    %v2331 = vld [vmem:[#allocation2 + $0x32] sm:$0xf]
    %2332 = vst [vmem:[#allocation3 + $0xd0] sm:$0xf] %v2331
    %v2333 = vld [vmem:[#allocation2 + $0x2a] sm:$0xf]
    %v2335 = vrot.slane %v2333, 4
    %2337 = vst [vmem:[#allocation3 + $0x90] sm:$0xf0] %v2335
    %v2338 = vld [vmem:[#allocation2 + $0x2b] sm:$0xf]
    %v2340 = vrot.slane %v2338, 4
    %2342 = vst [vmem:[#allocation3 + $0x98] sm:$0xf0] %v2340
    %v2343 = vld [vmem:[#allocation2 + $0x2c] sm:$0xf]
    %v2345 = vrot.slane %v2343, 4
    %2347 = vst [vmem:[#allocation3 + $0xa0] sm:$0xf0] %v2345
    %v2348 = vld [vmem:[#allocation2 + $0x30] sm:$0xf]
    %v2350 = vrot.slane %v2348, 4
    %2352 = vst [vmem:[#allocation3 + $0xa8] sm:$0xf0] %v2350
    %v2353 = vld [vmem:[#allocation2 + $0x31] sm:$0xf]
    %v2355 = vrot.slane %v2353, 4
    %2357 = vst [vmem:[#allocation3 + $0xb0] sm:$0xf0] %v2355
    %v2358 = vld [vmem:[#allocation2 + $0x32] sm:$0xf]
    %v2360 = vrot.slane %v2358, 4
    %2362 = vst [vmem:[#allocation3 + $0xb8] sm:$0xf0] %v2360
    %v2363 = vld [vmem:[#allocation2 + $0x36] sm:$0xf]
    %v2365 = vrot.slane %v2363, 4
    %2367 = vst [vmem:[#allocation3 + $0xc0] sm:$0xf0] %v2365
    %v2368 = vld [vmem:[#allocation2 + $0x37] sm:$0xf]
    %v2370 = vrot.slane %v2368, 4
    %2372 = vst [vmem:[#allocation3 + $0xc8] sm:$0xf0] %v2370
    %v2373 = vld [vmem:[#allocation2 + $0x38] sm:$0xf]
    %v2375 = vrot.slane %v2373, 4
    %2377 = vst [vmem:[#allocation3 + $0xd0] sm:$0xf0] %v2375
    %v2378 = vld [vmem:[#allocation2 + $0x30] sm:$0xf]
    %2379 = vst [vmem:[#allocation3 + $0xd8] sm:$0xf] %v2378
    %v2380 = vld [vmem:[#allocation2 + $0x31] sm:$0xf]
    %2381 = vst [vmem:[#allocation3 + $0xe0] sm:$0xf] %v2380
    %v2382 = vld [vmem:[#allocation2 + $0x32] sm:$0xf]
    %2383 = vst [vmem:[#allocation3 + $0xe8] sm:$0xf] %v2382
    %v2384 = vld [vmem:[#allocation2 + $0x36] sm:$0xf]
    %2385 = vst [vmem:[#allocation3 + $0xf0] sm:$0xf] %v2384
    %v2386 = vld [vmem:[#allocation2 + $0x37] sm:$0xf]
    %2387 = vst [vmem:[#allocation3 + $0xf8] sm:$0xf] %v2386
    %v2388 = vld [vmem:[#allocation2 + $0x38] sm:$0xf]
    %2389 = vst [vmem:[#allocation3 + $0x100] sm:$0xf] %v2388
    %v2390 = vld [vmem:[#allocation2 + $0x3c] sm:$0xf]
    %2391 = vst [vmem:[#allocation3 + $0x108] sm:$0xf] %v2390
    %v2392 = vld [vmem:[#allocation2 + $0x3d] sm:$0xf]
    %2393 = vst [vmem:[#allocation3 + $0x110] sm:$0xf] %v2392
    %v2394 = vld [vmem:[#allocation2 + $0x3e] sm:$0xf]
    %2395 = vst [vmem:[#allocation3 + $0x118] sm:$0xf] %v2394
    %v2396 = vld [vmem:[#allocation2 + $0x36] sm:$0xf]
    %v2398 = vrot.slane %v2396, 4
    %2400 = vst [vmem:[#allocation3 + $0xd8] sm:$0xf0] %v2398
    %v2401 = vld [vmem:[#allocation2 + $0x37] sm:$0xf]
    %v2403 = vrot.slane %v2401, 4
    %2405 = vst [vmem:[#allocation3 + $0xe0] sm:$0xf0] %v2403
    %v2406 = vld [vmem:[#allocation2 + $0x38] sm:$0xf]
    %v2408 = vrot.slane %v2406, 4
    %2410 = vst [vmem:[#allocation3 + $0xe8] sm:$0xf0] %v2408
    %v2411 = vld [vmem:[#allocation2 + $0x3c] sm:$0xf]
    %v2413 = vrot.slane %v2411, 4
    %2415 = vst [vmem:[#allocation3 + $0xf0] sm:$0xf0] %v2413
    %v2416 = vld [vmem:[#allocation2 + $0x3d] sm:$0xf]
    %v2418 = vrot.slane %v2416, 4
    %2420 = vst [vmem:[#allocation3 + $0xf8] sm:$0xf0] %v2418
    %v2421 = vld [vmem:[#allocation2 + $0x3e] sm:$0xf]
    %v2423 = vrot.slane %v2421, 4
    %2425 = vst [vmem:[#allocation3 + $0x100] sm:$0xf0] %v2423
    %v2426 = vld [vmem:[#allocation2 + $0x42] sm:$0xf]
    %v2428 = vrot.slane %v2426, 4
    %2430 = vst [vmem:[#allocation3 + $0x108] sm:$0xf0] %v2428
    %v2431 = vld [vmem:[#allocation2 + $0x43] sm:$0xf]
    %v2433 = vrot.slane %v2431, 4
    %2435 = vst [vmem:[#allocation3 + $0x110] sm:$0xf0] %v2433
    %v2436 = vld [vmem:[#allocation2 + $0x44] sm:$0xf]
    %v2438 = vrot.slane %v2436, 4
    %2440 = vst [vmem:[#allocation3 + $0x118] sm:$0xf0] %v2438
    %v2441 = vld [vmem:[#allocation3] sm:$0xff]
    %v2442 = vld [vmem:[#allocation3 + $0x8] sm:$0xff]
    %v2443 = vld [vmem:[#allocation3 + $0x10] sm:$0xff]
    %v2444 = vld [vmem:[#allocation3 + $0x18] sm:$0xff]
    %v2445 = vld [vmem:[#allocation3 + $0x20] sm:$0xff]
    %v2446 = vld [vmem:[#allocation3 + $0x28] sm:$0xff]
    %v2447 = vld [vmem:[#allocation3 + $0x30] sm:$0xff]
    %v2448 = vld [vmem:[#allocation3 + $0x38] sm:$0xff]
    %v2449 = vld [vmem:[#allocation3 + $0x40] sm:$0xff]
    %v2450 = vld [vmem:[#allocation3 + $0x48] sm:$0xff]
    %v2451 = vld [vmem:[#allocation3 + $0x50] sm:$0xff]
    %v2452 = vld [vmem:[#allocation3 + $0x58] sm:$0xff]
    %v2453 = vld [vmem:[#allocation3 + $0x60] sm:$0xff]
    %v2454 = vld [vmem:[#allocation3 + $0x68] sm:$0xff]
    %v2455 = vld [vmem:[#allocation3 + $0x70] sm:$0xff]
    %v2456 = vld [vmem:[#allocation3 + $0x78] sm:$0xff]
    %v2457 = vld [vmem:[#allocation3 + $0x80] sm:$0xff]
    %v2458 = vld [vmem:[#allocation3 + $0x88] sm:$0xff]
    %v2459 = vld [vmem:[#allocation3 + $0x90] sm:$0xff]
    %v2460 = vld [vmem:[#allocation3 + $0x98] sm:$0xff]
    %v2461 = vld [vmem:[#allocation3 + $0xa0] sm:$0xff]
    %v2462 = vld [vmem:[#allocation3 + $0xa8] sm:$0xff]
    %v2463 = vld [vmem:[#allocation3 + $0xb0] sm:$0xff]
    %v2464 = vld [vmem:[#allocation3 + $0xb8] sm:$0xff]
    %v2465 = vld [vmem:[#allocation3 + $0xc0] sm:$0xff]
    %v2466 = vld [vmem:[#allocation3 + $0xc8] sm:$0xff]
    %v2467 = vld [vmem:[#allocation3 + $0xd0] sm:$0xff]
    %v2468 = vld [vmem:[#allocation3 + $0xd8] sm:$0xff]
    %v2469 = vld [vmem:[#allocation3 + $0xe0] sm:$0xff]
    %v2470 = vld [vmem:[#allocation3 + $0xe8] sm:$0xff]
    %v2471 = vld [vmem:[#allocation3 + $0xf0] sm:$0xff]
    %v2472 = vld [vmem:[#allocation3 + $0xf8] sm:$0xff]
    %v2473 = vld [vmem:[#allocation3 + $0x100] sm:$0xff]
    %v2474 = vld [vmem:[#allocation3 + $0x108] sm:$0xff]
    %v2475 = vld [vmem:[#allocation3 + $0x110] sm:$0xff]
    %v2476 = vld [vmem:[#allocation3 + $0x118] sm:$0xff]
    %v2477 = vpack.c.bf16 %v2450, %v2441
    %v2478 = vpack.c.bf16 %v2451, %v2442
    %v2479 = vpack.c.bf16 %v2452, %v2443
    %v2480 = vpack.c.bf16 %v2453, %v2444
    %v2481 = vpack.c.bf16 %v2454, %v2445
    %v2482 = vpack.c.bf16 %v2455, %v2446
    %v2483 = vpack.c.bf16 %v2456, %v2447
    %v2484 = vpack.c.bf16 %v2457, %v2448
    %v2485 = vpack.c.bf16 %v2458, %v2449
    %v2486 = vpack.c.bf16 %v2468, %v2459
    %v2487 = vpack.c.bf16 %v2469, %v2460
    %v2488 = vpack.c.bf16 %v2470, %v2461
    %v2489 = vpack.c.bf16 %v2471, %v2462
    %v2490 = vpack.c.bf16 %v2472, %v2463
    %v2491 = vpack.c.bf16 %v2473, %v2464
    %v2492 = vpack.c.bf16 %v2474, %v2465
    %v2493 = vpack.c.bf16 %v2475, %v2466
    %v2494 = vpack.c.bf16 %v2476, %v2467
    %v2495 = vld [vmem:[#allocation18] sm:$0xf]
    %v2496 = vld [vmem:[#allocation18 + $0x4] sm:$0xf]
    %v2497 = vld [vmem:[#allocation18 + $0x8] sm:$0xf]
    %v2498 = vld [vmem:[#allocation18 + $0xc] sm:$0xf]
    %v2499 = vld [vmem:[#allocation18 + $0x10] sm:$0xf]
    %v2500 = vld [vmem:[#allocation18 + $0x14] sm:$0xf]
    %v2501 = vld [vmem:[#allocation18 + $0x18] sm:$0xf]
    %v2502 = vld [vmem:[#allocation18 + $0x1c] sm:$0xf]
    %v2503 = vld [vmem:[#allocation18 + $0x20] sm:$0xf]
    %v2504 = vld [vmem:[#allocation18 + $0x24] sm:$0xf]
    %v2505 = vld [vmem:[#allocation18 + $0x28] sm:$0xf]
    %v2506 = vld [vmem:[#allocation18 + $0x2c] sm:$0xf]
    %v2507 = vld [vmem:[#allocation18 + $0x30] sm:$0xf]
    %v2508 = vld [vmem:[#allocation18 + $0x34] sm:$0xf]
    %v2509 = vld [vmem:[#allocation18 + $0x38] sm:$0xf]
    %v2510 = vld [vmem:[#allocation18 + $0x3c] sm:$0xf]
    %v2511 = vld [vmem:[#allocation18 + $0x40] sm:$0xf]
    %v2512 = vld [vmem:[#allocation18 + $0x44] sm:$0xf]
    %v2513 = vld [vmem:[#allocation18 + $0x48] sm:$0xf]
    %v2514 = vld [vmem:[#allocation18 + $0x4c] sm:$0xf]
    %v2515 = vld [vmem:[#allocation18 + $0x50] sm:$0xf]
    %v2516 = vld [vmem:[#allocation18 + $0x54] sm:$0xf]
    %v2517 = vld [vmem:[#allocation18 + $0x58] sm:$0xf]
    %v2518 = vld [vmem:[#allocation18 + $0x5c] sm:$0xf]
    %v2519 = vld [vmem:[#allocation18 + $0x60] sm:$0xf]
    %v2520 = vld [vmem:[#allocation18 + $0x64] sm:$0xf]
    %v2521 = vld [vmem:[#allocation18 + $0x68] sm:$0xf]
    %v2522 = vld [vmem:[#allocation18 + $0x6c] sm:$0xf]
    %v2523 = vld [vmem:[#allocation18 + $0x70] sm:$0xf]
    %v2524 = vld [vmem:[#allocation18 + $0x74] sm:$0xf]
    %v2525 = vld [vmem:[#allocation18 + $0x78] sm:$0xf]
    %v2526 = vld [vmem:[#allocation18 + $0x7c] sm:$0xf]
    %v2527 = vld [vmem:[#allocation18 + $0x80] sm:$0xf]
    %v2528 = vld [vmem:[#allocation18 + $0x84] sm:$0xf]
    %v2529 = vld [vmem:[#allocation18 + $0x88] sm:$0xf]
    %v2530 = vld [vmem:[#allocation18 + $0x8c] sm:$0xf]
    %v2531 = vld [vmem:[#allocation18 + $0x90] sm:$0xf]
    %v2532 = vld [vmem:[#allocation18 + $0x94] sm:$0xf]
    %v2533 = vld [vmem:[#allocation18 + $0x98] sm:$0xf]
    %v2534 = vld [vmem:[#allocation18 + $0x9c] sm:$0xf]
    %v2535 = vld [vmem:[#allocation18 + $0xa0] sm:$0xf]
    %v2536 = vld [vmem:[#allocation18 + $0xa4] sm:$0xf]
    %v2537 = vld [vmem:[#allocation18 + $0xa8] sm:$0xf]
    %v2538 = vld [vmem:[#allocation18 + $0xac] sm:$0xf]
    %v2539 = vld [vmem:[#allocation18 + $0xb0] sm:$0xf]
    %v2540 = vld [vmem:[#allocation18 + $0xb4] sm:$0xf]
    %v2541 = vld [vmem:[#allocation18 + $0xb8] sm:$0xf]
    %v2542 = vld [vmem:[#allocation18 + $0xbc] sm:$0xf]
    %v2543 = vld [vmem:[#allocation18 + $0xc0] sm:$0xf]
    %v2544 = vld [vmem:[#allocation18 + $0xc4] sm:$0xf]
    %v2545 = vld [vmem:[#allocation18 + $0xc8] sm:$0xf]
    %v2546 = vld [vmem:[#allocation18 + $0xcc] sm:$0xf]
    %v2547 = vld [vmem:[#allocation18 + $0xd0] sm:$0xf]
    %v2548 = vld [vmem:[#allocation18 + $0xd4] sm:$0xf]
    %v2549 = vld [vmem:[#allocation18 + $0xd8] sm:$0xf]
    %v2550 = vld [vmem:[#allocation18 + $0xdc] sm:$0xf]
    %v2551 = vld [vmem:[#allocation18 + $0xe0] sm:$0xf]
    %v2552 = vld [vmem:[#allocation18 + $0xe4] sm:$0xf]
    %v2553 = vld [vmem:[#allocation18 + $0xe8] sm:$0xf]
    %v2554 = vld [vmem:[#allocation18 + $0xec] sm:$0xf]
    %v2555 = vld [vmem:[#allocation18 + $0xf0] sm:$0xf]
    %v2556 = vld [vmem:[#allocation18 + $0xf4] sm:$0xf]
    %v2557 = vld [vmem:[#allocation18 + $0xf8] sm:$0xf]
    %v2558 = vld [vmem:[#allocation18 + $0xfc] sm:$0xf]
    %v2559 = vld [vmem:[#allocation18 + $0x100] sm:$0xf]
    %v2560 = vld [vmem:[#allocation18 + $0x104] sm:$0xf]
    %v2561 = vld [vmem:[#allocation18 + $0x108] sm:$0xf]
    %v2562 = vld [vmem:[#allocation18 + $0x10c] sm:$0xf]
    %v2563 = vld [vmem:[#allocation18 + $0x110] sm:$0xf]
    %v2564 = vld [vmem:[#allocation18 + $0x114] sm:$0xf]
    %v2565 = vld [vmem:[#allocation18 + $0x118] sm:$0xf]
    %v2566 = vld [vmem:[#allocation18 + $0x11c] sm:$0xf]
    %v2567 = vld [vmem:[#allocation18 + $0x120] sm:$0xf]
    %v2568 = vld [vmem:[#allocation18 + $0x124] sm:$0xf]
    %v2569 = vld [vmem:[#allocation18 + $0x128] sm:$0xf]
    %v2570 = vld [vmem:[#allocation18 + $0x12c] sm:$0xf]
    %v2571 = vld [vmem:[#allocation18 + $0x130] sm:$0xf]
    %v2572 = vld [vmem:[#allocation18 + $0x134] sm:$0xf]
    %v2573 = vld [vmem:[#allocation18 + $0x138] sm:$0xf]
    %v2574 = vld [vmem:[#allocation18 + $0x13c] sm:$0xf]
    %v2575 = vld [vmem:[#allocation18 + $0x140] sm:$0xf]
    %v2576 = vld [vmem:[#allocation18 + $0x144] sm:$0xf]
    %v2577 = vld [vmem:[#allocation18 + $0x148] sm:$0xf]
    %v2578 = vld [vmem:[#allocation18 + $0x14c] sm:$0xf]
    %v2579 = vld [vmem:[#allocation18 + $0x150] sm:$0xf]
    %v2580 = vld [vmem:[#allocation18 + $0x154] sm:$0xf]
    %v2581 = vld [vmem:[#allocation18 + $0x158] sm:$0xf]
    %v2582 = vld [vmem:[#allocation18 + $0x15c] sm:$0xf]
    %v2583 = vld [vmem:[#allocation18 + $0x160] sm:$0xf]
    %v2584 = vld [vmem:[#allocation18 + $0x164] sm:$0xf]
    %v2585 = vld [vmem:[#allocation18 + $0x168] sm:$0xf]
    %v2586 = vld [vmem:[#allocation18 + $0x16c] sm:$0xf]
    %v2587 = vld [vmem:[#allocation18 + $0x170] sm:$0xf]
    %v2588 = vld [vmem:[#allocation18 + $0x174] sm:$0xf]
    %v2589 = vld [vmem:[#allocation18 + $0x178] sm:$0xf]
    %v2590 = vld [vmem:[#allocation18 + $0x17c] sm:$0xf]
    %v2591 = vld [vmem:[#allocation18 + $0x180] sm:$0xf]
    %v2592 = vld [vmem:[#allocation18 + $0x184] sm:$0xf]
    %v2593 = vld [vmem:[#allocation18 + $0x188] sm:$0xf]
    %v2594 = vld [vmem:[#allocation18 + $0x18c] sm:$0xf]
    %v2595 = vld [vmem:[#allocation18 + $0x190] sm:$0xf]
    %v2596 = vld [vmem:[#allocation18 + $0x194] sm:$0xf]
    %v2597 = vld [vmem:[#allocation18 + $0x198] sm:$0xf]
    %v2598 = vld [vmem:[#allocation18 + $0x19c] sm:$0xf]
    %v2599 = vld [vmem:[#allocation18 + $0x1a0] sm:$0xf]
    %v2600 = vld [vmem:[#allocation18 + $0x1a4] sm:$0xf]
    %v2601 = vld [vmem:[#allocation18 + $0x1a8] sm:$0xf]
    %v2602 = vld [vmem:[#allocation18 + $0x1ac] sm:$0xf]
    %v2603 = vld [vmem:[#allocation18 + $0x1b0] sm:$0xf]
    %v2604 = vld [vmem:[#allocation18 + $0x1b4] sm:$0xf]
    %v2605 = vld [vmem:[#allocation18 + $0x1b8] sm:$0xf]
    %v2606 = vld [vmem:[#allocation18 + $0x1bc] sm:$0xf]
    %v2607 = vld [vmem:[#allocation18 + $0x1c0] sm:$0xf]
    %v2608 = vld [vmem:[#allocation18 + $0x1c4] sm:$0xf]
    %v2609 = vld [vmem:[#allocation18 + $0x1c8] sm:$0xf]
    %v2610 = vld [vmem:[#allocation18 + $0x1cc] sm:$0xf]
    %v2611 = vld [vmem:[#allocation18 + $0x1d0] sm:$0xf]
    %v2612 = vld [vmem:[#allocation18 + $0x1d4] sm:$0xf]
    %v2613 = vld [vmem:[#allocation18 + $0x1d8] sm:$0xf]
    %v2614 = vld [vmem:[#allocation18 + $0x1dc] sm:$0xf]
    %v2615 = vld [vmem:[#allocation18 + $0x1e0] sm:$0xf]
    %v2616 = vld [vmem:[#allocation18 + $0x1e4] sm:$0xf]
    %v2617 = vld [vmem:[#allocation18 + $0x1e8] sm:$0xf]
    %v2618 = vld [vmem:[#allocation18 + $0x1ec] sm:$0xf]
    %v2619 = vld [vmem:[#allocation18 + $0x1f0] sm:$0xf]
    %v2620 = vld [vmem:[#allocation18 + $0x1f4] sm:$0xf]
    %v2621 = vld [vmem:[#allocation18 + $0x1f8] sm:$0xf]
    %v2622 = vld [vmem:[#allocation18 + $0x1fc] sm:$0xf]
    %v2623 = vld [vmem:[#allocation18 + $0x200] sm:$0xf]
    %v2624 = vld [vmem:[#allocation18 + $0x204] sm:$0xf]
    %v2625 = vld [vmem:[#allocation18 + $0x208] sm:$0xf]
    %v2626 = vld [vmem:[#allocation18 + $0x20c] sm:$0xf]
    %v2627 = vld [vmem:[#allocation18 + $0x210] sm:$0xf]
    %v2628 = vld [vmem:[#allocation18 + $0x214] sm:$0xf]
    %v2629 = vld [vmem:[#allocation18 + $0x218] sm:$0xf]
    %v2630 = vld [vmem:[#allocation18 + $0x21c] sm:$0xf]
    %v2631 = vld [vmem:[#allocation18 + $0x220] sm:$0xf]
    %v2632 = vld [vmem:[#allocation18 + $0x224] sm:$0xf]
    %v2633 = vld [vmem:[#allocation18 + $0x228] sm:$0xf]
    %v2634 = vld [vmem:[#allocation18 + $0x22c] sm:$0xf]
    %v2635 = vld [vmem:[#allocation18 + $0x230] sm:$0xf]
    %v2636 = vld [vmem:[#allocation18 + $0x234] sm:$0xf]
    %v2637 = vld [vmem:[#allocation18 + $0x238] sm:$0xf]
    %v2638 = vld [vmem:[#allocation18 + $0x23c] sm:$0xf]
    %v2783 = vunpack.c.l.b16 %v2495
    %v2784 = vunpack.c.l.b16 %v2496
    %v2785 = vunpack.c.l.b16 %v2497
    %v2786 = vunpack.c.l.b16 %v2498
    %v2787 = vunpack.c.l.b16 %v2499
    %v2788 = vunpack.c.l.b16 %v2500
    %v2789 = vunpack.c.l.b16 %v2501
    %v2790 = vunpack.c.l.b16 %v2502
    %v2791 = vunpack.c.l.b16 %v2503
    %v2792 = vunpack.c.l.b16 %v2504
    %v2793 = vunpack.c.l.b16 %v2505
    %v2794 = vunpack.c.l.b16 %v2506
    %v2795 = vunpack.c.l.b16 %v2507
    %v2796 = vunpack.c.l.b16 %v2508
    %v2797 = vunpack.c.l.b16 %v2509
    %v2798 = vunpack.c.l.b16 %v2510
    %v2799 = vunpack.c.l.b16 %v2511
    %v2800 = vunpack.c.l.b16 %v2512
    %v2801 = vunpack.c.l.b16 %v2513
    %v2802 = vunpack.c.l.b16 %v2514
    %v2803 = vunpack.c.l.b16 %v2515
    %v2804 = vunpack.c.l.b16 %v2516
    %v2805 = vunpack.c.l.b16 %v2517
    %v2806 = vunpack.c.l.b16 %v2518
    %v2807 = vunpack.c.l.b16 %v2519
    %v2808 = vunpack.c.l.b16 %v2520
    %v2809 = vunpack.c.l.b16 %v2521
    %v2810 = vunpack.c.l.b16 %v2522
    %v2811 = vunpack.c.l.b16 %v2523
    %v2812 = vunpack.c.l.b16 %v2524
    %v2813 = vunpack.c.l.b16 %v2525
    %v2814 = vunpack.c.l.b16 %v2526
    %v2815 = vunpack.c.l.b16 %v2527
    %v2816 = vunpack.c.l.b16 %v2528
    %v2817 = vunpack.c.l.b16 %v2529
    %v2818 = vunpack.c.l.b16 %v2530
    %v2819 = vunpack.c.l.b16 %v2531
    %v2820 = vunpack.c.l.b16 %v2532
    %v2821 = vunpack.c.l.b16 %v2533
    %v2822 = vunpack.c.l.b16 %v2534
    %v2823 = vunpack.c.l.b16 %v2535
    %v2824 = vunpack.c.l.b16 %v2536
    %v2825 = vunpack.c.l.b16 %v2537
    %v2826 = vunpack.c.l.b16 %v2538
    %v2827 = vunpack.c.l.b16 %v2539
    %v2828 = vunpack.c.l.b16 %v2540
    %v2829 = vunpack.c.l.b16 %v2541
    %v2830 = vunpack.c.l.b16 %v2542
    %v2831 = vunpack.c.l.b16 %v2543
    %v2832 = vunpack.c.l.b16 %v2544
    %v2833 = vunpack.c.l.b16 %v2545
    %v2834 = vunpack.c.l.b16 %v2546
    %v2835 = vunpack.c.l.b16 %v2547
    %v2836 = vunpack.c.l.b16 %v2548
    %v2837 = vunpack.c.l.b16 %v2549
    %v2838 = vunpack.c.l.b16 %v2550
    %v2839 = vunpack.c.l.b16 %v2551
    %v2840 = vunpack.c.l.b16 %v2552
    %v2841 = vunpack.c.l.b16 %v2553
    %v2842 = vunpack.c.l.b16 %v2554
    %v2843 = vunpack.c.l.b16 %v2555
    %v2844 = vunpack.c.l.b16 %v2556
    %v2845 = vunpack.c.l.b16 %v2557
    %v2846 = vunpack.c.l.b16 %v2558
    %v2847 = vunpack.c.l.b16 %v2559
    %v2848 = vunpack.c.l.b16 %v2560
    %v2849 = vunpack.c.l.b16 %v2561
    %v2850 = vunpack.c.l.b16 %v2562
    %v2851 = vunpack.c.l.b16 %v2563
    %v2852 = vunpack.c.l.b16 %v2564
    %v2853 = vunpack.c.l.b16 %v2565
    %v2854 = vunpack.c.l.b16 %v2566
    %v2855 = vunpack.c.l.b16 %v2567
    %v2856 = vunpack.c.l.b16 %v2568
    %v2857 = vunpack.c.l.b16 %v2569
    %v2858 = vunpack.c.l.b16 %v2570
    %v2859 = vunpack.c.l.b16 %v2571
    %v2860 = vunpack.c.l.b16 %v2572
    %v2861 = vunpack.c.l.b16 %v2573
    %v2862 = vunpack.c.l.b16 %v2574
    %v2863 = vunpack.c.l.b16 %v2575
    %v2864 = vunpack.c.l.b16 %v2576
    %v2865 = vunpack.c.l.b16 %v2577
    %v2866 = vunpack.c.l.b16 %v2578
    %v2867 = vunpack.c.l.b16 %v2579
    %v2868 = vunpack.c.l.b16 %v2580
    %v2869 = vunpack.c.l.b16 %v2581
    %v2870 = vunpack.c.l.b16 %v2582
    %v2871 = vunpack.c.l.b16 %v2583
    %v2872 = vunpack.c.l.b16 %v2584
    %v2873 = vunpack.c.l.b16 %v2585
    %v2874 = vunpack.c.l.b16 %v2586
    %v2875 = vunpack.c.l.b16 %v2587
    %v2876 = vunpack.c.l.b16 %v2588
    %v2877 = vunpack.c.l.b16 %v2589
    %v2878 = vunpack.c.l.b16 %v2590
    %v2879 = vunpack.c.l.b16 %v2591
    %v2880 = vunpack.c.l.b16 %v2592
    %v2881 = vunpack.c.l.b16 %v2593
    %v2882 = vunpack.c.l.b16 %v2594
    %v2883 = vunpack.c.l.b16 %v2595
    %v2884 = vunpack.c.l.b16 %v2596
    %v2885 = vunpack.c.l.b16 %v2597
    %v2886 = vunpack.c.l.b16 %v2598
    %v2887 = vunpack.c.l.b16 %v2599
    %v2888 = vunpack.c.l.b16 %v2600
    %v2889 = vunpack.c.l.b16 %v2601
    %v2890 = vunpack.c.l.b16 %v2602
    %v2891 = vunpack.c.l.b16 %v2603
    %v2892 = vunpack.c.l.b16 %v2604
    %v2893 = vunpack.c.l.b16 %v2605
    %v2894 = vunpack.c.l.b16 %v2606
    %v2895 = vunpack.c.l.b16 %v2607
    %v2896 = vunpack.c.l.b16 %v2608
    %v2897 = vunpack.c.l.b16 %v2609
    %v2898 = vunpack.c.l.b16 %v2610
    %v2899 = vunpack.c.l.b16 %v2611
    %v2900 = vunpack.c.l.b16 %v2612
    %v2901 = vunpack.c.l.b16 %v2613
    %v2902 = vunpack.c.l.b16 %v2614
    %v2903 = vunpack.c.l.b16 %v2615
    %v2904 = vunpack.c.l.b16 %v2616
    %v2905 = vunpack.c.l.b16 %v2617
    %v2906 = vunpack.c.l.b16 %v2618
    %v2907 = vunpack.c.l.b16 %v2619
    %v2908 = vunpack.c.l.b16 %v2620
    %v2909 = vunpack.c.l.b16 %v2621
    %v2910 = vunpack.c.l.b16 %v2622
    %v2911 = vunpack.c.l.b16 %v2623
    %v2912 = vunpack.c.l.b16 %v2624
    %v2913 = vunpack.c.l.b16 %v2625
    %v2914 = vunpack.c.l.b16 %v2626
    %v2915 = vunpack.c.l.b16 %v2627
    %v2916 = vunpack.c.l.b16 %v2628
    %v2917 = vunpack.c.l.b16 %v2629
    %v2918 = vunpack.c.l.b16 %v2630
    %v2919 = vunpack.c.l.b16 %v2631
    %v2920 = vunpack.c.l.b16 %v2632
    %v2921 = vunpack.c.l.b16 %v2633
    %v2922 = vunpack.c.l.b16 %v2634
    %v2923 = vunpack.c.l.b16 %v2635
    %v2924 = vunpack.c.l.b16 %v2636
    %v2925 = vunpack.c.l.b16 %v2637
    %v2926 = vunpack.c.l.b16 %v2638
    %v2927 = vpack.c.b16 %v2784, %v2783
    %v2928 = vpack.c.b16 %v2786, %v2785
    %v2929 = vpack.c.b16 %v2788, %v2787
    %v2930 = vpack.c.b16 %v2790, %v2789
    %v2931 = vpack.c.b16 %v2792, %v2791
    %v2932 = vpack.c.b16 %v2794, %v2793
    %v2933 = vpack.c.b16 %v2796, %v2795
    %v2934 = vpack.c.b16 %v2798, %v2797
    %v2935 = vpack.c.b16 %v2800, %v2799
    %v2936 = vpack.c.b16 %v2802, %v2801
    %v2937 = vpack.c.b16 %v2804, %v2803
    %v2938 = vpack.c.b16 %v2806, %v2805
    %v2939 = vpack.c.b16 %v2808, %v2807
    %v2940 = vpack.c.b16 %v2810, %v2809
    %v2941 = vpack.c.b16 %v2812, %v2811
    %v2942 = vpack.c.b16 %v2814, %v2813
    %v2943 = vpack.c.b16 %v2816, %v2815
    %v2944 = vpack.c.b16 %v2818, %v2817
    %v2945 = vpack.c.b16 %v2820, %v2819
    %v2946 = vpack.c.b16 %v2822, %v2821
    %v2947 = vpack.c.b16 %v2824, %v2823
    %v2948 = vpack.c.b16 %v2826, %v2825
    %v2949 = vpack.c.b16 %v2828, %v2827
    %v2950 = vpack.c.b16 %v2830, %v2829
    %v2951 = vpack.c.b16 %v2832, %v2831
    %v2952 = vpack.c.b16 %v2834, %v2833
    %v2953 = vpack.c.b16 %v2836, %v2835
    %v2954 = vpack.c.b16 %v2838, %v2837
    %v2955 = vpack.c.b16 %v2840, %v2839
    %v2956 = vpack.c.b16 %v2842, %v2841
    %v2957 = vpack.c.b16 %v2844, %v2843
    %v2958 = vpack.c.b16 %v2846, %v2845
    %v2959 = vpack.c.b16 %v2848, %v2847
    %v2960 = vpack.c.b16 %v2850, %v2849
    %v2961 = vpack.c.b16 %v2852, %v2851
    %v2962 = vpack.c.b16 %v2854, %v2853
    %v2963 = vpack.c.b16 %v2856, %v2855
    %v2964 = vpack.c.b16 %v2858, %v2857
    %v2965 = vpack.c.b16 %v2860, %v2859
    %v2966 = vpack.c.b16 %v2862, %v2861
    %v2967 = vpack.c.b16 %v2864, %v2863
    %v2968 = vpack.c.b16 %v2866, %v2865
    %v2969 = vpack.c.b16 %v2868, %v2867
    %v2970 = vpack.c.b16 %v2870, %v2869
    %v2971 = vpack.c.b16 %v2872, %v2871
    %v2972 = vpack.c.b16 %v2874, %v2873
    %v2973 = vpack.c.b16 %v2876, %v2875
    %v2974 = vpack.c.b16 %v2878, %v2877
    %v2975 = vpack.c.b16 %v2880, %v2879
    %v2976 = vpack.c.b16 %v2882, %v2881
    %v2977 = vpack.c.b16 %v2884, %v2883
    %v2978 = vpack.c.b16 %v2886, %v2885
    %v2979 = vpack.c.b16 %v2888, %v2887
    %v2980 = vpack.c.b16 %v2890, %v2889
    %v2981 = vpack.c.b16 %v2892, %v2891
    %v2982 = vpack.c.b16 %v2894, %v2893
    %v2983 = vpack.c.b16 %v2896, %v2895
    %v2984 = vpack.c.b16 %v2898, %v2897
    %v2985 = vpack.c.b16 %v2900, %v2899
    %v2986 = vpack.c.b16 %v2902, %v2901
    %v2987 = vpack.c.b16 %v2904, %v2903
    %v2988 = vpack.c.b16 %v2906, %v2905
    %v2989 = vpack.c.b16 %v2908, %v2907
    %v2990 = vpack.c.b16 %v2910, %v2909
    %v2991 = vpack.c.b16 %v2912, %v2911
    %v2992 = vpack.c.b16 %v2914, %v2913
    %v2993 = vpack.c.b16 %v2916, %v2915
    %v2994 = vpack.c.b16 %v2918, %v2917
    %v2995 = vpack.c.b16 %v2920, %v2919
    %v2996 = vpack.c.b16 %v2922, %v2921
    %v2997 = vpack.c.b16 %v2924, %v2923
    %v2998 = vpack.c.b16 %v2926, %v2925
    %3071 = vmatpush.bf16.msra.mxu0 %v2934
    %3072 = vmatpush.bf16.msra.mxu0 %v2933
    %3073 = vmatpush.bf16.msra.mxu0 %v2932
    %3074 = vmatpush.bf16.msra.mxu0 %v2931
    %3075 = vmatpush.bf16.msra.mxu0 %v2930
    %3076 = vmatpush.bf16.msra.mxu0 %v2929
    %3077 = vmatpush.bf16.msra.mxu0 %v2928
    %3078 = vmatpush.bf16.msra.mxu0 %v2927
    %3079 = vmatmul.bf16.gmra.mxu0 %v2477
    %v3080 = vpop.f32.mrf.mxu0
    %v3081 = vadd.f32 0.0, %v3080
    %v3082 = vpop.f32.mrf.mxu0
    %v3083 = vadd.f32 0.0, %v3082
    %3084 = vmatmul.bf16.gmra.mxu0 %v2486
    %v3085 = vpop.f32.mrf.mxu0
    %v3086 = vadd.f32 0.0, %v3085
    %v3087 = vpop.f32.mrf.mxu0
    %v3088 = vadd.f32 0.0, %v3087
    %3089 = vdwg.mxu0
    %3090 = vmatpush.bf16.msra.mxu0 %v2942
    %3091 = vmatpush.bf16.msra.mxu0 %v2941
    %3092 = vmatpush.bf16.msra.mxu0 %v2940
    %3093 = vmatpush.bf16.msra.mxu0 %v2939
    %3094 = vmatpush.bf16.msra.mxu0 %v2938
    %3095 = vmatpush.bf16.msra.mxu0 %v2937
    %3096 = vmatpush.bf16.msra.mxu0 %v2936
    %3097 = vmatpush.bf16.msra.mxu0 %v2935
    %3098 = vmatmul.bf16.gmra.mxu0 %v2478
    %v3099 = vpop.f32.mrf.mxu0
    %v3100 = vadd.f32 %v3081, %v3099
    %v3101 = vpop.f32.mrf.mxu0
    %v3102 = vadd.f32 %v3083, %v3101
    %3103 = vmatmul.bf16.gmra.mxu0 %v2487
    %v3104 = vpop.f32.mrf.mxu0
    %v3105 = vadd.f32 %v3086, %v3104
    %v3106 = vpop.f32.mrf.mxu0
    %v3107 = vadd.f32 %v3088, %v3106
    %3108 = vdwg.mxu0
    %3109 = vmatpush.bf16.msra.mxu0 %v2950
    %3110 = vmatpush.bf16.msra.mxu0 %v2949
    %3111 = vmatpush.bf16.msra.mxu0 %v2948
    %3112 = vmatpush.bf16.msra.mxu0 %v2947
    %3113 = vmatpush.bf16.msra.mxu0 %v2946
    %3114 = vmatpush.bf16.msra.mxu0 %v2945
    %3115 = vmatpush.bf16.msra.mxu0 %v2944
    %3116 = vmatpush.bf16.msra.mxu0 %v2943
    %3117 = vmatmul.bf16.gmra.mxu0 %v2479
    %v3118 = vpop.f32.mrf.mxu0
    %v3119 = vadd.f32 %v3100, %v3118
    %v3120 = vpop.f32.mrf.mxu0
    %v3121 = vadd.f32 %v3102, %v3120
    %3122 = vmatmul.bf16.gmra.mxu0 %v2488
    %v3123 = vpop.f32.mrf.mxu0
    %v3124 = vadd.f32 %v3105, %v3123
    %v3125 = vpop.f32.mrf.mxu0
    %v3126 = vadd.f32 %v3107, %v3125
    %3127 = vdwg.mxu0
    %3128 = vmatpush.bf16.msra.mxu0 %v2958
    %3129 = vmatpush.bf16.msra.mxu0 %v2957
    %3130 = vmatpush.bf16.msra.mxu0 %v2956
    %3131 = vmatpush.bf16.msra.mxu0 %v2955
    %3132 = vmatpush.bf16.msra.mxu0 %v2954
    %3133 = vmatpush.bf16.msra.mxu0 %v2953
    %3134 = vmatpush.bf16.msra.mxu0 %v2952
    %3135 = vmatpush.bf16.msra.mxu0 %v2951
    %3136 = vmatmul.bf16.gmra.mxu0 %v2480
    %v3137 = vpop.f32.mrf.mxu0
    %v3138 = vadd.f32 %v3119, %v3137
    %v3139 = vpop.f32.mrf.mxu0
    %v3140 = vadd.f32 %v3121, %v3139
    %3141 = vmatmul.bf16.gmra.mxu0 %v2489
    %v3142 = vpop.f32.mrf.mxu0
    %v3143 = vadd.f32 %v3124, %v3142
    %v3144 = vpop.f32.mrf.mxu0
    %v3145 = vadd.f32 %v3126, %v3144
    %3146 = vdwg.mxu0
    %3147 = vmatpush.bf16.msra.mxu0 %v2966
    %3148 = vmatpush.bf16.msra.mxu0 %v2965
    %3149 = vmatpush.bf16.msra.mxu0 %v2964
    %3150 = vmatpush.bf16.msra.mxu0 %v2963
    %3151 = vmatpush.bf16.msra.mxu0 %v2962
    %3152 = vmatpush.bf16.msra.mxu0 %v2961
    %3153 = vmatpush.bf16.msra.mxu0 %v2960
    %3154 = vmatpush.bf16.msra.mxu0 %v2959
    %3155 = vmatmul.bf16.gmra.mxu0 %v2481
    %v3156 = vpop.f32.mrf.mxu0
    %v3157 = vadd.f32 %v3138, %v3156
    %v3158 = vpop.f32.mrf.mxu0
    %v3159 = vadd.f32 %v3140, %v3158
    %3160 = vmatmul.bf16.gmra.mxu0 %v2490
    %v3161 = vpop.f32.mrf.mxu0
    %v3162 = vadd.f32 %v3143, %v3161
    %v3163 = vpop.f32.mrf.mxu0
    %v3164 = vadd.f32 %v3145, %v3163
    %3165 = vdwg.mxu0
    %3166 = vmatpush.bf16.msra.mxu0 %v2974
    %3167 = vmatpush.bf16.msra.mxu0 %v2973
    %3168 = vmatpush.bf16.msra.mxu0 %v2972
    %3169 = vmatpush.bf16.msra.mxu0 %v2971
    %3170 = vmatpush.bf16.msra.mxu0 %v2970
    %3171 = vmatpush.bf16.msra.mxu0 %v2969
    %3172 = vmatpush.bf16.msra.mxu0 %v2968
    %3173 = vmatpush.bf16.msra.mxu0 %v2967
    %3174 = vmatmul.bf16.gmra.mxu0 %v2482
    %v3175 = vpop.f32.mrf.mxu0
    %v3176 = vadd.f32 %v3157, %v3175
    %v3177 = vpop.f32.mrf.mxu0
    %v3178 = vadd.f32 %v3159, %v3177
    %3179 = vmatmul.bf16.gmra.mxu0 %v2491
    %v3180 = vpop.f32.mrf.mxu0
    %v3181 = vadd.f32 %v3162, %v3180
    %v3182 = vpop.f32.mrf.mxu0
    %v3183 = vadd.f32 %v3164, %v3182
    %3184 = vdwg.mxu0
    %3185 = vmatpush.bf16.msra.mxu0 %v2982
    %3186 = vmatpush.bf16.msra.mxu0 %v2981
    %3187 = vmatpush.bf16.msra.mxu0 %v2980
    %3188 = vmatpush.bf16.msra.mxu0 %v2979
    %3189 = vmatpush.bf16.msra.mxu0 %v2978
    %3190 = vmatpush.bf16.msra.mxu0 %v2977
    %3191 = vmatpush.bf16.msra.mxu0 %v2976
    %3192 = vmatpush.bf16.msra.mxu0 %v2975
    %3193 = vmatmul.bf16.gmra.mxu0 %v2483
    %v3194 = vpop.f32.mrf.mxu0
    %v3195 = vadd.f32 %v3176, %v3194
    %v3196 = vpop.f32.mrf.mxu0
    %v3197 = vadd.f32 %v3178, %v3196
    %3198 = vmatmul.bf16.gmra.mxu0 %v2492
    %v3199 = vpop.f32.mrf.mxu0
    %v3200 = vadd.f32 %v3181, %v3199
    %v3201 = vpop.f32.mrf.mxu0
    %v3202 = vadd.f32 %v3183, %v3201
    %3203 = vdwg.mxu0
    %3204 = vmatpush.bf16.msra.mxu0 %v2990
    %3205 = vmatpush.bf16.msra.mxu0 %v2989
    %3206 = vmatpush.bf16.msra.mxu0 %v2988
    %3207 = vmatpush.bf16.msra.mxu0 %v2987
    %3208 = vmatpush.bf16.msra.mxu0 %v2986
    %3209 = vmatpush.bf16.msra.mxu0 %v2985
    %3210 = vmatpush.bf16.msra.mxu0 %v2984
    %3211 = vmatpush.bf16.msra.mxu0 %v2983
    %3212 = vmatmul.bf16.gmra.mxu0 %v2484
    %v3213 = vpop.f32.mrf.mxu0
    %v3214 = vadd.f32 %v3195, %v3213
    %v3215 = vpop.f32.mrf.mxu0
    %v3216 = vadd.f32 %v3197, %v3215
    %3217 = vmatmul.bf16.gmra.mxu0 %v2493
    %v3218 = vpop.f32.mrf.mxu0
    %v3219 = vadd.f32 %v3200, %v3218
    %v3220 = vpop.f32.mrf.mxu0
    %v3221 = vadd.f32 %v3202, %v3220
    %3222 = vdwg.mxu0
    %3223 = vmatpush.bf16.msra.mxu0 %v2998
    %3224 = vmatpush.bf16.msra.mxu0 %v2997
    %3225 = vmatpush.bf16.msra.mxu0 %v2996
    %3226 = vmatpush.bf16.msra.mxu0 %v2995
    %3227 = vmatpush.bf16.msra.mxu0 %v2994
    %3228 = vmatpush.bf16.msra.mxu0 %v2993
    %3229 = vmatpush.bf16.msra.mxu0 %v2992
    %3230 = vmatpush.bf16.msra.mxu0 %v2991
    %3231 = vmatmul.bf16.gmra.mxu0 %v2485
    %v3232 = vpop.f32.mrf.mxu0
    %v3233 = vadd.f32 %v3214, %v3232
    %v3234 = vpop.f32.mrf.mxu0
    %v3235 = vadd.f32 %v3216, %v3234
    %3236 = vmatmul.bf16.gmra.mxu0 %v2494
    %v3237 = vpop.f32.mrf.mxu0
    %v3238 = vadd.f32 %v3219, %v3237
    %v3239 = vpop.f32.mrf.mxu0
    %v3240 = vadd.f32 %v3221, %v3239
    %3241 = vdwg.mxu0
    %v3242 = vld [vmem:[%s17] sm:$0x1]
    %v3243 = vld [vmem:[%s18] sm:$0x1]
    %v3244 = vadd.f32 %v3233, %v3235
    %v3245 = vadd.f32 %v3244, %v3238
    %v3246 = vadd.f32 %v3245, %v3240
    %v3247 = vrot.slane %v3246, 4
    %v3248 = vadd.f32 %v3246, %v3247
    %v3249 = vrot.slane %v3248, 2
    %v3250 = vadd.f32 %v3248, %v3249
    %v3251 = vrot.slane %v3250, 1
    %v3252 = vadd.f32 %v3250, %v3251
    %v3253 = vmul.f32 %v3252, 0.03125
    %v3254 = vmul.f32 %v3233, %v3233
    %v3255 = vmul.f32 %v3235, %v3235
    %v3256 = vmul.f32 %v3238, %v3238
    %v3257 = vmul.f32 %v3240, %v3240
    %v3258 = vadd.f32 %v3254, %v3255
    %v3259 = vadd.f32 %v3258, %v3256
    %v3260 = vadd.f32 %v3259, %v3257
    %v3261 = vrot.slane %v3260, 4
    %v3262 = vadd.f32 %v3260, %v3261
    %v3263 = vrot.slane %v3262, 2
    %v3264 = vadd.f32 %v3262, %v3263
    %v3265 = vrot.slane %v3264, 1
    %v3266 = vadd.f32 %v3264, %v3265
    %v3267 = vmul.f32 %v3266, 0.03125
    %v3268 = vmul.f32 %v3253, %v3253
    %v3269 = vsub.f32 %v3267, %v3268
    %v3270 = vmax.f32 %v3269, 0.0
    %v3271 = vadd.f32 %v3270, 1e-05
    %v3272 = vrsqrt.pop %v3271
    %v3273 = vmul.f32 %v3272, %v3271
    %v3274 = vmul.f32 %v3273, %v3272
    %v3275 = vmul.f32 0.5, %v3274
    %v3276 = vsub.f32 1.5, %v3275
    %v3277 = vmul.f32 %v3272, %v3276
    %vm3278 = vweird.f32 %v3271
    %vm3279 = vweird.f32 %v3272
    %vm3280 = vmor %vm3278, %vm3279
    %v3281 = vsel %vm3280, %v3272, %v3277
    %v3282 = vmul.f32 %v3242, %v3281
    %v3283 = vmul.f32 %v3253, %v3282
    %v3284 = vsub.f32 %v3243, %v3283
    %v3286 = vperm.slane %v3282, 0
    %v3288 = vmul.f32 %v3233, %v3286
    %v3289 = vmul.f32 %v3235, %v3286
    %v3290 = vmul.f32 %v3238, %v3286
    %v3291 = vmul.f32 %v3240, %v3286
    %v3293 = vperm.slane %v3284, 0
    %v3295 = vadd.f32 %v3288, %v3293
    %v3296 = vadd.f32 %v3289, %v3293
    %v3297 = vadd.f32 %v3290, %v3293
    %v3298 = vadd.f32 %v3291, %v3293
    %v3299 = vmax.f32 %v3295, 0.0
    %v3300 = vmax.f32 %v3296, 0.0
    %v3301 = vmax.f32 %v3297, 0.0
    %v3302 = vmax.f32 %v3298, 0.0
    %v3303 = vpack.c.bf16 %v3300, %v3299
    %v3304 = vpack.c.bf16 %v3302, %v3301
    %v3305 = vld [vmem:[#allocation21] sm:$0xf]
    %v3306 = vld [vmem:[#allocation21 + $0x4] sm:$0xf]
    %v3307 = vld [vmem:[#allocation21 + $0x8] sm:$0xf]
    %v3308 = vld [vmem:[#allocation21 + $0xc] sm:$0xf]
    %v3309 = vld [vmem:[#allocation21 + $0x10] sm:$0xf]
    %v3310 = vld [vmem:[#allocation21 + $0x14] sm:$0xf]
    %v3311 = vld [vmem:[#allocation21 + $0x18] sm:$0xf]
    %v3312 = vld [vmem:[#allocation21 + $0x1c] sm:$0xf]
    %v3313 = vld [vmem:[#allocation21 + $0x20] sm:$0xf]
    %v3314 = vld [vmem:[#allocation21 + $0x24] sm:$0xf]
    %v3315 = vld [vmem:[#allocation21 + $0x28] sm:$0xf]
    %v3316 = vld [vmem:[#allocation21 + $0x2c] sm:$0xf]
    %v3317 = vld [vmem:[#allocation21 + $0x30] sm:$0xf]
    %v3318 = vld [vmem:[#allocation21 + $0x34] sm:$0xf]
    %v3319 = vld [vmem:[#allocation21 + $0x38] sm:$0xf]
    %v3320 = vld [vmem:[#allocation21 + $0x3c] sm:$0xf]
    %v3337 = vunpack.c.l.b16 %v3305
    %v3338 = vunpack.c.l.b16 %v3306
    %v3339 = vunpack.c.l.b16 %v3307
    %v3340 = vunpack.c.l.b16 %v3308
    %v3341 = vunpack.c.l.b16 %v3309
    %v3342 = vunpack.c.l.b16 %v3310
    %v3343 = vunpack.c.l.b16 %v3311
    %v3344 = vunpack.c.l.b16 %v3312
    %v3345 = vunpack.c.l.b16 %v3313
    %v3346 = vunpack.c.l.b16 %v3314
    %v3347 = vunpack.c.l.b16 %v3315
    %v3348 = vunpack.c.l.b16 %v3316
    %v3349 = vunpack.c.l.b16 %v3317
    %v3350 = vunpack.c.l.b16 %v3318
    %v3351 = vunpack.c.l.b16 %v3319
    %v3352 = vunpack.c.l.b16 %v3320
    %v3353 = vpack.c.b16 %v3338, %v3337
    %v3354 = vpack.c.b16 %v3340, %v3339
    %v3355 = vpack.c.b16 %v3342, %v3341
    %v3356 = vpack.c.b16 %v3344, %v3343
    %v3357 = vpack.c.b16 %v3346, %v3345
    %v3358 = vpack.c.b16 %v3348, %v3347
    %v3359 = vpack.c.b16 %v3350, %v3349
    %v3360 = vpack.c.b16 %v3352, %v3351
    %3369 = vmatpush.bf16.msra.mxu0 %v3360
    %3370 = vmatpush.bf16.msra.mxu0 %v3359
    %3371 = vmatpush.bf16.msra.mxu0 %v3358
    %3372 = vmatpush.bf16.msra.mxu0 %v3357
    %3373 = vmatpush.bf16.msra.mxu0 %v3356
    %3374 = vmatpush.bf16.msra.mxu0 %v3355
    %3375 = vmatpush.bf16.msra.mxu0 %v3354
    %3376 = vmatpush.bf16.msra.mxu0 %v3353
    %3377 = vmatmul.bf16.gmra.mxu0 %v2026
    %v3378 = vpop.f32.mrf.mxu0
    %v3379 = vadd.f32 0.0, %v3378
    %v3380 = vpop.f32.mrf.mxu0
    %v3381 = vadd.f32 0.0, %v3380
    %3382 = vmatmul.bf16.gmra.mxu0 %v2027
    %v3383 = vpop.f32.mrf.mxu0
    %v3384 = vadd.f32 0.0, %v3383
    %v3385 = vpop.f32.mrf.mxu0
    %v3386 = vadd.f32 0.0, %v3385
    %3387 = vdwg.mxu0
    %v3388 = vld [vmem:[%s23] sm:$0x1]
    %v3389 = vld [vmem:[%s24] sm:$0x1]
    %v3390 = vadd.f32 %v3379, %v3381
    %v3391 = vadd.f32 %v3390, %v3384
    %v3392 = vadd.f32 %v3391, %v3386
    %v3393 = vrot.slane %v3392, 4
    %v3394 = vadd.f32 %v3392, %v3393
    %v3395 = vrot.slane %v3394, 2
    %v3396 = vadd.f32 %v3394, %v3395
    %v3397 = vrot.slane %v3396, 1
    %v3398 = vadd.f32 %v3396, %v3397
    %v3399 = vmul.f32 %v3398, 0.03125
    %v3400 = vmul.f32 %v3379, %v3379
    %v3401 = vmul.f32 %v3381, %v3381
    %v3402 = vmul.f32 %v3384, %v3384
    %v3403 = vmul.f32 %v3386, %v3386
    %v3404 = vadd.f32 %v3400, %v3401
    %v3405 = vadd.f32 %v3404, %v3402
    %v3406 = vadd.f32 %v3405, %v3403
    %v3407 = vrot.slane %v3406, 4
    %v3408 = vadd.f32 %v3406, %v3407
    %v3409 = vrot.slane %v3408, 2
    %v3410 = vadd.f32 %v3408, %v3409
    %v3411 = vrot.slane %v3410, 1
    %v3412 = vadd.f32 %v3410, %v3411
    %v3413 = vmul.f32 %v3412, 0.03125
    %v3414 = vmul.f32 %v3399, %v3399
    %v3415 = vsub.f32 %v3413, %v3414
    %v3416 = vmax.f32 %v3415, 0.0
    %v3417 = vadd.f32 %v3416, 1e-05
    %v3418 = vrsqrt.pop %v3417
    %v3419 = vmul.f32 %v3418, %v3417
    %v3420 = vmul.f32 %v3419, %v3418
    %v3421 = vmul.f32 0.5, %v3420
    %v3422 = vsub.f32 1.5, %v3421
    %v3423 = vmul.f32 %v3418, %v3422
    %vm3424 = vweird.f32 %v3417
    %vm3425 = vweird.f32 %v3418
    %vm3426 = vmor %vm3424, %vm3425
    %v3427 = vsel %vm3426, %v3418, %v3423
    %v3428 = vmul.f32 %v3388, %v3427
    %v3429 = vmul.f32 %v3399, %v3428
    %v3430 = vsub.f32 %v3389, %v3429
    %v3432 = vperm.slane %v3428, 0
    %v3434 = vmul.f32 %v3379, %v3432
    %v3435 = vmul.f32 %v3381, %v3432
    %v3436 = vmul.f32 %v3384, %v3432
    %v3437 = vmul.f32 %v3386, %v3432
    %v3439 = vperm.slane %v3430, 0
    %v3441 = vadd.f32 %v3434, %v3439
    %v3442 = vadd.f32 %v3435, %v3439
    %v3443 = vadd.f32 %v3436, %v3439
    %v3444 = vadd.f32 %v3437, %v3439
    %v3445 = vld [vmem:[#allocation19] sm:$0xf]
    %v3446 = vld [vmem:[#allocation19 + $0x4] sm:$0xf]
    %v3447 = vld [vmem:[#allocation19 + $0x8] sm:$0xf]
    %v3448 = vld [vmem:[#allocation19 + $0xc] sm:$0xf]
    %v3449 = vld [vmem:[#allocation19 + $0x10] sm:$0xf]
    %v3450 = vld [vmem:[#allocation19 + $0x14] sm:$0xf]
    %v3451 = vld [vmem:[#allocation19 + $0x18] sm:$0xf]
    %v3452 = vld [vmem:[#allocation19 + $0x1c] sm:$0xf]
    %v3453 = vld [vmem:[#allocation19 + $0x20] sm:$0xf]
    %v3454 = vld [vmem:[#allocation19 + $0x24] sm:$0xf]
    %v3455 = vld [vmem:[#allocation19 + $0x28] sm:$0xf]
    %v3456 = vld [vmem:[#allocation19 + $0x2c] sm:$0xf]
    %v3457 = vld [vmem:[#allocation19 + $0x30] sm:$0xf]
    %v3458 = vld [vmem:[#allocation19 + $0x34] sm:$0xf]
    %v3459 = vld [vmem:[#allocation19 + $0x38] sm:$0xf]
    %v3460 = vld [vmem:[#allocation19 + $0x3c] sm:$0xf]
    %v3477 = vunpack.c.l.b16 %v3445
    %v3478 = vunpack.c.l.b16 %v3446
    %v3479 = vunpack.c.l.b16 %v3447
    %v3480 = vunpack.c.l.b16 %v3448
    %v3481 = vunpack.c.l.b16 %v3449
    %v3482 = vunpack.c.l.b16 %v3450
    %v3483 = vunpack.c.l.b16 %v3451
    %v3484 = vunpack.c.l.b16 %v3452
    %v3485 = vunpack.c.l.b16 %v3453
    %v3486 = vunpack.c.l.b16 %v3454
    %v3487 = vunpack.c.l.b16 %v3455
    %v3488 = vunpack.c.l.b16 %v3456
    %v3489 = vunpack.c.l.b16 %v3457
    %v3490 = vunpack.c.l.b16 %v3458
    %v3491 = vunpack.c.l.b16 %v3459
    %v3492 = vunpack.c.l.b16 %v3460
    %v3493 = vpack.c.b16 %v3478, %v3477
    %v3494 = vpack.c.b16 %v3480, %v3479
    %v3495 = vpack.c.b16 %v3482, %v3481
    %v3496 = vpack.c.b16 %v3484, %v3483
    %v3497 = vpack.c.b16 %v3486, %v3485
    %v3498 = vpack.c.b16 %v3488, %v3487
    %v3499 = vpack.c.b16 %v3490, %v3489
    %v3500 = vpack.c.b16 %v3492, %v3491
    %3509 = vmatpush.bf16.msra.mxu0 %v3500
    %3510 = vmatpush.bf16.msra.mxu0 %v3499
    %3511 = vmatpush.bf16.msra.mxu0 %v3498
    %3512 = vmatpush.bf16.msra.mxu0 %v3497
    %3513 = vmatpush.bf16.msra.mxu0 %v3496
    %3514 = vmatpush.bf16.msra.mxu0 %v3495
    %3515 = vmatpush.bf16.msra.mxu0 %v3494
    %3516 = vmatpush.bf16.msra.mxu0 %v3493
    %3517 = vmatmul.bf16.gmra.mxu0 %v3303
    %v3518 = vpop.f32.mrf.mxu0
    %v3519 = vadd.f32 0.0, %v3518
    %v3520 = vpop.f32.mrf.mxu0
    %v3521 = vadd.f32 0.0, %v3520
    %3522 = vmatmul.bf16.gmra.mxu0 %v3304
    %v3523 = vpop.f32.mrf.mxu0
    %v3524 = vadd.f32 0.0, %v3523
    %v3525 = vpop.f32.mrf.mxu0
    %v3526 = vadd.f32 0.0, %v3525
    %3527 = vdwg.mxu0
    %v3528 = vld [vmem:[%s20] sm:$0x1]
    %v3529 = vld [vmem:[%s21] sm:$0x1]
    %v3530 = vadd.f32 %v3519, %v3521
    %v3531 = vadd.f32 %v3530, %v3524
    %v3532 = vadd.f32 %v3531, %v3526
    %v3533 = vrot.slane %v3532, 4
    %v3534 = vadd.f32 %v3532, %v3533
    %v3535 = vrot.slane %v3534, 2
    %v3536 = vadd.f32 %v3534, %v3535
    %v3537 = vrot.slane %v3536, 1
    %v3538 = vadd.f32 %v3536, %v3537
    %v3539 = vmul.f32 %v3538, 0.03125
    %v3540 = vmul.f32 %v3519, %v3519
    %v3541 = vmul.f32 %v3521, %v3521
    %v3542 = vmul.f32 %v3524, %v3524
    %v3543 = vmul.f32 %v3526, %v3526
    %v3544 = vadd.f32 %v3540, %v3541
    %v3545 = vadd.f32 %v3544, %v3542
    %v3546 = vadd.f32 %v3545, %v3543
    %v3547 = vrot.slane %v3546, 4
    %v3548 = vadd.f32 %v3546, %v3547
    %v3549 = vrot.slane %v3548, 2
    %v3550 = vadd.f32 %v3548, %v3549
    %v3551 = vrot.slane %v3550, 1
    %v3552 = vadd.f32 %v3550, %v3551
    %v3553 = vmul.f32 %v3552, 0.03125
    %v3554 = vmul.f32 %v3539, %v3539
    %v3555 = vsub.f32 %v3553, %v3554
    %v3556 = vmax.f32 %v3555, 0.0
    %v3557 = vadd.f32 %v3556, 1e-05
    %v3558 = vrsqrt.pop %v3557
    %v3559 = vmul.f32 %v3558, %v3557
    %v3560 = vmul.f32 %v3559, %v3558
    %v3561 = vmul.f32 0.5, %v3560
    %v3562 = vsub.f32 1.5, %v3561
    %v3563 = vmul.f32 %v3558, %v3562
    %vm3564 = vweird.f32 %v3557
    %vm3565 = vweird.f32 %v3558
    %vm3566 = vmor %vm3564, %vm3565
    %v3567 = vsel %vm3566, %v3558, %v3563
    %v3568 = vmul.f32 %v3528, %v3567
    %v3569 = vmul.f32 %v3539, %v3568
    %v3570 = vsub.f32 %v3529, %v3569
    %v3572 = vperm.slane %v3568, 0
    %v3574 = vmul.f32 %v3519, %v3572
    %v3575 = vmul.f32 %v3521, %v3572
    %v3576 = vmul.f32 %v3524, %v3572
    %v3577 = vmul.f32 %v3526, %v3572
    %v3579 = vperm.slane %v3570, 0
    %v3581 = vadd.f32 %v3574, %v3579
    %v3582 = vadd.f32 %v3575, %v3579
    %v3583 = vadd.f32 %v3576, %v3579
    %v3584 = vadd.f32 %v3577, %v3579
    %v3585 = vadd.f32 %v3581, %v3441
    %v3586 = vadd.f32 %v3582, %v3442
    %v3587 = vadd.f32 %v3583, %v3443
    %v3588 = vadd.f32 %v3584, %v3444
    %v3589 = vmax.f32 %v3585, 0.0
    %v3590 = vmax.f32 %v3586, 0.0
    %v3591 = vmax.f32 %v3587, 0.0
    %v3592 = vmax.f32 %v3588, 0.0
    %3593 = vst [vmem:[#allocation22] sm:$0xff] %v3589
    %3594 = vst [vmem:[#allocation22 + $0x8] sm:$0xff] %v3590
    %3595 = vst [vmem:[#allocation22 + $0x10] sm:$0xff] %v3591
    %3596 = vst [vmem:[#allocation22 + $0x18] sm:$0xff] %v3592
    // Predicated region
    $region138: #{tpu_custom_call.1} parent=1 // pred_check
      _
    $region139: #{tpu_custom_call.1} parent=1 // pred_check_branch
      %3598 = sbr.rel (0) target = $region141
    $region140: #{tpu_custom_call.1} parent=1 // pred_region
      %3600 = vsyncadd [#allocation9], 0
      %s3601 = sshll.u32 [#allocation22], 4
      %s3602 = int_to_ptr.vmem [resolvable:$true] %s3601
      %s3603 = sshll.u32 %s25, 4
      %s3604 = int_to_ptr.hbm [resolvable:$true] %s3603
      %3609 = dma.vmem_to_hbm [thread:$0]  %s3602, 512, %s3604, [#allocation9], 128, 128, 8
    $region141: #{tpu_custom_call.1} parent=1 // pred_fallthru
      _
    // Predicated region
    $region142: #{tpu_custom_call.1} parent=1 // pred_check
      _
    $region143: #{tpu_custom_call.1} parent=1 // pred_check_branch
      %3611 = sbr.rel (0) target = $region145
    $region144: #{tpu_custom_call.1} parent=1 // pred_region
      %3613 = dma.done [#allocation9], 512
    $region145: #{tpu_custom_call.1} parent=1 // pred_fallthru
      _
    %3614 = vsyncpa [#allocation8], 1
    %3615 = vsyncpa [#allocation11], 1
    %3616 = vsyncpa [#allocation14], 1
    %3617 = vsyncpa [#allocation17], 1
    %3618 = vsyncpa [#allocation20], 1
    %3619 = vsyncpa [#allocation9], 1

</llo_original>
